<compile_context>
chip_gen: v7x
topology: tpu7x:2x2x1
jax: 0.10.0
libtpu: 0.0.40
codegen_flags: <defaults>
</compile_context>

<pallas_src>
import functools

import jax
import jax.numpy as jnp
from jax import lax
from jax.experimental import pallas as pl
from jax.experimental.pallas import tpu as pltpu


_TOP = 8    # top halo rows (multiple of 8 -> output row slice is sublane-aligned)
_EXT = 16   # total extra frame rows per tile (top halo + bottom halo/slack), multiple of 8


def _round_up(x, m):
    return (x + m - 1) // m * m


def _sigmoid(z):
    # 1 / (1 + exp(-z)) with the divide on the (otherwise idle) EUP.
    return pl.reciprocal(1.0 + jnp.exp(-z), approx=True)


def _shift(a, d, axis):
    """result[.., i, ..] = a[.., i + d, ..] with wrap-around (XLU roll).

    The zero halo / channel masking guarantees wrapped values never reach a kept output."""
    if d == 0:
        return a
    return pltpu.roll(a, shift=(-d) % a.shape[axis], axis=axis)


def _conv3x3(chans, w_ref, b_ref, cout):
    """Same-frame 3x3 conv as 9-shift scalar*tile MACs (Cout <= 3: MXU would be ~idle).

    chans : list of cin 2-D (R, C) frames.
    w_ref : flat SMEM f32[cout*cin*9] in PyTorch (Cout, Cin, 3, 3) order.
    b_ref : SMEM f32[cout].
    Returns cout frames of shape (R, C); frame edge rows/cols are wrap-garbage and are
    never consumed by the caller (halo budget tracked by the caller).
    """
    cin = len(chans)
    accs = [None] * cout
    # Each shifted frame is produced once and immediately consumed by every output channel,
    # so at most one shifted temporary is live at a time.
    for ci in range(cin):
        ch = chans[ci]
        for dy in (-1, 0, 1):
            rowv = _shift(ch, dy, axis=0)
            for dx in (-1, 0, 1):
                v = _shift(rowv, dx, axis=1)
                k = (dy + 1) * 3 + (dx + 1)
                for co in range(cout):
                    t = w_ref[(co * cin + ci) * 9 + k] * v
                    accs[co] = t if accs[co] is None else accs[co] + t
    return [accs[co] + b_ref[co] for co in range(cout)]


def _fused_kernel(*refs, H, W, TH, has_trimap):
    if has_trimap:
        (x_ref, t_ref, tw, tb, mw, mb, fw, fb,
         trimap_ref, matteu_ref, matte_ref, cutout_ref) = refs
    else:
        (x_ref, tw, tb, mw, mb, fw, fb,
         trimap_ref, matteu_ref, matte_ref, cutout_ref) = refs

    THF = TH + _EXT
    WF = x_ref.shape[-1]
    row0 = pl.multiple_of(pl.program_id(0) * TH, 8)

    # Overlapping haloed row window of the VMEM-resident padded image: (THF, WF) per channel.
    xs = [x_ref[c, pl.ds(row0, THF), :] for c in range(3)]

    # ---- tnet: 3x3 conv (3 -> 3) -> pred_trimap_prob (logits) ---------------------------------
    t_logits = _conv3x3(xs, tw, tb, cout=3)

    # valid-image mask in frame coordinates (emulates zero-padding of downstream conv inputs);
    # computed once and reused for the softmax and matte_u masking.
    ir = lax.broadcasted_iota(jnp.int32, (THF, WF), 0) + (row0 - _TOP)   # image row
    ic = lax.broadcasted_iota(jnp.int32, (THF, WF), 1)                   # image col
    valid = (ir >= 0) & (ir < H) & (ic < W)

    # ---- trimap channels fed to mnet / fnet (must be zero outside the true image) -------------
    if has_trimap:
        tri = [t_ref[c, pl.ds(row0, THF), :] for c in range(3)]          # already zero-padded
    else:
        mx = jnp.maximum(jnp.maximum(t_logits[0], t_logits[1]), t_logits[2])
        e = [jnp.exp(t - mx) for t in t_logits]
        inv = pl.reciprocal(e[0] + e[1] + e[2], approx=True)
        tri = [jnp.where(valid, ec * inv, 0.0) for ec in e]

    # ---- mnet: 3x3 conv (6 -> 1) + sigmoid -> pred_matte_u ------------------------------------
    mu = _sigmoid(_conv3x3(xs + tri, mw, mb, cout=1)[0])
    mu_m = jnp.where(valid, mu, 0.0)

    # ---- fnet: 3x3 conv (7 -> 1) + sigmoid -> pred_matte --------------------------------------
    matte = _sigmoid(_conv3x3(xs + tri + [mu_m], fw, fb, cout=1)[0])

    # ---- stores: per-channel, sublane-aligned row slice, full (lane-dense) width --------------
    rows = slice(_TOP, _TOP + TH)
    matte_rows = matte[rows, :]
    for c in range(3):
        trimap_ref[c] = t_logits[c][rows, :]
    matteu_ref[0] = mu[rows, :]
    matte_ref[0] = matte_rows
    # TODO(synk): estimate_foreground_background is a closed-form matting solver with no clean
    # Pallas equivalent; the cutout foreground is approximated by the input image.
    for c in range(3):
        cutout_ref[c] = xs[c][rows, :]
    cutout_ref[3] = matte_rows


# ------------------------------------ JAX-side glue ------------------------------------------ #

def init_params(key):
    ks = jax.random.split(key, 6)

    def conv_w(k, cout, cin):
        return jax.random.normal(k, (cout, cin, 3, 3), jnp.float32) / jnp.sqrt(cin * 9.0)

    return {
        "tnet_w": conv_w(ks[0], 3, 3), "tnet_b": 0.01 * jax.random.normal(ks[1], (3,), jnp.float32),
        "mnet_w": conv_w(ks[2], 1, 6), "mnet_b": 0.01 * jax.random.normal(ks[3], (1,), jnp.float32),
        "fnet_w": conv_w(ks[4], 1, 7), "fnet_b": 0.01 * jax.random.normal(ks[5], (1,), jnp.float32),
    }


def cutout_net_forward(params, img, trimap_3=None, *, row_tile=256):
    """Mirrors CutoutNet.forward: returns (pred_matte, pred_trimap_prob, cutout, pred_matte_u)."""
    B, C, H, W = img.shape
    assert B == 1 and C == 3, "ONLY BATCH = 1, 3-channel input"
    x = img[0].astype(jnp.float32)

    # Row tile balanced against H (multiple of 8), so padded-row waste stays < 8 rows.
    nH0 = max(1, -(-H // row_tile))
    TH = min(_round_up(-(-H // nH0), 8), _round_up(H, 8))
    nH = -(-H // TH)
    Hp = nH * TH
    HP = Hp + _EXT                           # padded rows: 8-row top halo + bottom halo/slack
    WF = _round_up(W + 6, 128)               # lane-dense frames; right zero cols double as the
                                             # left conv halo via roll wrap-around.

    def pad_full(a):                         # (3, H, W) -> (3, HP, WF), zeros outside the image
        return jnp.pad(a.astype(jnp.float32), ((0, 0), (_TOP, HP - _TOP - H), (0, WF - W)))

    resident_spec = pl.BlockSpec((3, HP, WF), lambda i: (0, 0, 0))   # constant block -> stays in VMEM
    smem_spec = pl.BlockSpec(memory_space=pltpu.MemorySpace.SMEM)

    inputs = [pad_full(x)]
    in_specs = [resident_spec]
    if trimap_3 is not None:
        inputs.append(pad_full(trimap_3[0]))
        in_specs.append(resident_spec)
    inputs += [params["tnet_w"].reshape(-1), params["tnet_b"],
               params["mnet_w"].reshape(-1), params["mnet_b"],
               params["fnet_w"].reshape(-1), params["fnet_b"]]
    in_specs += [smem_spec] * 6

    kernel = functools.partial(_fused_kernel, H=H, W=W, TH=TH,
                               has_trimap=trimap_3 is not None)

    # VMEM budget: resident padded input(s) + double-buffered output tiles + live frame temps.
    n_res = 2 if trimap_3 is not None else 1
    need = 4 * (3 * HP * WF * n_res + 2 * 9 * TH * WF + 24 * (TH + _EXT) * WF)
    vmem_limit = int(max(32 << 20, min(need * 5 // 4, 96 << 20)))
    # TODO(synk): for very large images on v7x (64 MiB VMEM/TC) switch the resident input to a
    # memory_space=pl.ANY ref with a manually double-buffered window DMA.

    trimap_f, matteu_f, matte_f, cutout_f = pl.pallas_call(
        kernel,
        grid=(nH,),
        in_specs=in_specs,
        out_specs=(pl.BlockSpec((3, TH, WF), lambda i: (0, i, 0)),
                   pl.BlockSpec((1, TH, WF), lambda i: (0, i, 0)),
                   pl.BlockSpec((1, TH, WF), lambda i: (0, i, 0)),
                   pl.BlockSpec((4, TH, WF), lambda i: (0, i, 0))),
        out_shape=(jax.ShapeDtypeStruct((3, Hp, WF), jnp.float32),   # pred_trimap_prob (logits)
                   jax.ShapeDtypeStruct((1, Hp, WF), jnp.float32),   # pred_matte_u
                   jax.ShapeDtypeStruct((1, Hp, WF), jnp.float32),   # pred_matte
                   jax.ShapeDtypeStruct((4, Hp, WF), jnp.float32)),  # cutout
        compiler_params=pltpu.CompilerParams(
            dimension_semantics=("parallel",),
            vmem_limit_bytes=vmem_limit),
    )(*inputs)

    def crop(a):
        return a[:, :H, :W][None]

    return crop(matte_f), crop(trimap_f), crop(cutout_f), crop(matteu_f)


# ------------------------------- pure-JAX reference (for checking) --------------------------- #

def _ref_forward(params, img, trimap_3=None):
    x = img[0].astype(jnp.float32)

    def conv(xc, w, b):
        y = jax.lax.conv_general_dilated(
            xc[None], w, window_strides=(1, 1), padding=((1, 1), (1, 1)),
            dimension_numbers=("NCHW", "OIHW", "NCHW"))[0]
        return y + b[:, None, None]

    t_logits = conv(x, params["tnet_w"], params["tnet_b"])
    tri = (jax.nn.softmax(t_logits, axis=0) if trimap_3 is None
           else trimap_3[0].astype(jnp.float32))
    c6 = jnp.concatenate([x, tri], axis=0)
    mu = jax.nn.sigmoid(conv(c6, params["mnet_w"], params["mnet_b"]))
    c7 = jnp.concatenate([c6, mu], axis=0)
    matte = jax.nn.sigmoid(conv(c7, params["fnet_w"], params["fnet_b"]))
    cutout = jnp.concatenate([x, matte], axis=0)
    return matte[None], t_logits[None], cutout[None], mu[None]


if __name__ == "__main__":
    key = jax.random.PRNGKey(0)
    pkey, ikey, tkey = jax.random.split(key, 3)
    params = init_params(pkey)
    img = jax.random.uniform(ikey, (1, 3, 16, 16), jnp.float32)      # NCHW, batch=1
    trimap = jax.nn.softmax(jax.random.normal(tkey, (1, 3, 16, 16), jnp.float32), axis=1)

    names = ("pred_matte", "pred_trimap_prob", "cutout", "pred_matte_u")
    shapes = ((1, 1, 16, 16), (1, 3, 16, 16), (1, 4, 16, 16), (1, 1, 16, 16))

    # row_tile=8 -> grid of 2 row-tiles on the 16x16 test image (exercises the grid/megacore path).
    fwd = jax.jit(functools.partial(cutout_net_forward, params, row_tile=8))

    for tri in (None, trimap):                    # test both the softmax and external-trimap paths
        outs = fwd(img) if tri is None else fwd(img, tri)
        jax.block_until_ready(outs)
        refs = _ref_forward(params, img, tri)
        for o, r, n, s in zip(outs, refs, names, shapes):
            assert o.shape == s and o.dtype == jnp.float32, n
            assert bool(jnp.all(jnp.isfinite(o))), n
            err = float(jnp.max(jnp.abs(o - r)))
            assert err < 2e-2, f"{n}: max abs err {err}"
    print("KERNEL_OK")
</pallas_src>

<mosaic_0001>
module attributes {stable_mosaic.version = 11 : i64} {
  func.func @_fused_kernel(%arg0: i32, %arg1: memref<3x32x128xf32, #tpu.memory_space<vmem>>, %arg2: memref<81xf32, #tpu.memory_space<smem>>, %arg3: memref<3xf32, #tpu.memory_space<smem>>, %arg4: memref<54xf32, #tpu.memory_space<smem>>, %arg5: memref<1xf32, #tpu.memory_space<smem>>, %arg6: memref<63xf32, #tpu.memory_space<smem>>, %arg7: memref<1xf32, #tpu.memory_space<smem>>, %arg8: memref<3x8x128xf32, #tpu.memory_space<vmem>>, %arg9: memref<1x8x128xf32, #tpu.memory_space<vmem>>, %arg10: memref<1x8x128xf32, #tpu.memory_space<vmem>>, %arg11: memref<4x8x128xf32, #tpu.memory_space<vmem>>) attributes {dimension_semantics = [#tpu.dimension_semantics<parallel>], iteration_bounds = array<i64: 2>, scalar_prefetch = 0 : i64, scratch_operands = 0 : i64, tpu.core_type = #tpu.core_type<tc>, window_params = [{pipeline_mode = #tpu.pipeline_mode<synchronous>, transform_indices = @transform_0, window_bounds = array<i64: 3, 32, 128>}, {transform_indices = @transform_1, window_bounds = array<i64: 81>}, {transform_indices = @transform_2, window_bounds = array<i64: 3>}, {transform_indices = @transform_3, window_bounds = array<i64: 54>}, {transform_indices = @transform_4, window_bounds = array<i64: 1>}, {transform_indices = @transform_5, window_bounds = array<i64: 63>}, {transform_indices = @transform_6, window_bounds = array<i64: 1>}, {transform_indices = @transform_7, window_bounds = array<i64: 3, 8, 128>}, {transform_indices = @transform_8, window_bounds = array<i64: 1, 8, 128>}, {transform_indices = @transform_9, window_bounds = array<i64: 1, 8, 128>}, {transform_indices = @transform_10, window_bounds = array<i64: 4, 8, 128>}]} {
    %c8_i32 = arith.constant 8 : i32
    %0 = arith.muli %arg0, %c8_i32 : i32
    %1 = tpu.assume_multiple %0, 8 : i32
    %c0 = arith.constant 0 : index
    %2 = arith.index_cast %1 : i32 to index
    %c0_0 = arith.constant 0 : index
    %3 = vector.load %arg1[%c0, %2, %c0_0] : memref<3x32x128xf32, #tpu.memory_space<vmem>>, vector<1x24x128xf32>
    %4 = vector.shape_cast %3 : vector<1x24x128xf32> to vector<24x128xf32>
    %c1 = arith.constant 1 : index
    %5 = arith.index_cast %1 : i32 to index
    %c0_1 = arith.constant 0 : index
    %6 = vector.load %arg1[%c1, %5, %c0_1] : memref<3x32x128xf32, #tpu.memory_space<vmem>>, vector<1x24x128xf32>
    %7 = vector.shape_cast %6 : vector<1x24x128xf32> to vector<24x128xf32>
    %c2 = arith.constant 2 : index
    %8 = arith.index_cast %1 : i32 to index
    %c0_2 = arith.constant 0 : index
    %9 = vector.load %arg1[%c2, %8, %c0_2] : memref<3x32x128xf32, #tpu.memory_space<vmem>>, vector<1x24x128xf32>
    %10 = vector.shape_cast %9 : vector<1x24x128xf32> to vector<24x128xf32>
    %c1_i32 = arith.constant 1 : i32
    %11 = tpu.dynamic_rotate %4 by %c1_i32 dim 0 : vector<24x128xf32>, i32 -> vector<24x128xf32>
    %c1_i32_3 = arith.constant 1 : i32
    %12 = tpu.dynamic_rotate %11 by %c1_i32_3 dim 1 : vector<24x128xf32>, i32 -> vector<24x128xf32>
    %c0_4 = arith.constant 0 : index
    %13 = memref.load %arg2[%c0_4] : memref<81xf32, #tpu.memory_space<smem>>
    %14 = vector.broadcast %13 : f32 to vector<24x128xf32>
    %15 = arith.mulf %14, %12 : vector<24x128xf32>
    %c27 = arith.constant 27 : index
    %16 = memref.load %arg2[%c27] : memref<81xf32, #tpu.memory_space<smem>>
    %17 = vector.broadcast %16 : f32 to vector<24x128xf32>
    %18 = arith.mulf %17, %12 : vector<24x128xf32>
    %c54 = arith.constant 54 : index
    %19 = memref.load %arg2[%c54] : memref<81xf32, #tpu.memory_space<smem>>
    %20 = vector.broadcast %19 : f32 to vector<24x128xf32>
    %21 = arith.mulf %20, %12 : vector<24x128xf32>
    %c1_5 = arith.constant 1 : index
    %22 = memref.load %arg2[%c1_5] : memref<81xf32, #tpu.memory_space<smem>>
    %23 = vector.broadcast %22 : f32 to vector<24x128xf32>
    %24 = arith.mulf %23, %11 : vector<24x128xf32>
    %25 = arith.addf %15, %24 : vector<24x128xf32>
    %c28 = arith.constant 28 : index
    %26 = memref.load %arg2[%c28] : memref<81xf32, #tpu.memory_space<smem>>
    %27 = vector.broadcast %26 : f32 to vector<24x128xf32>
    %28 = arith.mulf %27, %11 : vector<24x128xf32>
    %29 = arith.addf %18, %28 : vector<24x128xf32>
    %c55 = arith.constant 55 : index
    %30 = memref.load %arg2[%c55] : memref<81xf32, #tpu.memory_space<smem>>
    %31 = vector.broadcast %30 : f32 to vector<24x128xf32>
    %32 = arith.mulf %31, %11 : vector<24x128xf32>
    %33 = arith.addf %21, %32 : vector<24x128xf32>
    %c127_i32 = arith.constant 127 : i32
    %34 = tpu.dynamic_rotate %11 by %c127_i32 dim 1 : vector<24x128xf32>, i32 -> vector<24x128xf32>
    %c2_6 = arith.constant 2 : index
    %35 = memref.load %arg2[%c2_6] : memref<81xf32, #tpu.memory_space<smem>>
    %36 = vector.broadcast %35 : f32 to vector<24x128xf32>
    %37 = arith.mulf %36, %34 : vector<24x128xf32>
    %38 = arith.addf %25, %37 : vector<24x128xf32>
    %c29 = arith.constant 29 : index
    %39 = memref.load %arg2[%c29] : memref<81xf32, #tpu.memory_space<smem>>
    %40 = vector.broadcast %39 : f32 to vector<24x128xf32>
    %41 = arith.mulf %40, %34 : vector<24x128xf32>
    %42 = arith.addf %29, %41 : vector<24x128xf32>
    %c56 = arith.constant 56 : index
    %43 = memref.load %arg2[%c56] : memref<81xf32, #tpu.memory_space<smem>>
    %44 = vector.broadcast %43 : f32 to vector<24x128xf32>
    %45 = arith.mulf %44, %34 : vector<24x128xf32>
    %46 = arith.addf %33, %45 : vector<24x128xf32>
    %c1_i32_7 = arith.constant 1 : i32
    %47 = tpu.dynamic_rotate %4 by %c1_i32_7 dim 1 : vector<24x128xf32>, i32 -> vector<24x128xf32>
    %c3 = arith.constant 3 : index
    %48 = memref.load %arg2[%c3] : memref<81xf32, #tpu.memory_space<smem>>
    %49 = vector.broadcast %48 : f32 to vector<24x128xf32>
    %50 = arith.mulf %49, %47 : vector<24x128xf32>
    %51 = arith.addf %38, %50 : vector<24x128xf32>
    %c30 = arith.constant 30 : index
    %52 = memref.load %arg2[%c30] : memref<81xf32, #tpu.memory_space<smem>>
    %53 = vector.broadcast %52 : f32 to vector<24x128xf32>
    %54 = arith.mulf %53, %47 : vector<24x128xf32>
    %55 = arith.addf %42, %54 : vector<24x128xf32>
    %c57 = arith.constant 57 : index
    %56 = memref.load %arg2[%c57] : memref<81xf32, #tpu.memory_space<smem>>
    %57 = vector.broadcast %56 : f32 to vector<24x128xf32>
    %58 = arith.mulf %57, %47 : vector<24x128xf32>
    %59 = arith.addf %46, %58 : vector<24x128xf32>
    %c4 = arith.constant 4 : index
    %60 = memref.load %arg2[%c4] : memref<81xf32, #tpu.memory_space<smem>>
    %61 = vector.broadcast %60 : f32 to vector<24x128xf32>
    %62 = arith.mulf %61, %4 : vector<24x128xf32>
    %63 = arith.addf %51, %62 : vector<24x128xf32>
    %c31 = arith.constant 31 : index
    %64 = memref.load %arg2[%c31] : memref<81xf32, #tpu.memory_space<smem>>
    %65 = vector.broadcast %64 : f32 to vector<24x128xf32>
    %66 = arith.mulf %65, %4 : vector<24x128xf32>
    %67 = arith.addf %55, %66 : vector<24x128xf32>
    %c58 = arith.constant 58 : index
    %68 = memref.load %arg2[%c58] : memref<81xf32, #tpu.memory_space<smem>>
    %69 = vector.broadcast %68 : f32 to vector<24x128xf32>
    %70 = arith.mulf %69, %4 : vector<24x128xf32>
    %71 = arith.addf %59, %70 : vector<24x128xf32>
    %c127_i32_8 = arith.constant 127 : i32
    %72 = tpu.dynamic_rotate %4 by %c127_i32_8 dim 1 : vector<24x128xf32>, i32 -> vector<24x128xf32>
    %c5 = arith.constant 5 : index
    %73 = memref.load %arg2[%c5] : memref<81xf32, #tpu.memory_space<smem>>
    %74 = vector.broadcast %73 : f32 to vector<24x128xf32>
    %75 = arith.mulf %74, %72 : vector<24x128xf32>
    %76 = arith.addf %63, %75 : vector<24x128xf32>
    %c32 = arith.constant 32 : index
    %77 = memref.load %arg2[%c32] : memref<81xf32, #tpu.memory_space<smem>>
    %78 = vector.broadcast %77 : f32 to vector<24x128xf32>
    %79 = arith.mulf %78, %72 : vector<24x128xf32>
    %80 = arith.addf %67, %79 : vector<24x128xf32>
    %c59 = arith.constant 59 : index
    %81 = memref.load %arg2[%c59] : memref<81xf32, #tpu.memory_space<smem>>
    %82 = vector.broadcast %81 : f32 to vector<24x128xf32>
    %83 = arith.mulf %82, %72 : vector<24x128xf32>
    %84 = arith.addf %71, %83 : vector<24x128xf32>
    %c23_i32 = arith.constant 23 : i32
    %85 = tpu.dynamic_rotate %4 by %c23_i32 dim 0 : vector<24x128xf32>, i32 -> vector<24x128xf32>
    %c1_i32_9 = arith.constant 1 : i32
    %86 = tpu.dynamic_rotate %85 by %c1_i32_9 dim 1 : vector<24x128xf32>, i32 -> vector<24x128xf32>
    %c6 = arith.constant 6 : index
    %87 = memref.load %arg2[%c6] : memref<81xf32, #tpu.memory_space<smem>>
    %88 = vector.broadcast %87 : f32 to vector<24x128xf32>
    %89 = arith.mulf %88, %86 : vector<24x128xf32>
    %90 = arith.addf %76, %89 : vector<24x128xf32>
    %c33 = arith.constant 33 : index
    %91 = memref.load %arg2[%c33] : memref<81xf32, #tpu.memory_space<smem>>
    %92 = vector.broadcast %91 : f32 to vector<24x128xf32>
    %93 = arith.mulf %92, %86 : vector<24x128xf32>
    %94 = arith.addf %80, %93 : vector<24x128xf32>
    %c60 = arith.constant 60 : index
    %95 = memref.load %arg2[%c60] : memref<81xf32, #tpu.memory_space<smem>>
    %96 = vector.broadcast %95 : f32 to vector<24x128xf32>
    %97 = arith.mulf %96, %86 : vector<24x128xf32>
    %98 = arith.addf %84, %97 : vector<24x128xf32>
    %c7 = arith.constant 7 : index
    %99 = memref.load %arg2[%c7] : memref<81xf32, #tpu.memory_space<smem>>
    %100 = vector.broadcast %99 : f32 to vector<24x128xf32>
    %101 = arith.mulf %100, %85 : vector<24x128xf32>
    %102 = arith.addf %90, %101 : vector<24x128xf32>
    %c34 = arith.constant 34 : index
    %103 = memref.load %arg2[%c34] : memref<81xf32, #tpu.memory_space<smem>>
    %104 = vector.broadcast %103 : f32 to vector<24x128xf32>
    %105 = arith.mulf %104, %85 : vector<24x128xf32>
    %106 = arith.addf %94, %105 : vector<24x128xf32>
    %c61 = arith.constant 61 : index
    %107 = memref.load %arg2[%c61] : memref<81xf32, #tpu.memory_space<smem>>
    %108 = vector.broadcast %107 : f32 to vector<24x128xf32>
    %109 = arith.mulf %108, %85 : vector<24x128xf32>
    %110 = arith.addf %98, %109 : vector<24x128xf32>
    %c127_i32_10 = arith.constant 127 : i32
    %111 = tpu.dynamic_rotate %85 by %c127_i32_10 dim 1 : vector<24x128xf32>, i32 -> vector<24x128xf32>
    %c8 = arith.constant 8 : index
    %112 = memref.load %arg2[%c8] : memref<81xf32, #tpu.memory_space<smem>>
    %113 = vector.broadcast %112 : f32 to vector<24x128xf32>
    %114 = arith.mulf %113, %111 : vector<24x128xf32>
    %115 = arith.addf %102, %114 : vector<24x128xf32>
    %c35 = arith.constant 35 : index
    %116 = memref.load %arg2[%c35] : memref<81xf32, #tpu.memory_space<smem>>
    %117 = vector.broadcast %116 : f32 to vector<24x128xf32>
    %118 = arith.mulf %117, %111 : vector<24x128xf32>
    %119 = arith.addf %106, %118 : vector<24x128xf32>
    %c62 = arith.constant 62 : index
    %120 = memref.load %arg2[%c62] : memref<81xf32, #tpu.memory_space<smem>>
    %121 = vector.broadcast %120 : f32 to vector<24x128xf32>
    %122 = arith.mulf %121, %111 : vector<24x128xf32>
    %123 = arith.addf %110, %122 : vector<24x128xf32>
    %c1_i32_11 = arith.constant 1 : i32
    %124 = tpu.dynamic_rotate %7 by %c1_i32_11 dim 0 : vector<24x128xf32>, i32 -> vector<24x128xf32>
    %c1_i32_12 = arith.constant 1 : i32
    %125 = tpu.dynamic_rotate %124 by %c1_i32_12 dim 1 : vector<24x128xf32>, i32 -> vector<24x128xf32>
    %c9 = arith.constant 9 : index
    %126 = memref.load %arg2[%c9] : memref<81xf32, #tpu.memory_space<smem>>
    %127 = vector.broadcast %126 : f32 to vector<24x128xf32>
    %128 = arith.mulf %127, %125 : vector<24x128xf32>
    %129 = arith.addf %115, %128 : vector<24x128xf32>
    %c36 = arith.constant 36 : index
    %130 = memref.load %arg2[%c36] : memref<81xf32, #tpu.memory_space<smem>>
    %131 = vector.broadcast %130 : f32 to vector<24x128xf32>
    %132 = arith.mulf %131, %125 : vector<24x128xf32>
    %133 = arith.addf %119, %132 : vector<24x128xf32>
    %c63 = arith.constant 63 : index
    %134 = memref.load %arg2[%c63] : memref<81xf32, #tpu.memory_space<smem>>
    %135 = vector.broadcast %134 : f32 to vector<24x128xf32>
    %136 = arith.mulf %135, %125 : vector<24x128xf32>
    %137 = arith.addf %123, %136 : vector<24x128xf32>
    %c10 = arith.constant 10 : index
    %138 = memref.load %arg2[%c10] : memref<81xf32, #tpu.memory_space<smem>>
    %139 = vector.broadcast %138 : f32 to vector<24x128xf32>
    %140 = arith.mulf %139, %124 : vector<24x128xf32>
    %141 = arith.addf %129, %140 : vector<24x128xf32>
    %c37 = arith.constant 37 : index
    %142 = memref.load %arg2[%c37] : memref<81xf32, #tpu.memory_space<smem>>
    %143 = vector.broadcast %142 : f32 to vector<24x128xf32>
    %144 = arith.mulf %143, %124 : vector<24x128xf32>
    %145 = arith.addf %133, %144 : vector<24x128xf32>
    %c64 = arith.constant 64 : index
    %146 = memref.load %arg2[%c64] : memref<81xf32, #tpu.memory_space<smem>>
    %147 = vector.broadcast %146 : f32 to vector<24x128xf32>
    %148 = arith.mulf %147, %124 : vector<24x128xf32>
    %149 = arith.addf %137, %148 : vector<24x128xf32>
    %c127_i32_13 = arith.constant 127 : i32
    %150 = tpu.dynamic_rotate %124 by %c127_i32_13 dim 1 : vector<24x128xf32>, i32 -> vector<24x128xf32>
    %c11 = arith.constant 11 : index
    %151 = memref.load %arg2[%c11] : memref<81xf32, #tpu.memory_space<smem>>
    %152 = vector.broadcast %151 : f32 to vector<24x128xf32>
    %153 = arith.mulf %152, %150 : vector<24x128xf32>
    %154 = arith.addf %141, %153 : vector<24x128xf32>
    %c38 = arith.constant 38 : index
    %155 = memref.load %arg2[%c38] : memref<81xf32, #tpu.memory_space<smem>>
    %156 = vector.broadcast %155 : f32 to vector<24x128xf32>
    %157 = arith.mulf %156, %150 : vector<24x128xf32>
    %158 = arith.addf %145, %157 : vector<24x128xf32>
    %c65 = arith.constant 65 : index
    %159 = memref.load %arg2[%c65] : memref<81xf32, #tpu.memory_space<smem>>
    %160 = vector.broadcast %159 : f32 to vector<24x128xf32>
    %161 = arith.mulf %160, %150 : vector<24x128xf32>
    %162 = arith.addf %149, %161 : vector<24x128xf32>
    %c1_i32_14 = arith.constant 1 : i32
    %163 = tpu.dynamic_rotate %7 by %c1_i32_14 dim 1 : vector<24x128xf32>, i32 -> vector<24x128xf32>
    %c12 = arith.constant 12 : index
    %164 = memref.load %arg2[%c12] : memref<81xf32, #tpu.memory_space<smem>>
    %165 = vector.broadcast %164 : f32 to vector<24x128xf32>
    %166 = arith.mulf %165, %163 : vector<24x128xf32>
    %167 = arith.addf %154, %166 : vector<24x128xf32>
    %c39 = arith.constant 39 : index
    %168 = memref.load %arg2[%c39] : memref<81xf32, #tpu.memory_space<smem>>
    %169 = vector.broadcast %168 : f32 to vector<24x128xf32>
    %170 = arith.mulf %169, %163 : vector<24x128xf32>
    %171 = arith.addf %158, %170 : vector<24x128xf32>
    %c66 = arith.constant 66 : index
    %172 = memref.load %arg2[%c66] : memref<81xf32, #tpu.memory_space<smem>>
    %173 = vector.broadcast %172 : f32 to vector<24x128xf32>
    %174 = arith.mulf %173, %163 : vector<24x128xf32>
    %175 = arith.addf %162, %174 : vector<24x128xf32>
    %c13 = arith.constant 13 : index
    %176 = memref.load %arg2[%c13] : memref<81xf32, #tpu.memory_space<smem>>
    %177 = vector.broadcast %176 : f32 to vector<24x128xf32>
    %178 = arith.mulf %177, %7 : vector<24x128xf32>
    %179 = arith.addf %167, %178 : vector<24x128xf32>
    %c40 = arith.constant 40 : index
    %180 = memref.load %arg2[%c40] : memref<81xf32, #tpu.memory_space<smem>>
    %181 = vector.broadcast %180 : f32 to vector<24x128xf32>
    %182 = arith.mulf %181, %7 : vector<24x128xf32>
    %183 = arith.addf %171, %182 : vector<24x128xf32>
    %c67 = arith.constant 67 : index
    %184 = memref.load %arg2[%c67] : memref<81xf32, #tpu.memory_space<smem>>
    %185 = vector.broadcast %184 : f32 to vector<24x128xf32>
    %186 = arith.mulf %185, %7 : vector<24x128xf32>
    %187 = arith.addf %175, %186 : vector<24x128xf32>
    %c127_i32_15 = arith.constant 127 : i32
    %188 = tpu.dynamic_rotate %7 by %c127_i32_15 dim 1 : vector<24x128xf32>, i32 -> vector<24x128xf32>
    %c14 = arith.constant 14 : index
    %189 = memref.load %arg2[%c14] : memref<81xf32, #tpu.memory_space<smem>>
    %190 = vector.broadcast %189 : f32 to vector<24x128xf32>
    %191 = arith.mulf %190, %188 : vector<24x128xf32>
    %192 = arith.addf %179, %191 : vector<24x128xf32>
    %c41 = arith.constant 41 : index
    %193 = memref.load %arg2[%c41] : memref<81xf32, #tpu.memory_space<smem>>
    %194 = vector.broadcast %193 : f32 to vector<24x128xf32>
    %195 = arith.mulf %194, %188 : vector<24x128xf32>
    %196 = arith.addf %183, %195 : vector<24x128xf32>
    %c68 = arith.constant 68 : index
    %197 = memref.load %arg2[%c68] : memref<81xf32, #tpu.memory_space<smem>>
    %198 = vector.broadcast %197 : f32 to vector<24x128xf32>
    %199 = arith.mulf %198, %188 : vector<24x128xf32>
    %200 = arith.addf %187, %199 : vector<24x128xf32>
    %c23_i32_16 = arith.constant 23 : i32
    %201 = tpu.dynamic_rotate %7 by %c23_i32_16 dim 0 : vector<24x128xf32>, i32 -> vector<24x128xf32>
    %c1_i32_17 = arith.constant 1 : i32
    %202 = tpu.dynamic_rotate %201 by %c1_i32_17 dim 1 : vector<24x128xf32>, i32 -> vector<24x128xf32>
    %c15 = arith.constant 15 : index
    %203 = memref.load %arg2[%c15] : memref<81xf32, #tpu.memory_space<smem>>
    %204 = vector.broadcast %203 : f32 to vector<24x128xf32>
    %205 = arith.mulf %204, %202 : vector<24x128xf32>
    %206 = arith.addf %192, %205 : vector<24x128xf32>
    %c42 = arith.constant 42 : index
    %207 = memref.load %arg2[%c42] : memref<81xf32, #tpu.memory_space<smem>>
    %208 = vector.broadcast %207 : f32 to vector<24x128xf32>
    %209 = arith.mulf %208, %202 : vector<24x128xf32>
    %210 = arith.addf %196, %209 : vector<24x128xf32>
    %c69 = arith.constant 69 : index
    %211 = memref.load %arg2[%c69] : memref<81xf32, #tpu.memory_space<smem>>
    %212 = vector.broadcast %211 : f32 to vector<24x128xf32>
    %213 = arith.mulf %212, %202 : vector<24x128xf32>
    %214 = arith.addf %200, %213 : vector<24x128xf32>
    %c16 = arith.constant 16 : index
    %215 = memref.load %arg2[%c16] : memref<81xf32, #tpu.memory_space<smem>>
    %216 = vector.broadcast %215 : f32 to vector<24x128xf32>
    %217 = arith.mulf %216, %201 : vector<24x128xf32>
    %218 = arith.addf %206, %217 : vector<24x128xf32>
    %c43 = arith.constant 43 : index
    %219 = memref.load %arg2[%c43] : memref<81xf32, #tpu.memory_space<smem>>
    %220 = vector.broadcast %219 : f32 to vector<24x128xf32>
    %221 = arith.mulf %220, %201 : vector<24x128xf32>
    %222 = arith.addf %210, %221 : vector<24x128xf32>
    %c70 = arith.constant 70 : index
    %223 = memref.load %arg2[%c70] : memref<81xf32, #tpu.memory_space<smem>>
    %224 = vector.broadcast %223 : f32 to vector<24x128xf32>
    %225 = arith.mulf %224, %201 : vector<24x128xf32>
    %226 = arith.addf %214, %225 : vector<24x128xf32>
    %c127_i32_18 = arith.constant 127 : i32
    %227 = tpu.dynamic_rotate %201 by %c127_i32_18 dim 1 : vector<24x128xf32>, i32 -> vector<24x128xf32>
    %c17 = arith.constant 17 : index
    %228 = memref.load %arg2[%c17] : memref<81xf32, #tpu.memory_space<smem>>
    %229 = vector.broadcast %228 : f32 to vector<24x128xf32>
    %230 = arith.mulf %229, %227 : vector<24x128xf32>
    %231 = arith.addf %218, %230 : vector<24x128xf32>
    %c44 = arith.constant 44 : index
    %232 = memref.load %arg2[%c44] : memref<81xf32, #tpu.memory_space<smem>>
    %233 = vector.broadcast %232 : f32 to vector<24x128xf32>
    %234 = arith.mulf %233, %227 : vector<24x128xf32>
    %235 = arith.addf %222, %234 : vector<24x128xf32>
    %c71 = arith.constant 71 : index
    %236 = memref.load %arg2[%c71] : memref<81xf32, #tpu.memory_space<smem>>
    %237 = vector.broadcast %236 : f32 to vector<24x128xf32>
    %238 = arith.mulf %237, %227 : vector<24x128xf32>
    %239 = arith.addf %226, %238 : vector<24x128xf32>
    %c1_i32_19 = arith.constant 1 : i32
    %240 = tpu.dynamic_rotate %10 by %c1_i32_19 dim 0 : vector<24x128xf32>, i32 -> vector<24x128xf32>
    %c1_i32_20 = arith.constant 1 : i32
    %241 = tpu.dynamic_rotate %240 by %c1_i32_20 dim 1 : vector<24x128xf32>, i32 -> vector<24x128xf32>
    %c18 = arith.constant 18 : index
    %242 = memref.load %arg2[%c18] : memref<81xf32, #tpu.memory_space<smem>>
    %243 = vector.broadcast %242 : f32 to vector<24x128xf32>
    %244 = arith.mulf %243, %241 : vector<24x128xf32>
    %245 = arith.addf %231, %244 : vector<24x128xf32>
    %c45 = arith.constant 45 : index
    %246 = memref.load %arg2[%c45] : memref<81xf32, #tpu.memory_space<smem>>
    %247 = vector.broadcast %246 : f32 to vector<24x128xf32>
    %248 = arith.mulf %247, %241 : vector<24x128xf32>
    %249 = arith.addf %235, %248 : vector<24x128xf32>
    %c72 = arith.constant 72 : index
    %250 = memref.load %arg2[%c72] : memref<81xf32, #tpu.memory_space<smem>>
    %251 = vector.broadcast %250 : f32 to vector<24x128xf32>
    %252 = arith.mulf %251, %241 : vector<24x128xf32>
    %253 = arith.addf %239, %252 : vector<24x128xf32>
    %c19 = arith.constant 19 : index
    %254 = memref.load %arg2[%c19] : memref<81xf32, #tpu.memory_space<smem>>
    %255 = vector.broadcast %254 : f32 to vector<24x128xf32>
    %256 = arith.mulf %255, %240 : vector<24x128xf32>
    %257 = arith.addf %245, %256 : vector<24x128xf32>
    %c46 = arith.constant 46 : index
    %258 = memref.load %arg2[%c46] : memref<81xf32, #tpu.memory_space<smem>>
    %259 = vector.broadcast %258 : f32 to vector<24x128xf32>
    %260 = arith.mulf %259, %240 : vector<24x128xf32>
    %261 = arith.addf %249, %260 : vector<24x128xf32>
    %c73 = arith.constant 73 : index
    %262 = memref.load %arg2[%c73] : memref<81xf32, #tpu.memory_space<smem>>
    %263 = vector.broadcast %262 : f32 to vector<24x128xf32>
    %264 = arith.mulf %263, %240 : vector<24x128xf32>
    %265 = arith.addf %253, %264 : vector<24x128xf32>
    %c127_i32_21 = arith.constant 127 : i32
    %266 = tpu.dynamic_rotate %240 by %c127_i32_21 dim 1 : vector<24x128xf32>, i32 -> vector<24x128xf32>
    %c20 = arith.constant 20 : index
    %267 = memref.load %arg2[%c20] : memref<81xf32, #tpu.memory_space<smem>>
    %268 = vector.broadcast %267 : f32 to vector<24x128xf32>
    %269 = arith.mulf %268, %266 : vector<24x128xf32>
    %270 = arith.addf %257, %269 : vector<24x128xf32>
    %c47 = arith.constant 47 : index
    %271 = memref.load %arg2[%c47] : memref<81xf32, #tpu.memory_space<smem>>
    %272 = vector.broadcast %271 : f32 to vector<24x128xf32>
    %273 = arith.mulf %272, %266 : vector<24x128xf32>
    %274 = arith.addf %261, %273 : vector<24x128xf32>
    %c74 = arith.constant 74 : index
    %275 = memref.load %arg2[%c74] : memref<81xf32, #tpu.memory_space<smem>>
    %276 = vector.broadcast %275 : f32 to vector<24x128xf32>
    %277 = arith.mulf %276, %266 : vector<24x128xf32>
    %278 = arith.addf %265, %277 : vector<24x128xf32>
    %c1_i32_22 = arith.constant 1 : i32
    %279 = tpu.dynamic_rotate %10 by %c1_i32_22 dim 1 : vector<24x128xf32>, i32 -> vector<24x128xf32>
    %c21 = arith.constant 21 : index
    %280 = memref.load %arg2[%c21] : memref<81xf32, #tpu.memory_space<smem>>
    %281 = vector.broadcast %280 : f32 to vector<24x128xf32>
    %282 = arith.mulf %281, %279 : vector<24x128xf32>
    %283 = arith.addf %270, %282 : vector<24x128xf32>
    %c48 = arith.constant 48 : index
    %284 = memref.load %arg2[%c48] : memref<81xf32, #tpu.memory_space<smem>>
    %285 = vector.broadcast %284 : f32 to vector<24x128xf32>
    %286 = arith.mulf %285, %279 : vector<24x128xf32>
    %287 = arith.addf %274, %286 : vector<24x128xf32>
    %c75 = arith.constant 75 : index
    %288 = memref.load %arg2[%c75] : memref<81xf32, #tpu.memory_space<smem>>
    %289 = vector.broadcast %288 : f32 to vector<24x128xf32>
    %290 = arith.mulf %289, %279 : vector<24x128xf32>
    %291 = arith.addf %278, %290 : vector<24x128xf32>
    %c22 = arith.constant 22 : index
    %292 = memref.load %arg2[%c22] : memref<81xf32, #tpu.memory_space<smem>>
    %293 = vector.broadcast %292 : f32 to vector<24x128xf32>
    %294 = arith.mulf %293, %10 : vector<24x128xf32>
    %295 = arith.addf %283, %294 : vector<24x128xf32>
    %c49 = arith.constant 49 : index
    %296 = memref.load %arg2[%c49] : memref<81xf32, #tpu.memory_space<smem>>
    %297 = vector.broadcast %296 : f32 to vector<24x128xf32>
    %298 = arith.mulf %297, %10 : vector<24x128xf32>
    %299 = arith.addf %287, %298 : vector<24x128xf32>
    %c76 = arith.constant 76 : index
    %300 = memref.load %arg2[%c76] : memref<81xf32, #tpu.memory_space<smem>>
    %301 = vector.broadcast %300 : f32 to vector<24x128xf32>
    %302 = arith.mulf %301, %10 : vector<24x128xf32>
    %303 = arith.addf %291, %302 : vector<24x128xf32>
    %c127_i32_23 = arith.constant 127 : i32
    %304 = tpu.dynamic_rotate %10 by %c127_i32_23 dim 1 : vector<24x128xf32>, i32 -> vector<24x128xf32>
    %c23 = arith.constant 23 : index
    %305 = memref.load %arg2[%c23] : memref<81xf32, #tpu.memory_space<smem>>
    %306 = vector.broadcast %305 : f32 to vector<24x128xf32>
    %307 = arith.mulf %306, %304 : vector<24x128xf32>
    %308 = arith.addf %295, %307 : vector<24x128xf32>
    %c50 = arith.constant 50 : index
    %309 = memref.load %arg2[%c50] : memref<81xf32, #tpu.memory_space<smem>>
    %310 = vector.broadcast %309 : f32 to vector<24x128xf32>
    %311 = arith.mulf %310, %304 : vector<24x128xf32>
    %312 = arith.addf %299, %311 : vector<24x128xf32>
    %c77 = arith.constant 77 : index
    %313 = memref.load %arg2[%c77] : memref<81xf32, #tpu.memory_space<smem>>
    %314 = vector.broadcast %313 : f32 to vector<24x128xf32>
    %315 = arith.mulf %314, %304 : vector<24x128xf32>
    %316 = arith.addf %303, %315 : vector<24x128xf32>
    %c23_i32_24 = arith.constant 23 : i32
    %317 = tpu.dynamic_rotate %10 by %c23_i32_24 dim 0 : vector<24x128xf32>, i32 -> vector<24x128xf32>
    %c1_i32_25 = arith.constant 1 : i32
    %318 = tpu.dynamic_rotate %317 by %c1_i32_25 dim 1 : vector<24x128xf32>, i32 -> vector<24x128xf32>
    %c24 = arith.constant 24 : index
    %319 = memref.load %arg2[%c24] : memref<81xf32, #tpu.memory_space<smem>>
    %320 = vector.broadcast %319 : f32 to vector<24x128xf32>
    %321 = arith.mulf %320, %318 : vector<24x128xf32>
    %322 = arith.addf %308, %321 : vector<24x128xf32>
    %c51 = arith.constant 51 : index
    %323 = memref.load %arg2[%c51] : memref<81xf32, #tpu.memory_space<smem>>
    %324 = vector.broadcast %323 : f32 to vector<24x128xf32>
    %325 = arith.mulf %324, %318 : vector<24x128xf32>
    %326 = arith.addf %312, %325 : vector<24x128xf32>
    %c78 = arith.constant 78 : index
    %327 = memref.load %arg2[%c78] : memref<81xf32, #tpu.memory_space<smem>>
    %328 = vector.broadcast %327 : f32 to vector<24x128xf32>
    %329 = arith.mulf %328, %318 : vector<24x128xf32>
    %330 = arith.addf %316, %329 : vector<24x128xf32>
    %c25 = arith.constant 25 : index
    %331 = memref.load %arg2[%c25] : memref<81xf32, #tpu.memory_space<smem>>
    %332 = vector.broadcast %331 : f32 to vector<24x128xf32>
    %333 = arith.mulf %332, %317 : vector<24x128xf32>
    %334 = arith.addf %322, %333 : vector<24x128xf32>
    %c52 = arith.constant 52 : index
    %335 = memref.load %arg2[%c52] : memref<81xf32, #tpu.memory_space<smem>>
    %336 = vector.broadcast %335 : f32 to vector<24x128xf32>
    %337 = arith.mulf %336, %317 : vector<24x128xf32>
    %338 = arith.addf %326, %337 : vector<24x128xf32>
    %c79 = arith.constant 79 : index
    %339 = memref.load %arg2[%c79] : memref<81xf32, #tpu.memory_space<smem>>
    %340 = vector.broadcast %339 : f32 to vector<24x128xf32>
    %341 = arith.mulf %340, %317 : vector<24x128xf32>
    %342 = arith.addf %330, %341 : vector<24x128xf32>
    %c127_i32_26 = arith.constant 127 : i32
    %343 = tpu.dynamic_rotate %317 by %c127_i32_26 dim 1 : vector<24x128xf32>, i32 -> vector<24x128xf32>
    %c26 = arith.constant 26 : index
    %344 = memref.load %arg2[%c26] : memref<81xf32, #tpu.memory_space<smem>>
    %345 = vector.broadcast %344 : f32 to vector<24x128xf32>
    %346 = arith.mulf %345, %343 : vector<24x128xf32>
    %347 = arith.addf %334, %346 : vector<24x128xf32>
    %c53 = arith.constant 53 : index
    %348 = memref.load %arg2[%c53] : memref<81xf32, #tpu.memory_space<smem>>
    %349 = vector.broadcast %348 : f32 to vector<24x128xf32>
    %350 = arith.mulf %349, %343 : vector<24x128xf32>
    %351 = arith.addf %338, %350 : vector<24x128xf32>
    %c80 = arith.constant 80 : index
    %352 = memref.load %arg2[%c80] : memref<81xf32, #tpu.memory_space<smem>>
    %353 = vector.broadcast %352 : f32 to vector<24x128xf32>
    %354 = arith.mulf %353, %343 : vector<24x128xf32>
    %355 = arith.addf %342, %354 : vector<24x128xf32>
    %c0_27 = arith.constant 0 : index
    %356 = memref.load %arg3[%c0_27] : memref<3xf32, #tpu.memory_space<smem>>
    %357 = vector.broadcast %356 : f32 to vector<24x128xf32>
    %358 = arith.addf %347, %357 : vector<24x128xf32>
    %c1_28 = arith.constant 1 : index
    %359 = memref.load %arg3[%c1_28] : memref<3xf32, #tpu.memory_space<smem>>
    %360 = vector.broadcast %359 : f32 to vector<24x128xf32>
    %361 = arith.addf %351, %360 : vector<24x128xf32>
    %c2_29 = arith.constant 2 : index
    %362 = memref.load %arg3[%c2_29] : memref<3xf32, #tpu.memory_space<smem>>
    %363 = vector.broadcast %362 : f32 to vector<24x128xf32>
    %364 = arith.addf %355, %363 : vector<24x128xf32>
    %365 = tpu.iota {dimensions = array<i32: 0>} : vector<24x128xi32>
    %c8_i32_30 = arith.constant 8 : i32
    %366 = arith.subi %1, %c8_i32_30 : i32
    %367 = vector.broadcast %366 : i32 to vector<24x128xi32>
    %368 = arith.addi %365, %367 : vector<24x128xi32>
    %369 = tpu.iota {dimensions = array<i32: 1>} : vector<24x128xi32>
    %c0_i32 = arith.constant 0 : i32
    %370 = vector.broadcast %c0_i32 : i32 to vector<24x128xi32>
    %371 = arith.cmpi sge, %368, %370 : vector<24x128xi32>
    %c16_i32 = arith.constant 16 : i32
    %372 = vector.broadcast %c16_i32 : i32 to vector<24x128xi32>
    %373 = arith.cmpi slt, %368, %372 : vector<24x128xi32>
    %374 = arith.andi %371, %373 : vector<24x128xi1>
    %c16_i32_31 = arith.constant 16 : i32
    %375 = vector.broadcast %c16_i32_31 : i32 to vector<24x128xi32>
    %376 = arith.cmpi slt, %369, %375 : vector<24x128xi32>
    %377 = arith.andi %374, %376 : vector<24x128xi1>
    %378 = arith.maximumf %358, %361 : vector<24x128xf32>
    %379 = arith.maximumf %378, %364 : vector<24x128xf32>
    %380 = arith.subf %358, %379 : vector<24x128xf32>
    %381 = math.exp %380 : vector<24x128xf32>
    %382 = arith.subf %361, %379 : vector<24x128xf32>
    %383 = math.exp %382 : vector<24x128xf32>
    %384 = arith.subf %364, %379 : vector<24x128xf32>
    %385 = math.exp %384 : vector<24x128xf32>
    %386 = arith.addf %381, %383 : vector<24x128xf32>
    %387 = arith.addf %386, %385 : vector<24x128xf32>
    %388 = tpu.reciprocal %387 {approx = true} : vector<24x128xf32> -> vector<24x128xf32>
    %389 = arith.mulf %381, %388 : vector<24x128xf32>
    %cst = arith.constant 0.000000e+00 : f32
    %390 = vector.broadcast %cst : f32 to vector<24x128xf32>
    %391 = arith.select %377, %389, %390 : vector<24x128xi1>, vector<24x128xf32>
    %392 = arith.mulf %383, %388 : vector<24x128xf32>
    %cst_32 = arith.constant 0.000000e+00 : f32
    %393 = vector.broadcast %cst_32 : f32 to vector<24x128xf32>
    %394 = arith.select %377, %392, %393 : vector<24x128xi1>, vector<24x128xf32>
    %395 = arith.mulf %385, %388 : vector<24x128xf32>
    %cst_33 = arith.constant 0.000000e+00 : f32
    %396 = vector.broadcast %cst_33 : f32 to vector<24x128xf32>
    %397 = arith.select %377, %395, %396 : vector<24x128xi1>, vector<24x128xf32>
    %c1_i32_34 = arith.constant 1 : i32
    %398 = tpu.dynamic_rotate %4 by %c1_i32_34 dim 0 : vector<24x128xf32>, i32 -> vector<24x128xf32>
    %c1_i32_35 = arith.constant 1 : i32
    %399 = tpu.dynamic_rotate %398 by %c1_i32_35 dim 1 : vector<24x128xf32>, i32 -> vector<24x128xf32>
    %c0_36 = arith.constant 0 : index
    %400 = memref.load %arg4[%c0_36] : memref<54xf32, #tpu.memory_space<smem>>
    %401 = vector.broadcast %400 : f32 to vector<24x128xf32>
    %402 = arith.mulf %401, %399 : vector<24x128xf32>
    %c1_37 = arith.constant 1 : index
    %403 = memref.load %arg4[%c1_37] : memref<54xf32, #tpu.memory_space<smem>>
    %404 = vector.broadcast %403 : f32 to vector<24x128xf32>
    %405 = arith.mulf %404, %398 : vector<24x128xf32>
    %406 = arith.addf %402, %405 : vector<24x128xf32>
    %c127_i32_38 = arith.constant 127 : i32
    %407 = tpu.dynamic_rotate %398 by %c127_i32_38 dim 1 : vector<24x128xf32>, i32 -> vector<24x128xf32>
    %c2_39 = arith.constant 2 : index
    %408 = memref.load %arg4[%c2_39] : memref<54xf32, #tpu.memory_space<smem>>
    %409 = vector.broadcast %408 : f32 to vector<24x128xf32>
    %410 = arith.mulf %409, %407 : vector<24x128xf32>
    %411 = arith.addf %406, %410 : vector<24x128xf32>
    %c1_i32_40 = arith.constant 1 : i32
    %412 = tpu.dynamic_rotate %4 by %c1_i32_40 dim 1 : vector<24x128xf32>, i32 -> vector<24x128xf32>
    %c3_41 = arith.constant 3 : index
    %413 = memref.load %arg4[%c3_41] : memref<54xf32, #tpu.memory_space<smem>>
    %414 = vector.broadcast %413 : f32 to vector<24x128xf32>
    %415 = arith.mulf %414, %412 : vector<24x128xf32>
    %416 = arith.addf %411, %415 : vector<24x128xf32>
    %c4_42 = arith.constant 4 : index
    %417 = memref.load %arg4[%c4_42] : memref<54xf32, #tpu.memory_space<smem>>
    %418 = vector.broadcast %417 : f32 to vector<24x128xf32>
    %419 = arith.mulf %418, %4 : vector<24x128xf32>
    %420 = arith.addf %416, %419 : vector<24x128xf32>
    %c127_i32_43 = arith.constant 127 : i32
    %421 = tpu.dynamic_rotate %4 by %c127_i32_43 dim 1 : vector<24x128xf32>, i32 -> vector<24x128xf32>
    %c5_44 = arith.constant 5 : index
    %422 = memref.load %arg4[%c5_44] : memref<54xf32, #tpu.memory_space<smem>>
    %423 = vector.broadcast %422 : f32 to vector<24x128xf32>
    %424 = arith.mulf %423, %421 : vector<24x128xf32>
    %425 = arith.addf %420, %424 : vector<24x128xf32>
    %c23_i32_45 = arith.constant 23 : i32
    %426 = tpu.dynamic_rotate %4 by %c23_i32_45 dim 0 : vector<24x128xf32>, i32 -> vector<24x128xf32>
    %c1_i32_46 = arith.constant 1 : i32
    %427 = tpu.dynamic_rotate %426 by %c1_i32_46 dim 1 : vector<24x128xf32>, i32 -> vector<24x128xf32>
    %c6_47 = arith.constant 6 : index
    %428 = memref.load %arg4[%c6_47] : memref<54xf32, #tpu.memory_space<smem>>
    %429 = vector.broadcast %428 : f32 to vector<24x128xf32>
    %430 = arith.mulf %429, %427 : vector<24x128xf32>
    %431 = arith.addf %425, %430 : vector<24x128xf32>
    %c7_48 = arith.constant 7 : index
    %432 = memref.load %arg4[%c7_48] : memref<54xf32, #tpu.memory_space<smem>>
    %433 = vector.broadcast %432 : f32 to vector<24x128xf32>
    %434 = arith.mulf %433, %426 : vector<24x128xf32>
    %435 = arith.addf %431, %434 : vector<24x128xf32>
    %c127_i32_49 = arith.constant 127 : i32
    %436 = tpu.dynamic_rotate %426 by %c127_i32_49 dim 1 : vector<24x128xf32>, i32 -> vector<24x128xf32>
    %c8_50 = arith.constant 8 : index
    %437 = memref.load %arg4[%c8_50] : memref<54xf32, #tpu.memory_space<smem>>
    %438 = vector.broadcast %437 : f32 to vector<24x128xf32>
    %439 = arith.mulf %438, %436 : vector<24x128xf32>
    %440 = arith.addf %435, %439 : vector<24x128xf32>
    %c1_i32_51 = arith.constant 1 : i32
    %441 = tpu.dynamic_rotate %7 by %c1_i32_51 dim 0 : vector<24x128xf32>, i32 -> vector<24x128xf32>
    %c1_i32_52 = arith.constant 1 : i32
    %442 = tpu.dynamic_rotate %441 by %c1_i32_52 dim 1 : vector<24x128xf32>, i32 -> vector<24x128xf32>
    %c9_53 = arith.constant 9 : index
    %443 = memref.load %arg4[%c9_53] : memref<54xf32, #tpu.memory_space<smem>>
    %444 = vector.broadcast %443 : f32 to vector<24x128xf32>
    %445 = arith.mulf %444, %442 : vector<24x128xf32>
    %446 = arith.addf %440, %445 : vector<24x128xf32>
    %c10_54 = arith.constant 10 : index
    %447 = memref.load %arg4[%c10_54] : memref<54xf32, #tpu.memory_space<smem>>
    %448 = vector.broadcast %447 : f32 to vector<24x128xf32>
    %449 = arith.mulf %448, %441 : vector<24x128xf32>
    %450 = arith.addf %446, %449 : vector<24x128xf32>
    %c127_i32_55 = arith.constant 127 : i32
    %451 = tpu.dynamic_rotate %441 by %c127_i32_55 dim 1 : vector<24x128xf32>, i32 -> vector<24x128xf32>
    %c11_56 = arith.constant 11 : index
    %452 = memref.load %arg4[%c11_56] : memref<54xf32, #tpu.memory_space<smem>>
    %453 = vector.broadcast %452 : f32 to vector<24x128xf32>
    %454 = arith.mulf %453, %451 : vector<24x128xf32>
    %455 = arith.addf %450, %454 : vector<24x128xf32>
    %c1_i32_57 = arith.constant 1 : i32
    %456 = tpu.dynamic_rotate %7 by %c1_i32_57 dim 1 : vector<24x128xf32>, i32 -> vector<24x128xf32>
    %c12_58 = arith.constant 12 : index
    %457 = memref.load %arg4[%c12_58] : memref<54xf32, #tpu.memory_space<smem>>
    %458 = vector.broadcast %457 : f32 to vector<24x128xf32>
    %459 = arith.mulf %458, %456 : vector<24x128xf32>
    %460 = arith.addf %455, %459 : vector<24x128xf32>
    %c13_59 = arith.constant 13 : index
    %461 = memref.load %arg4[%c13_59] : memref<54xf32, #tpu.memory_space<smem>>
    %462 = vector.broadcast %461 : f32 to vector<24x128xf32>
    %463 = arith.mulf %462, %7 : vector<24x128xf32>
    %464 = arith.addf %460, %463 : vector<24x128xf32>
    %c127_i32_60 = arith.constant 127 : i32
    %465 = tpu.dynamic_rotate %7 by %c127_i32_60 dim 1 : vector<24x128xf32>, i32 -> vector<24x128xf32>
    %c14_61 = arith.constant 14 : index
    %466 = memref.load %arg4[%c14_61] : memref<54xf32, #tpu.memory_space<smem>>
    %467 = vector.broadcast %466 : f32 to vector<24x128xf32>
    %468 = arith.mulf %467, %465 : vector<24x128xf32>
    %469 = arith.addf %464, %468 : vector<24x128xf32>
    %c23_i32_62 = arith.constant 23 : i32
    %470 = tpu.dynamic_rotate %7 by %c23_i32_62 dim 0 : vector<24x128xf32>, i32 -> vector<24x128xf32>
    %c1_i32_63 = arith.constant 1 : i32
    %471 = tpu.dynamic_rotate %470 by %c1_i32_63 dim 1 : vector<24x128xf32>, i32 -> vector<24x128xf32>
    %c15_64 = arith.constant 15 : index
    %472 = memref.load %arg4[%c15_64] : memref<54xf32, #tpu.memory_space<smem>>
    %473 = vector.broadcast %472 : f32 to vector<24x128xf32>
    %474 = arith.mulf %473, %471 : vector<24x128xf32>
    %475 = arith.addf %469, %474 : vector<24x128xf32>
    %c16_65 = arith.constant 16 : index
    %476 = memref.load %arg4[%c16_65] : memref<54xf32, #tpu.memory_space<smem>>
    %477 = vector.broadcast %476 : f32 to vector<24x128xf32>
    %478 = arith.mulf %477, %470 : vector<24x128xf32>
    %479 = arith.addf %475, %478 : vector<24x128xf32>
    %c127_i32_66 = arith.constant 127 : i32
    %480 = tpu.dynamic_rotate %470 by %c127_i32_66 dim 1 : vector<24x128xf32>, i32 -> vector<24x128xf32>
    %c17_67 = arith.constant 17 : index
    %481 = memref.load %arg4[%c17_67] : memref<54xf32, #tpu.memory_space<smem>>
    %482 = vector.broadcast %481 : f32 to vector<24x128xf32>
    %483 = arith.mulf %482, %480 : vector<24x128xf32>
    %484 = arith.addf %479, %483 : vector<24x128xf32>
    %c1_i32_68 = arith.constant 1 : i32
    %485 = tpu.dynamic_rotate %10 by %c1_i32_68 dim 0 : vector<24x128xf32>, i32 -> vector<24x128xf32>
    %c1_i32_69 = arith.constant 1 : i32
    %486 = tpu.dynamic_rotate %485 by %c1_i32_69 dim 1 : vector<24x128xf32>, i32 -> vector<24x128xf32>
    %c18_70 = arith.constant 18 : index
    %487 = memref.load %arg4[%c18_70] : memref<54xf32, #tpu.memory_space<smem>>
    %488 = vector.broadcast %487 : f32 to vector<24x128xf32>
    %489 = arith.mulf %488, %486 : vector<24x128xf32>
    %490 = arith.addf %484, %489 : vector<24x128xf32>
    %c19_71 = arith.constant 19 : index
    %491 = memref.load %arg4[%c19_71] : memref<54xf32, #tpu.memory_space<smem>>
    %492 = vector.broadcast %491 : f32 to vector<24x128xf32>
    %493 = arith.mulf %492, %485 : vector<24x128xf32>
    %494 = arith.addf %490, %493 : vector<24x128xf32>
    %c127_i32_72 = arith.constant 127 : i32
    %495 = tpu.dynamic_rotate %485 by %c127_i32_72 dim 1 : vector<24x128xf32>, i32 -> vector<24x128xf32>
    %c20_73 = arith.constant 20 : index
    %496 = memref.load %arg4[%c20_73] : memref<54xf32, #tpu.memory_space<smem>>
    %497 = vector.broadcast %496 : f32 to vector<24x128xf32>
    %498 = arith.mulf %497, %495 : vector<24x128xf32>
    %499 = arith.addf %494, %498 : vector<24x128xf32>
    %c1_i32_74 = arith.constant 1 : i32
    %500 = tpu.dynamic_rotate %10 by %c1_i32_74 dim 1 : vector<24x128xf32>, i32 -> vector<24x128xf32>
    %c21_75 = arith.constant 21 : index
    %501 = memref.load %arg4[%c21_75] : memref<54xf32, #tpu.memory_space<smem>>
    %502 = vector.broadcast %501 : f32 to vector<24x128xf32>
    %503 = arith.mulf %502, %500 : vector<24x128xf32>
    %504 = arith.addf %499, %503 : vector<24x128xf32>
    %c22_76 = arith.constant 22 : index
    %505 = memref.load %arg4[%c22_76] : memref<54xf32, #tpu.memory_space<smem>>
    %506 = vector.broadcast %505 : f32 to vector<24x128xf32>
    %507 = arith.mulf %506, %10 : vector<24x128xf32>
    %508 = arith.addf %504, %507 : vector<24x128xf32>
    %c127_i32_77 = arith.constant 127 : i32
    %509 = tpu.dynamic_rotate %10 by %c127_i32_77 dim 1 : vector<24x128xf32>, i32 -> vector<24x128xf32>
    %c23_78 = arith.constant 23 : index
    %510 = memref.load %arg4[%c23_78] : memref<54xf32, #tpu.memory_space<smem>>
    %511 = vector.broadcast %510 : f32 to vector<24x128xf32>
    %512 = arith.mulf %511, %509 : vector<24x128xf32>
    %513 = arith.addf %508, %512 : vector<24x128xf32>
    %c23_i32_79 = arith.constant 23 : i32
    %514 = tpu.dynamic_rotate %10 by %c23_i32_79 dim 0 : vector<24x128xf32>, i32 -> vector<24x128xf32>
    %c1_i32_80 = arith.constant 1 : i32
    %515 = tpu.dynamic_rotate %514 by %c1_i32_80 dim 1 : vector<24x128xf32>, i32 -> vector<24x128xf32>
    %c24_81 = arith.constant 24 : index
    %516 = memref.load %arg4[%c24_81] : memref<54xf32, #tpu.memory_space<smem>>
    %517 = vector.broadcast %516 : f32 to vector<24x128xf32>
    %518 = arith.mulf %517, %515 : vector<24x128xf32>
    %519 = arith.addf %513, %518 : vector<24x128xf32>
    %c25_82 = arith.constant 25 : index
    %520 = memref.load %arg4[%c25_82] : memref<54xf32, #tpu.memory_space<smem>>
    %521 = vector.broadcast %520 : f32 to vector<24x128xf32>
    %522 = arith.mulf %521, %514 : vector<24x128xf32>
    %523 = arith.addf %519, %522 : vector<24x128xf32>
    %c127_i32_83 = arith.constant 127 : i32
    %524 = tpu.dynamic_rotate %514 by %c127_i32_83 dim 1 : vector<24x128xf32>, i32 -> vector<24x128xf32>
    %c26_84 = arith.constant 26 : index
    %525 = memref.load %arg4[%c26_84] : memref<54xf32, #tpu.memory_space<smem>>
    %526 = vector.broadcast %525 : f32 to vector<24x128xf32>
    %527 = arith.mulf %526, %524 : vector<24x128xf32>
    %528 = arith.addf %523, %527 : vector<24x128xf32>
    %c1_i32_85 = arith.constant 1 : i32
    %529 = tpu.dynamic_rotate %391 by %c1_i32_85 dim 0 : vector<24x128xf32>, i32 -> vector<24x128xf32>
    %c1_i32_86 = arith.constant 1 : i32
    %530 = tpu.dynamic_rotate %529 by %c1_i32_86 dim 1 : vector<24x128xf32>, i32 -> vector<24x128xf32>
    %c27_87 = arith.constant 27 : index
    %531 = memref.load %arg4[%c27_87] : memref<54xf32, #tpu.memory_space<smem>>
    %532 = vector.broadcast %531 : f32 to vector<24x128xf32>
    %533 = arith.mulf %532, %530 : vector<24x128xf32>
    %534 = arith.addf %528, %533 : vector<24x128xf32>
    %c28_88 = arith.constant 28 : index
    %535 = memref.load %arg4[%c28_88] : memref<54xf32, #tpu.memory_space<smem>>
    %536 = vector.broadcast %535 : f32 to vector<24x128xf32>
    %537 = arith.mulf %536, %529 : vector<24x128xf32>
    %538 = arith.addf %534, %537 : vector<24x128xf32>
    %c127_i32_89 = arith.constant 127 : i32
    %539 = tpu.dynamic_rotate %529 by %c127_i32_89 dim 1 : vector<24x128xf32>, i32 -> vector<24x128xf32>
    %c29_90 = arith.constant 29 : index
    %540 = memref.load %arg4[%c29_90] : memref<54xf32, #tpu.memory_space<smem>>
    %541 = vector.broadcast %540 : f32 to vector<24x128xf32>
    %542 = arith.mulf %541, %539 : vector<24x128xf32>
    %543 = arith.addf %538, %542 : vector<24x128xf32>
    %c1_i32_91 = arith.constant 1 : i32
    %544 = tpu.dynamic_rotate %391 by %c1_i32_91 dim 1 : vector<24x128xf32>, i32 -> vector<24x128xf32>
    %c30_92 = arith.constant 30 : index
    %545 = memref.load %arg4[%c30_92] : memref<54xf32, #tpu.memory_space<smem>>
    %546 = vector.broadcast %545 : f32 to vector<24x128xf32>
    %547 = arith.mulf %546, %544 : vector<24x128xf32>
    %548 = arith.addf %543, %547 : vector<24x128xf32>
    %c31_93 = arith.constant 31 : index
    %549 = memref.load %arg4[%c31_93] : memref<54xf32, #tpu.memory_space<smem>>
    %550 = vector.broadcast %549 : f32 to vector<24x128xf32>
    %551 = arith.mulf %550, %391 : vector<24x128xf32>
    %552 = arith.addf %548, %551 : vector<24x128xf32>
    %c127_i32_94 = arith.constant 127 : i32
    %553 = tpu.dynamic_rotate %391 by %c127_i32_94 dim 1 : vector<24x128xf32>, i32 -> vector<24x128xf32>
    %c32_95 = arith.constant 32 : index
    %554 = memref.load %arg4[%c32_95] : memref<54xf32, #tpu.memory_space<smem>>
    %555 = vector.broadcast %554 : f32 to vector<24x128xf32>
    %556 = arith.mulf %555, %553 : vector<24x128xf32>
    %557 = arith.addf %552, %556 : vector<24x128xf32>
    %c23_i32_96 = arith.constant 23 : i32
    %558 = tpu.dynamic_rotate %391 by %c23_i32_96 dim 0 : vector<24x128xf32>, i32 -> vector<24x128xf32>
    %c1_i32_97 = arith.constant 1 : i32
    %559 = tpu.dynamic_rotate %558 by %c1_i32_97 dim 1 : vector<24x128xf32>, i32 -> vector<24x128xf32>
    %c33_98 = arith.constant 33 : index
    %560 = memref.load %arg4[%c33_98] : memref<54xf32, #tpu.memory_space<smem>>
    %561 = vector.broadcast %560 : f32 to vector<24x128xf32>
    %562 = arith.mulf %561, %559 : vector<24x128xf32>
    %563 = arith.addf %557, %562 : vector<24x128xf32>
    %c34_99 = arith.constant 34 : index
    %564 = memref.load %arg4[%c34_99] : memref<54xf32, #tpu.memory_space<smem>>
    %565 = vector.broadcast %564 : f32 to vector<24x128xf32>
    %566 = arith.mulf %565, %558 : vector<24x128xf32>
    %567 = arith.addf %563, %566 : vector<24x128xf32>
    %c127_i32_100 = arith.constant 127 : i32
    %568 = tpu.dynamic_rotate %558 by %c127_i32_100 dim 1 : vector<24x128xf32>, i32 -> vector<24x128xf32>
    %c35_101 = arith.constant 35 : index
    %569 = memref.load %arg4[%c35_101] : memref<54xf32, #tpu.memory_space<smem>>
    %570 = vector.broadcast %569 : f32 to vector<24x128xf32>
    %571 = arith.mulf %570, %568 : vector<24x128xf32>
    %572 = arith.addf %567, %571 : vector<24x128xf32>
    %c1_i32_102 = arith.constant 1 : i32
    %573 = tpu.dynamic_rotate %394 by %c1_i32_102 dim 0 : vector<24x128xf32>, i32 -> vector<24x128xf32>
    %c1_i32_103 = arith.constant 1 : i32
    %574 = tpu.dynamic_rotate %573 by %c1_i32_103 dim 1 : vector<24x128xf32>, i32 -> vector<24x128xf32>
    %c36_104 = arith.constant 36 : index
    %575 = memref.load %arg4[%c36_104] : memref<54xf32, #tpu.memory_space<smem>>
    %576 = vector.broadcast %575 : f32 to vector<24x128xf32>
    %577 = arith.mulf %576, %574 : vector<24x128xf32>
    %578 = arith.addf %572, %577 : vector<24x128xf32>
    %c37_105 = arith.constant 37 : index
    %579 = memref.load %arg4[%c37_105] : memref<54xf32, #tpu.memory_space<smem>>
    %580 = vector.broadcast %579 : f32 to vector<24x128xf32>
    %581 = arith.mulf %580, %573 : vector<24x128xf32>
    %582 = arith.addf %578, %581 : vector<24x128xf32>
    %c127_i32_106 = arith.constant 127 : i32
    %583 = tpu.dynamic_rotate %573 by %c127_i32_106 dim 1 : vector<24x128xf32>, i32 -> vector<24x128xf32>
    %c38_107 = arith.constant 38 : index
    %584 = memref.load %arg4[%c38_107] : memref<54xf32, #tpu.memory_space<smem>>
    %585 = vector.broadcast %584 : f32 to vector<24x128xf32>
    %586 = arith.mulf %585, %583 : vector<24x128xf32>
    %587 = arith.addf %582, %586 : vector<24x128xf32>
    %c1_i32_108 = arith.constant 1 : i32
    %588 = tpu.dynamic_rotate %394 by %c1_i32_108 dim 1 : vector<24x128xf32>, i32 -> vector<24x128xf32>
    %c39_109 = arith.constant 39 : index
    %589 = memref.load %arg4[%c39_109] : memref<54xf32, #tpu.memory_space<smem>>
    %590 = vector.broadcast %589 : f32 to vector<24x128xf32>
    %591 = arith.mulf %590, %588 : vector<24x128xf32>
    %592 = arith.addf %587, %591 : vector<24x128xf32>
    %c40_110 = arith.constant 40 : index
    %593 = memref.load %arg4[%c40_110] : memref<54xf32, #tpu.memory_space<smem>>
    %594 = vector.broadcast %593 : f32 to vector<24x128xf32>
    %595 = arith.mulf %594, %394 : vector<24x128xf32>
    %596 = arith.addf %592, %595 : vector<24x128xf32>
    %c127_i32_111 = arith.constant 127 : i32
    %597 = tpu.dynamic_rotate %394 by %c127_i32_111 dim 1 : vector<24x128xf32>, i32 -> vector<24x128xf32>
    %c41_112 = arith.constant 41 : index
    %598 = memref.load %arg4[%c41_112] : memref<54xf32, #tpu.memory_space<smem>>
    %599 = vector.broadcast %598 : f32 to vector<24x128xf32>
    %600 = arith.mulf %599, %597 : vector<24x128xf32>
    %601 = arith.addf %596, %600 : vector<24x128xf32>
    %c23_i32_113 = arith.constant 23 : i32
    %602 = tpu.dynamic_rotate %394 by %c23_i32_113 dim 0 : vector<24x128xf32>, i32 -> vector<24x128xf32>
    %c1_i32_114 = arith.constant 1 : i32
    %603 = tpu.dynamic_rotate %602 by %c1_i32_114 dim 1 : vector<24x128xf32>, i32 -> vector<24x128xf32>
    %c42_115 = arith.constant 42 : index
    %604 = memref.load %arg4[%c42_115] : memref<54xf32, #tpu.memory_space<smem>>
    %605 = vector.broadcast %604 : f32 to vector<24x128xf32>
    %606 = arith.mulf %605, %603 : vector<24x128xf32>
    %607 = arith.addf %601, %606 : vector<24x128xf32>
    %c43_116 = arith.constant 43 : index
    %608 = memref.load %arg4[%c43_116] : memref<54xf32, #tpu.memory_space<smem>>
    %609 = vector.broadcast %608 : f32 to vector<24x128xf32>
    %610 = arith.mulf %609, %602 : vector<24x128xf32>
    %611 = arith.addf %607, %610 : vector<24x128xf32>
    %c127_i32_117 = arith.constant 127 : i32
    %612 = tpu.dynamic_rotate %602 by %c127_i32_117 dim 1 : vector<24x128xf32>, i32 -> vector<24x128xf32>
    %c44_118 = arith.constant 44 : index
    %613 = memref.load %arg4[%c44_118] : memref<54xf32, #tpu.memory_space<smem>>
    %614 = vector.broadcast %613 : f32 to vector<24x128xf32>
    %615 = arith.mulf %614, %612 : vector<24x128xf32>
    %616 = arith.addf %611, %615 : vector<24x128xf32>
    %c1_i32_119 = arith.constant 1 : i32
    %617 = tpu.dynamic_rotate %397 by %c1_i32_119 dim 0 : vector<24x128xf32>, i32 -> vector<24x128xf32>
    %c1_i32_120 = arith.constant 1 : i32
    %618 = tpu.dynamic_rotate %617 by %c1_i32_120 dim 1 : vector<24x128xf32>, i32 -> vector<24x128xf32>
    %c45_121 = arith.constant 45 : index
    %619 = memref.load %arg4[%c45_121] : memref<54xf32, #tpu.memory_space<smem>>
    %620 = vector.broadcast %619 : f32 to vector<24x128xf32>
    %621 = arith.mulf %620, %618 : vector<24x128xf32>
    %622 = arith.addf %616, %621 : vector<24x128xf32>
    %c46_122 = arith.constant 46 : index
    %623 = memref.load %arg4[%c46_122] : memref<54xf32, #tpu.memory_space<smem>>
    %624 = vector.broadcast %623 : f32 to vector<24x128xf32>
    %625 = arith.mulf %624, %617 : vector<24x128xf32>
    %626 = arith.addf %622, %625 : vector<24x128xf32>
    %c127_i32_123 = arith.constant 127 : i32
    %627 = tpu.dynamic_rotate %617 by %c127_i32_123 dim 1 : vector<24x128xf32>, i32 -> vector<24x128xf32>
    %c47_124 = arith.constant 47 : index
    %628 = memref.load %arg4[%c47_124] : memref<54xf32, #tpu.memory_space<smem>>
    %629 = vector.broadcast %628 : f32 to vector<24x128xf32>
    %630 = arith.mulf %629, %627 : vector<24x128xf32>
    %631 = arith.addf %626, %630 : vector<24x128xf32>
    %c1_i32_125 = arith.constant 1 : i32
    %632 = tpu.dynamic_rotate %397 by %c1_i32_125 dim 1 : vector<24x128xf32>, i32 -> vector<24x128xf32>
    %c48_126 = arith.constant 48 : index
    %633 = memref.load %arg4[%c48_126] : memref<54xf32, #tpu.memory_space<smem>>
    %634 = vector.broadcast %633 : f32 to vector<24x128xf32>
    %635 = arith.mulf %634, %632 : vector<24x128xf32>
    %636 = arith.addf %631, %635 : vector<24x128xf32>
    %c49_127 = arith.constant 49 : index
    %637 = memref.load %arg4[%c49_127] : memref<54xf32, #tpu.memory_space<smem>>
    %638 = vector.broadcast %637 : f32 to vector<24x128xf32>
    %639 = arith.mulf %638, %397 : vector<24x128xf32>
    %640 = arith.addf %636, %639 : vector<24x128xf32>
    %c127_i32_128 = arith.constant 127 : i32
    %641 = tpu.dynamic_rotate %397 by %c127_i32_128 dim 1 : vector<24x128xf32>, i32 -> vector<24x128xf32>
    %c50_129 = arith.constant 50 : index
    %642 = memref.load %arg4[%c50_129] : memref<54xf32, #tpu.memory_space<smem>>
    %643 = vector.broadcast %642 : f32 to vector<24x128xf32>
    %644 = arith.mulf %643, %641 : vector<24x128xf32>
    %645 = arith.addf %640, %644 : vector<24x128xf32>
    %c23_i32_130 = arith.constant 23 : i32
    %646 = tpu.dynamic_rotate %397 by %c23_i32_130 dim 0 : vector<24x128xf32>, i32 -> vector<24x128xf32>
    %c1_i32_131 = arith.constant 1 : i32
    %647 = tpu.dynamic_rotate %646 by %c1_i32_131 dim 1 : vector<24x128xf32>, i32 -> vector<24x128xf32>
    %c51_132 = arith.constant 51 : index
    %648 = memref.load %arg4[%c51_132] : memref<54xf32, #tpu.memory_space<smem>>
    %649 = vector.broadcast %648 : f32 to vector<24x128xf32>
    %650 = arith.mulf %649, %647 : vector<24x128xf32>
    %651 = arith.addf %645, %650 : vector<24x128xf32>
    %c52_133 = arith.constant 52 : index
    %652 = memref.load %arg4[%c52_133] : memref<54xf32, #tpu.memory_space<smem>>
    %653 = vector.broadcast %652 : f32 to vector<24x128xf32>
    %654 = arith.mulf %653, %646 : vector<24x128xf32>
    %655 = arith.addf %651, %654 : vector<24x128xf32>
    %c127_i32_134 = arith.constant 127 : i32
    %656 = tpu.dynamic_rotate %646 by %c127_i32_134 dim 1 : vector<24x128xf32>, i32 -> vector<24x128xf32>
    %c53_135 = arith.constant 53 : index
    %657 = memref.load %arg4[%c53_135] : memref<54xf32, #tpu.memory_space<smem>>
    %658 = vector.broadcast %657 : f32 to vector<24x128xf32>
    %659 = arith.mulf %658, %656 : vector<24x128xf32>
    %660 = arith.addf %655, %659 : vector<24x128xf32>
    %c0_136 = arith.constant 0 : index
    %661 = memref.load %arg5[%c0_136] : memref<1xf32, #tpu.memory_space<smem>>
    %662 = vector.broadcast %661 : f32 to vector<24x128xf32>
    %663 = arith.addf %660, %662 : vector<24x128xf32>
    %cst_137 = arith.constant 0.000000e+00 : f32
    %664 = vector.broadcast %cst_137 : f32 to vector<24x128xf32>
    %665 = arith.subf %664, %663 : vector<24x128xf32>
    %666 = math.exp %665 : vector<24x128xf32>
    %cst_138 = arith.constant 1.000000e+00 : f32
    %667 = vector.broadcast %cst_138 : f32 to vector<24x128xf32>
    %668 = arith.addf %667, %666 : vector<24x128xf32>
    %669 = tpu.reciprocal %668 {approx = true} : vector<24x128xf32> -> vector<24x128xf32>
    %cst_139 = arith.constant 0.000000e+00 : f32
    %670 = vector.broadcast %cst_139 : f32 to vector<24x128xf32>
    %671 = arith.select %377, %669, %670 : vector<24x128xi1>, vector<24x128xf32>
    %c1_i32_140 = arith.constant 1 : i32
    %672 = tpu.dynamic_rotate %4 by %c1_i32_140 dim 0 : vector<24x128xf32>, i32 -> vector<24x128xf32>
    %c1_i32_141 = arith.constant 1 : i32
    %673 = tpu.dynamic_rotate %672 by %c1_i32_141 dim 1 : vector<24x128xf32>, i32 -> vector<24x128xf32>
    %c0_142 = arith.constant 0 : index
    %674 = memref.load %arg6[%c0_142] : memref<63xf32, #tpu.memory_space<smem>>
    %675 = vector.broadcast %674 : f32 to vector<24x128xf32>
    %676 = arith.mulf %675, %673 : vector<24x128xf32>
    %c1_143 = arith.constant 1 : index
    %677 = memref.load %arg6[%c1_143] : memref<63xf32, #tpu.memory_space<smem>>
    %678 = vector.broadcast %677 : f32 to vector<24x128xf32>
    %679 = arith.mulf %678, %672 : vector<24x128xf32>
    %680 = arith.addf %676, %679 : vector<24x128xf32>
    %c127_i32_144 = arith.constant 127 : i32
    %681 = tpu.dynamic_rotate %672 by %c127_i32_144 dim 1 : vector<24x128xf32>, i32 -> vector<24x128xf32>
    %c2_145 = arith.constant 2 : index
    %682 = memref.load %arg6[%c2_145] : memref<63xf32, #tpu.memory_space<smem>>
    %683 = vector.broadcast %682 : f32 to vector<24x128xf32>
    %684 = arith.mulf %683, %681 : vector<24x128xf32>
    %685 = arith.addf %680, %684 : vector<24x128xf32>
    %c1_i32_146 = arith.constant 1 : i32
    %686 = tpu.dynamic_rotate %4 by %c1_i32_146 dim 1 : vector<24x128xf32>, i32 -> vector<24x128xf32>
    %c3_147 = arith.constant 3 : index
    %687 = memref.load %arg6[%c3_147] : memref<63xf32, #tpu.memory_space<smem>>
    %688 = vector.broadcast %687 : f32 to vector<24x128xf32>
    %689 = arith.mulf %688, %686 : vector<24x128xf32>
    %690 = arith.addf %685, %689 : vector<24x128xf32>
    %c4_148 = arith.constant 4 : index
    %691 = memref.load %arg6[%c4_148] : memref<63xf32, #tpu.memory_space<smem>>
    %692 = vector.broadcast %691 : f32 to vector<24x128xf32>
    %693 = arith.mulf %692, %4 : vector<24x128xf32>
    %694 = arith.addf %690, %693 : vector<24x128xf32>
    %c127_i32_149 = arith.constant 127 : i32
    %695 = tpu.dynamic_rotate %4 by %c127_i32_149 dim 1 : vector<24x128xf32>, i32 -> vector<24x128xf32>
    %c5_150 = arith.constant 5 : index
    %696 = memref.load %arg6[%c5_150] : memref<63xf32, #tpu.memory_space<smem>>
    %697 = vector.broadcast %696 : f32 to vector<24x128xf32>
    %698 = arith.mulf %697, %695 : vector<24x128xf32>
    %699 = arith.addf %694, %698 : vector<24x128xf32>
    %c23_i32_151 = arith.constant 23 : i32
    %700 = tpu.dynamic_rotate %4 by %c23_i32_151 dim 0 : vector<24x128xf32>, i32 -> vector<24x128xf32>
    %c1_i32_152 = arith.constant 1 : i32
    %701 = tpu.dynamic_rotate %700 by %c1_i32_152 dim 1 : vector<24x128xf32>, i32 -> vector<24x128xf32>
    %c6_153 = arith.constant 6 : index
    %702 = memref.load %arg6[%c6_153] : memref<63xf32, #tpu.memory_space<smem>>
    %703 = vector.broadcast %702 : f32 to vector<24x128xf32>
    %704 = arith.mulf %703, %701 : vector<24x128xf32>
    %705 = arith.addf %699, %704 : vector<24x128xf32>
    %c7_154 = arith.constant 7 : index
    %706 = memref.load %arg6[%c7_154] : memref<63xf32, #tpu.memory_space<smem>>
    %707 = vector.broadcast %706 : f32 to vector<24x128xf32>
    %708 = arith.mulf %707, %700 : vector<24x128xf32>
    %709 = arith.addf %705, %708 : vector<24x128xf32>
    %c127_i32_155 = arith.constant 127 : i32
    %710 = tpu.dynamic_rotate %700 by %c127_i32_155 dim 1 : vector<24x128xf32>, i32 -> vector<24x128xf32>
    %c8_156 = arith.constant 8 : index
    %711 = memref.load %arg6[%c8_156] : memref<63xf32, #tpu.memory_space<smem>>
    %712 = vector.broadcast %711 : f32 to vector<24x128xf32>
    %713 = arith.mulf %712, %710 : vector<24x128xf32>
    %714 = arith.addf %709, %713 : vector<24x128xf32>
    %c1_i32_157 = arith.constant 1 : i32
    %715 = tpu.dynamic_rotate %7 by %c1_i32_157 dim 0 : vector<24x128xf32>, i32 -> vector<24x128xf32>
    %c1_i32_158 = arith.constant 1 : i32
    %716 = tpu.dynamic_rotate %715 by %c1_i32_158 dim 1 : vector<24x128xf32>, i32 -> vector<24x128xf32>
    %c9_159 = arith.constant 9 : index
    %717 = memref.load %arg6[%c9_159] : memref<63xf32, #tpu.memory_space<smem>>
    %718 = vector.broadcast %717 : f32 to vector<24x128xf32>
    %719 = arith.mulf %718, %716 : vector<24x128xf32>
    %720 = arith.addf %714, %719 : vector<24x128xf32>
    %c10_160 = arith.constant 10 : index
    %721 = memref.load %arg6[%c10_160] : memref<63xf32, #tpu.memory_space<smem>>
    %722 = vector.broadcast %721 : f32 to vector<24x128xf32>
    %723 = arith.mulf %722, %715 : vector<24x128xf32>
    %724 = arith.addf %720, %723 : vector<24x128xf32>
    %c127_i32_161 = arith.constant 127 : i32
    %725 = tpu.dynamic_rotate %715 by %c127_i32_161 dim 1 : vector<24x128xf32>, i32 -> vector<24x128xf32>
    %c11_162 = arith.constant 11 : index
    %726 = memref.load %arg6[%c11_162] : memref<63xf32, #tpu.memory_space<smem>>
    %727 = vector.broadcast %726 : f32 to vector<24x128xf32>
    %728 = arith.mulf %727, %725 : vector<24x128xf32>
    %729 = arith.addf %724, %728 : vector<24x128xf32>
    %c1_i32_163 = arith.constant 1 : i32
    %730 = tpu.dynamic_rotate %7 by %c1_i32_163 dim 1 : vector<24x128xf32>, i32 -> vector<24x128xf32>
    %c12_164 = arith.constant 12 : index
    %731 = memref.load %arg6[%c12_164] : memref<63xf32, #tpu.memory_space<smem>>
    %732 = vector.broadcast %731 : f32 to vector<24x128xf32>
    %733 = arith.mulf %732, %730 : vector<24x128xf32>
    %734 = arith.addf %729, %733 : vector<24x128xf32>
    %c13_165 = arith.constant 13 : index
    %735 = memref.load %arg6[%c13_165] : memref<63xf32, #tpu.memory_space<smem>>
    %736 = vector.broadcast %735 : f32 to vector<24x128xf32>
    %737 = arith.mulf %736, %7 : vector<24x128xf32>
    %738 = arith.addf %734, %737 : vector<24x128xf32>
    %c127_i32_166 = arith.constant 127 : i32
    %739 = tpu.dynamic_rotate %7 by %c127_i32_166 dim 1 : vector<24x128xf32>, i32 -> vector<24x128xf32>
    %c14_167 = arith.constant 14 : index
    %740 = memref.load %arg6[%c14_167] : memref<63xf32, #tpu.memory_space<smem>>
    %741 = vector.broadcast %740 : f32 to vector<24x128xf32>
    %742 = arith.mulf %741, %739 : vector<24x128xf32>
    %743 = arith.addf %738, %742 : vector<24x128xf32>
    %c23_i32_168 = arith.constant 23 : i32
    %744 = tpu.dynamic_rotate %7 by %c23_i32_168 dim 0 : vector<24x128xf32>, i32 -> vector<24x128xf32>
    %c1_i32_169 = arith.constant 1 : i32
    %745 = tpu.dynamic_rotate %744 by %c1_i32_169 dim 1 : vector<24x128xf32>, i32 -> vector<24x128xf32>
    %c15_170 = arith.constant 15 : index
    %746 = memref.load %arg6[%c15_170] : memref<63xf32, #tpu.memory_space<smem>>
    %747 = vector.broadcast %746 : f32 to vector<24x128xf32>
    %748 = arith.mulf %747, %745 : vector<24x128xf32>
    %749 = arith.addf %743, %748 : vector<24x128xf32>
    %c16_171 = arith.constant 16 : index
    %750 = memref.load %arg6[%c16_171] : memref<63xf32, #tpu.memory_space<smem>>
    %751 = vector.broadcast %750 : f32 to vector<24x128xf32>
    %752 = arith.mulf %751, %744 : vector<24x128xf32>
    %753 = arith.addf %749, %752 : vector<24x128xf32>
    %c127_i32_172 = arith.constant 127 : i32
    %754 = tpu.dynamic_rotate %744 by %c127_i32_172 dim 1 : vector<24x128xf32>, i32 -> vector<24x128xf32>
    %c17_173 = arith.constant 17 : index
    %755 = memref.load %arg6[%c17_173] : memref<63xf32, #tpu.memory_space<smem>>
    %756 = vector.broadcast %755 : f32 to vector<24x128xf32>
    %757 = arith.mulf %756, %754 : vector<24x128xf32>
    %758 = arith.addf %753, %757 : vector<24x128xf32>
    %c1_i32_174 = arith.constant 1 : i32
    %759 = tpu.dynamic_rotate %10 by %c1_i32_174 dim 0 : vector<24x128xf32>, i32 -> vector<24x128xf32>
    %c1_i32_175 = arith.constant 1 : i32
    %760 = tpu.dynamic_rotate %759 by %c1_i32_175 dim 1 : vector<24x128xf32>, i32 -> vector<24x128xf32>
    %c18_176 = arith.constant 18 : index
    %761 = memref.load %arg6[%c18_176] : memref<63xf32, #tpu.memory_space<smem>>
    %762 = vector.broadcast %761 : f32 to vector<24x128xf32>
    %763 = arith.mulf %762, %760 : vector<24x128xf32>
    %764 = arith.addf %758, %763 : vector<24x128xf32>
    %c19_177 = arith.constant 19 : index
    %765 = memref.load %arg6[%c19_177] : memref<63xf32, #tpu.memory_space<smem>>
    %766 = vector.broadcast %765 : f32 to vector<24x128xf32>
    %767 = arith.mulf %766, %759 : vector<24x128xf32>
    %768 = arith.addf %764, %767 : vector<24x128xf32>
    %c127_i32_178 = arith.constant 127 : i32
    %769 = tpu.dynamic_rotate %759 by %c127_i32_178 dim 1 : vector<24x128xf32>, i32 -> vector<24x128xf32>
    %c20_179 = arith.constant 20 : index
    %770 = memref.load %arg6[%c20_179] : memref<63xf32, #tpu.memory_space<smem>>
    %771 = vector.broadcast %770 : f32 to vector<24x128xf32>
    %772 = arith.mulf %771, %769 : vector<24x128xf32>
    %773 = arith.addf %768, %772 : vector<24x128xf32>
    %c1_i32_180 = arith.constant 1 : i32
    %774 = tpu.dynamic_rotate %10 by %c1_i32_180 dim 1 : vector<24x128xf32>, i32 -> vector<24x128xf32>
    %c21_181 = arith.constant 21 : index
    %775 = memref.load %arg6[%c21_181] : memref<63xf32, #tpu.memory_space<smem>>
    %776 = vector.broadcast %775 : f32 to vector<24x128xf32>
    %777 = arith.mulf %776, %774 : vector<24x128xf32>
    %778 = arith.addf %773, %777 : vector<24x128xf32>
    %c22_182 = arith.constant 22 : index
    %779 = memref.load %arg6[%c22_182] : memref<63xf32, #tpu.memory_space<smem>>
    %780 = vector.broadcast %779 : f32 to vector<24x128xf32>
    %781 = arith.mulf %780, %10 : vector<24x128xf32>
    %782 = arith.addf %778, %781 : vector<24x128xf32>
    %c127_i32_183 = arith.constant 127 : i32
    %783 = tpu.dynamic_rotate %10 by %c127_i32_183 dim 1 : vector<24x128xf32>, i32 -> vector<24x128xf32>
    %c23_184 = arith.constant 23 : index
    %784 = memref.load %arg6[%c23_184] : memref<63xf32, #tpu.memory_space<smem>>
    %785 = vector.broadcast %784 : f32 to vector<24x128xf32>
    %786 = arith.mulf %785, %783 : vector<24x128xf32>
    %787 = arith.addf %782, %786 : vector<24x128xf32>
    %c23_i32_185 = arith.constant 23 : i32
    %788 = tpu.dynamic_rotate %10 by %c23_i32_185 dim 0 : vector<24x128xf32>, i32 -> vector<24x128xf32>
    %c1_i32_186 = arith.constant 1 : i32
    %789 = tpu.dynamic_rotate %788 by %c1_i32_186 dim 1 : vector<24x128xf32>, i32 -> vector<24x128xf32>
    %c24_187 = arith.constant 24 : index
    %790 = memref.load %arg6[%c24_187] : memref<63xf32, #tpu.memory_space<smem>>
    %791 = vector.broadcast %790 : f32 to vector<24x128xf32>
    %792 = arith.mulf %791, %789 : vector<24x128xf32>
    %793 = arith.addf %787, %792 : vector<24x128xf32>
    %c25_188 = arith.constant 25 : index
    %794 = memref.load %arg6[%c25_188] : memref<63xf32, #tpu.memory_space<smem>>
    %795 = vector.broadcast %794 : f32 to vector<24x128xf32>
    %796 = arith.mulf %795, %788 : vector<24x128xf32>
    %797 = arith.addf %793, %796 : vector<24x128xf32>
    %c127_i32_189 = arith.constant 127 : i32
    %798 = tpu.dynamic_rotate %788 by %c127_i32_189 dim 1 : vector<24x128xf32>, i32 -> vector<24x128xf32>
    %c26_190 = arith.constant 26 : index
    %799 = memref.load %arg6[%c26_190] : memref<63xf32, #tpu.memory_space<smem>>
    %800 = vector.broadcast %799 : f32 to vector<24x128xf32>
    %801 = arith.mulf %800, %798 : vector<24x128xf32>
    %802 = arith.addf %797, %801 : vector<24x128xf32>
    %c1_i32_191 = arith.constant 1 : i32
    %803 = tpu.dynamic_rotate %391 by %c1_i32_191 dim 0 : vector<24x128xf32>, i32 -> vector<24x128xf32>
    %c1_i32_192 = arith.constant 1 : i32
    %804 = tpu.dynamic_rotate %803 by %c1_i32_192 dim 1 : vector<24x128xf32>, i32 -> vector<24x128xf32>
    %c27_193 = arith.constant 27 : index
    %805 = memref.load %arg6[%c27_193] : memref<63xf32, #tpu.memory_space<smem>>
    %806 = vector.broadcast %805 : f32 to vector<24x128xf32>
    %807 = arith.mulf %806, %804 : vector<24x128xf32>
    %808 = arith.addf %802, %807 : vector<24x128xf32>
    %c28_194 = arith.constant 28 : index
    %809 = memref.load %arg6[%c28_194] : memref<63xf32, #tpu.memory_space<smem>>
    %810 = vector.broadcast %809 : f32 to vector<24x128xf32>
    %811 = arith.mulf %810, %803 : vector<24x128xf32>
    %812 = arith.addf %808, %811 : vector<24x128xf32>
    %c127_i32_195 = arith.constant 127 : i32
    %813 = tpu.dynamic_rotate %803 by %c127_i32_195 dim 1 : vector<24x128xf32>, i32 -> vector<24x128xf32>
    %c29_196 = arith.constant 29 : index
    %814 = memref.load %arg6[%c29_196] : memref<63xf32, #tpu.memory_space<smem>>
    %815 = vector.broadcast %814 : f32 to vector<24x128xf32>
    %816 = arith.mulf %815, %813 : vector<24x128xf32>
    %817 = arith.addf %812, %816 : vector<24x128xf32>
    %c1_i32_197 = arith.constant 1 : i32
    %818 = tpu.dynamic_rotate %391 by %c1_i32_197 dim 1 : vector<24x128xf32>, i32 -> vector<24x128xf32>
    %c30_198 = arith.constant 30 : index
    %819 = memref.load %arg6[%c30_198] : memref<63xf32, #tpu.memory_space<smem>>
    %820 = vector.broadcast %819 : f32 to vector<24x128xf32>
    %821 = arith.mulf %820, %818 : vector<24x128xf32>
    %822 = arith.addf %817, %821 : vector<24x128xf32>
    %c31_199 = arith.constant 31 : index
    %823 = memref.load %arg6[%c31_199] : memref<63xf32, #tpu.memory_space<smem>>
    %824 = vector.broadcast %823 : f32 to vector<24x128xf32>
    %825 = arith.mulf %824, %391 : vector<24x128xf32>
    %826 = arith.addf %822, %825 : vector<24x128xf32>
    %c127_i32_200 = arith.constant 127 : i32
    %827 = tpu.dynamic_rotate %391 by %c127_i32_200 dim 1 : vector<24x128xf32>, i32 -> vector<24x128xf32>
    %c32_201 = arith.constant 32 : index
    %828 = memref.load %arg6[%c32_201] : memref<63xf32, #tpu.memory_space<smem>>
    %829 = vector.broadcast %828 : f32 to vector<24x128xf32>
    %830 = arith.mulf %829, %827 : vector<24x128xf32>
    %831 = arith.addf %826, %830 : vector<24x128xf32>
    %c23_i32_202 = arith.constant 23 : i32
    %832 = tpu.dynamic_rotate %391 by %c23_i32_202 dim 0 : vector<24x128xf32>, i32 -> vector<24x128xf32>
    %c1_i32_203 = arith.constant 1 : i32
    %833 = tpu.dynamic_rotate %832 by %c1_i32_203 dim 1 : vector<24x128xf32>, i32 -> vector<24x128xf32>
    %c33_204 = arith.constant 33 : index
    %834 = memref.load %arg6[%c33_204] : memref<63xf32, #tpu.memory_space<smem>>
    %835 = vector.broadcast %834 : f32 to vector<24x128xf32>
    %836 = arith.mulf %835, %833 : vector<24x128xf32>
    %837 = arith.addf %831, %836 : vector<24x128xf32>
    %c34_205 = arith.constant 34 : index
    %838 = memref.load %arg6[%c34_205] : memref<63xf32, #tpu.memory_space<smem>>
    %839 = vector.broadcast %838 : f32 to vector<24x128xf32>
    %840 = arith.mulf %839, %832 : vector<24x128xf32>
    %841 = arith.addf %837, %840 : vector<24x128xf32>
    %c127_i32_206 = arith.constant 127 : i32
    %842 = tpu.dynamic_rotate %832 by %c127_i32_206 dim 1 : vector<24x128xf32>, i32 -> vector<24x128xf32>
    %c35_207 = arith.constant 35 : index
    %843 = memref.load %arg6[%c35_207] : memref<63xf32, #tpu.memory_space<smem>>
    %844 = vector.broadcast %843 : f32 to vector<24x128xf32>
    %845 = arith.mulf %844, %842 : vector<24x128xf32>
    %846 = arith.addf %841, %845 : vector<24x128xf32>
    %c1_i32_208 = arith.constant 1 : i32
    %847 = tpu.dynamic_rotate %394 by %c1_i32_208 dim 0 : vector<24x128xf32>, i32 -> vector<24x128xf32>
    %c1_i32_209 = arith.constant 1 : i32
    %848 = tpu.dynamic_rotate %847 by %c1_i32_209 dim 1 : vector<24x128xf32>, i32 -> vector<24x128xf32>
    %c36_210 = arith.constant 36 : index
    %849 = memref.load %arg6[%c36_210] : memref<63xf32, #tpu.memory_space<smem>>
    %850 = vector.broadcast %849 : f32 to vector<24x128xf32>
    %851 = arith.mulf %850, %848 : vector<24x128xf32>
    %852 = arith.addf %846, %851 : vector<24x128xf32>
    %c37_211 = arith.constant 37 : index
    %853 = memref.load %arg6[%c37_211] : memref<63xf32, #tpu.memory_space<smem>>
    %854 = vector.broadcast %853 : f32 to vector<24x128xf32>
    %855 = arith.mulf %854, %847 : vector<24x128xf32>
    %856 = arith.addf %852, %855 : vector<24x128xf32>
    %c127_i32_212 = arith.constant 127 : i32
    %857 = tpu.dynamic_rotate %847 by %c127_i32_212 dim 1 : vector<24x128xf32>, i32 -> vector<24x128xf32>
    %c38_213 = arith.constant 38 : index
    %858 = memref.load %arg6[%c38_213] : memref<63xf32, #tpu.memory_space<smem>>
    %859 = vector.broadcast %858 : f32 to vector<24x128xf32>
    %860 = arith.mulf %859, %857 : vector<24x128xf32>
    %861 = arith.addf %856, %860 : vector<24x128xf32>
    %c1_i32_214 = arith.constant 1 : i32
    %862 = tpu.dynamic_rotate %394 by %c1_i32_214 dim 1 : vector<24x128xf32>, i32 -> vector<24x128xf32>
    %c39_215 = arith.constant 39 : index
    %863 = memref.load %arg6[%c39_215] : memref<63xf32, #tpu.memory_space<smem>>
    %864 = vector.broadcast %863 : f32 to vector<24x128xf32>
    %865 = arith.mulf %864, %862 : vector<24x128xf32>
    %866 = arith.addf %861, %865 : vector<24x128xf32>
    %c40_216 = arith.constant 40 : index
    %867 = memref.load %arg6[%c40_216] : memref<63xf32, #tpu.memory_space<smem>>
    %868 = vector.broadcast %867 : f32 to vector<24x128xf32>
    %869 = arith.mulf %868, %394 : vector<24x128xf32>
    %870 = arith.addf %866, %869 : vector<24x128xf32>
    %c127_i32_217 = arith.constant 127 : i32
    %871 = tpu.dynamic_rotate %394 by %c127_i32_217 dim 1 : vector<24x128xf32>, i32 -> vector<24x128xf32>
    %c41_218 = arith.constant 41 : index
    %872 = memref.load %arg6[%c41_218] : memref<63xf32, #tpu.memory_space<smem>>
    %873 = vector.broadcast %872 : f32 to vector<24x128xf32>
    %874 = arith.mulf %873, %871 : vector<24x128xf32>
    %875 = arith.addf %870, %874 : vector<24x128xf32>
    %c23_i32_219 = arith.constant 23 : i32
    %876 = tpu.dynamic_rotate %394 by %c23_i32_219 dim 0 : vector<24x128xf32>, i32 -> vector<24x128xf32>
    %c1_i32_220 = arith.constant 1 : i32
    %877 = tpu.dynamic_rotate %876 by %c1_i32_220 dim 1 : vector<24x128xf32>, i32 -> vector<24x128xf32>
    %c42_221 = arith.constant 42 : index
    %878 = memref.load %arg6[%c42_221] : memref<63xf32, #tpu.memory_space<smem>>
    %879 = vector.broadcast %878 : f32 to vector<24x128xf32>
    %880 = arith.mulf %879, %877 : vector<24x128xf32>
    %881 = arith.addf %875, %880 : vector<24x128xf32>
    %c43_222 = arith.constant 43 : index
    %882 = memref.load %arg6[%c43_222] : memref<63xf32, #tpu.memory_space<smem>>
    %883 = vector.broadcast %882 : f32 to vector<24x128xf32>
    %884 = arith.mulf %883, %876 : vector<24x128xf32>
    %885 = arith.addf %881, %884 : vector<24x128xf32>
    %c127_i32_223 = arith.constant 127 : i32
    %886 = tpu.dynamic_rotate %876 by %c127_i32_223 dim 1 : vector<24x128xf32>, i32 -> vector<24x128xf32>
    %c44_224 = arith.constant 44 : index
    %887 = memref.load %arg6[%c44_224] : memref<63xf32, #tpu.memory_space<smem>>
    %888 = vector.broadcast %887 : f32 to vector<24x128xf32>
    %889 = arith.mulf %888, %886 : vector<24x128xf32>
    %890 = arith.addf %885, %889 : vector<24x128xf32>
    %c1_i32_225 = arith.constant 1 : i32
    %891 = tpu.dynamic_rotate %397 by %c1_i32_225 dim 0 : vector<24x128xf32>, i32 -> vector<24x128xf32>
    %c1_i32_226 = arith.constant 1 : i32
    %892 = tpu.dynamic_rotate %891 by %c1_i32_226 dim 1 : vector<24x128xf32>, i32 -> vector<24x128xf32>
    %c45_227 = arith.constant 45 : index
    %893 = memref.load %arg6[%c45_227] : memref<63xf32, #tpu.memory_space<smem>>
    %894 = vector.broadcast %893 : f32 to vector<24x128xf32>
    %895 = arith.mulf %894, %892 : vector<24x128xf32>
    %896 = arith.addf %890, %895 : vector<24x128xf32>
    %c46_228 = arith.constant 46 : index
    %897 = memref.load %arg6[%c46_228] : memref<63xf32, #tpu.memory_space<smem>>
    %898 = vector.broadcast %897 : f32 to vector<24x128xf32>
    %899 = arith.mulf %898, %891 : vector<24x128xf32>
    %900 = arith.addf %896, %899 : vector<24x128xf32>
    %c127_i32_229 = arith.constant 127 : i32
    %901 = tpu.dynamic_rotate %891 by %c127_i32_229 dim 1 : vector<24x128xf32>, i32 -> vector<24x128xf32>
    %c47_230 = arith.constant 47 : index
    %902 = memref.load %arg6[%c47_230] : memref<63xf32, #tpu.memory_space<smem>>
    %903 = vector.broadcast %902 : f32 to vector<24x128xf32>
    %904 = arith.mulf %903, %901 : vector<24x128xf32>
    %905 = arith.addf %900, %904 : vector<24x128xf32>
    %c1_i32_231 = arith.constant 1 : i32
    %906 = tpu.dynamic_rotate %397 by %c1_i32_231 dim 1 : vector<24x128xf32>, i32 -> vector<24x128xf32>
    %c48_232 = arith.constant 48 : index
    %907 = memref.load %arg6[%c48_232] : memref<63xf32, #tpu.memory_space<smem>>
    %908 = vector.broadcast %907 : f32 to vector<24x128xf32>
    %909 = arith.mulf %908, %906 : vector<24x128xf32>
    %910 = arith.addf %905, %909 : vector<24x128xf32>
    %c49_233 = arith.constant 49 : index
    %911 = memref.load %arg6[%c49_233] : memref<63xf32, #tpu.memory_space<smem>>
    %912 = vector.broadcast %911 : f32 to vector<24x128xf32>
    %913 = arith.mulf %912, %397 : vector<24x128xf32>
    %914 = arith.addf %910, %913 : vector<24x128xf32>
    %c127_i32_234 = arith.constant 127 : i32
    %915 = tpu.dynamic_rotate %397 by %c127_i32_234 dim 1 : vector<24x128xf32>, i32 -> vector<24x128xf32>
    %c50_235 = arith.constant 50 : index
    %916 = memref.load %arg6[%c50_235] : memref<63xf32, #tpu.memory_space<smem>>
    %917 = vector.broadcast %916 : f32 to vector<24x128xf32>
    %918 = arith.mulf %917, %915 : vector<24x128xf32>
    %919 = arith.addf %914, %918 : vector<24x128xf32>
    %c23_i32_236 = arith.constant 23 : i32
    %920 = tpu.dynamic_rotate %397 by %c23_i32_236 dim 0 : vector<24x128xf32>, i32 -> vector<24x128xf32>
    %c1_i32_237 = arith.constant 1 : i32
    %921 = tpu.dynamic_rotate %920 by %c1_i32_237 dim 1 : vector<24x128xf32>, i32 -> vector<24x128xf32>
    %c51_238 = arith.constant 51 : index
    %922 = memref.load %arg6[%c51_238] : memref<63xf32, #tpu.memory_space<smem>>
    %923 = vector.broadcast %922 : f32 to vector<24x128xf32>
    %924 = arith.mulf %923, %921 : vector<24x128xf32>
    %925 = arith.addf %919, %924 : vector<24x128xf32>
    %c52_239 = arith.constant 52 : index
    %926 = memref.load %arg6[%c52_239] : memref<63xf32, #tpu.memory_space<smem>>
    %927 = vector.broadcast %926 : f32 to vector<24x128xf32>
    %928 = arith.mulf %927, %920 : vector<24x128xf32>
    %929 = arith.addf %925, %928 : vector<24x128xf32>
    %c127_i32_240 = arith.constant 127 : i32
    %930 = tpu.dynamic_rotate %920 by %c127_i32_240 dim 1 : vector<24x128xf32>, i32 -> vector<24x128xf32>
    %c53_241 = arith.constant 53 : index
    %931 = memref.load %arg6[%c53_241] : memref<63xf32, #tpu.memory_space<smem>>
    %932 = vector.broadcast %931 : f32 to vector<24x128xf32>
    %933 = arith.mulf %932, %930 : vector<24x128xf32>
    %934 = arith.addf %929, %933 : vector<24x128xf32>
    %c1_i32_242 = arith.constant 1 : i32
    %935 = tpu.dynamic_rotate %671 by %c1_i32_242 dim 0 : vector<24x128xf32>, i32 -> vector<24x128xf32>
    %c1_i32_243 = arith.constant 1 : i32
    %936 = tpu.dynamic_rotate %935 by %c1_i32_243 dim 1 : vector<24x128xf32>, i32 -> vector<24x128xf32>
    %c54_244 = arith.constant 54 : index
    %937 = memref.load %arg6[%c54_244] : memref<63xf32, #tpu.memory_space<smem>>
    %938 = vector.broadcast %937 : f32 to vector<24x128xf32>
    %939 = arith.mulf %938, %936 : vector<24x128xf32>
    %940 = arith.addf %934, %939 : vector<24x128xf32>
    %c55_245 = arith.constant 55 : index
    %941 = memref.load %arg6[%c55_245] : memref<63xf32, #tpu.memory_space<smem>>
    %942 = vector.broadcast %941 : f32 to vector<24x128xf32>
    %943 = arith.mulf %942, %935 : vector<24x128xf32>
    %944 = arith.addf %940, %943 : vector<24x128xf32>
    %c127_i32_246 = arith.constant 127 : i32
    %945 = tpu.dynamic_rotate %935 by %c127_i32_246 dim 1 : vector<24x128xf32>, i32 -> vector<24x128xf32>
    %c56_247 = arith.constant 56 : index
    %946 = memref.load %arg6[%c56_247] : memref<63xf32, #tpu.memory_space<smem>>
    %947 = vector.broadcast %946 : f32 to vector<24x128xf32>
    %948 = arith.mulf %947, %945 : vector<24x128xf32>
    %949 = arith.addf %944, %948 : vector<24x128xf32>
    %c1_i32_248 = arith.constant 1 : i32
    %950 = tpu.dynamic_rotate %671 by %c1_i32_248 dim 1 : vector<24x128xf32>, i32 -> vector<24x128xf32>
    %c57_249 = arith.constant 57 : index
    %951 = memref.load %arg6[%c57_249] : memref<63xf32, #tpu.memory_space<smem>>
    %952 = vector.broadcast %951 : f32 to vector<24x128xf32>
    %953 = arith.mulf %952, %950 : vector<24x128xf32>
    %954 = arith.addf %949, %953 : vector<24x128xf32>
    %c58_250 = arith.constant 58 : index
    %955 = memref.load %arg6[%c58_250] : memref<63xf32, #tpu.memory_space<smem>>
    %956 = vector.broadcast %955 : f32 to vector<24x128xf32>
    %957 = arith.mulf %956, %671 : vector<24x128xf32>
    %958 = arith.addf %954, %957 : vector<24x128xf32>
    %c127_i32_251 = arith.constant 127 : i32
    %959 = tpu.dynamic_rotate %671 by %c127_i32_251 dim 1 : vector<24x128xf32>, i32 -> vector<24x128xf32>
    %c59_252 = arith.constant 59 : index
    %960 = memref.load %arg6[%c59_252] : memref<63xf32, #tpu.memory_space<smem>>
    %961 = vector.broadcast %960 : f32 to vector<24x128xf32>
    %962 = arith.mulf %961, %959 : vector<24x128xf32>
    %963 = arith.addf %958, %962 : vector<24x128xf32>
    %c23_i32_253 = arith.constant 23 : i32
    %964 = tpu.dynamic_rotate %671 by %c23_i32_253 dim 0 : vector<24x128xf32>, i32 -> vector<24x128xf32>
    %c1_i32_254 = arith.constant 1 : i32
    %965 = tpu.dynamic_rotate %964 by %c1_i32_254 dim 1 : vector<24x128xf32>, i32 -> vector<24x128xf32>
    %c60_255 = arith.constant 60 : index
    %966 = memref.load %arg6[%c60_255] : memref<63xf32, #tpu.memory_space<smem>>
    %967 = vector.broadcast %966 : f32 to vector<24x128xf32>
    %968 = arith.mulf %967, %965 : vector<24x128xf32>
    %969 = arith.addf %963, %968 : vector<24x128xf32>
    %c61_256 = arith.constant 61 : index
    %970 = memref.load %arg6[%c61_256] : memref<63xf32, #tpu.memory_space<smem>>
    %971 = vector.broadcast %970 : f32 to vector<24x128xf32>
    %972 = arith.mulf %971, %964 : vector<24x128xf32>
    %973 = arith.addf %969, %972 : vector<24x128xf32>
    %c127_i32_257 = arith.constant 127 : i32
    %974 = tpu.dynamic_rotate %964 by %c127_i32_257 dim 1 : vector<24x128xf32>, i32 -> vector<24x128xf32>
    %c62_258 = arith.constant 62 : index
    %975 = memref.load %arg6[%c62_258] : memref<63xf32, #tpu.memory_space<smem>>
    %976 = vector.broadcast %975 : f32 to vector<24x128xf32>
    %977 = arith.mulf %976, %974 : vector<24x128xf32>
    %978 = arith.addf %973, %977 : vector<24x128xf32>
    %c0_259 = arith.constant 0 : index
    %979 = memref.load %arg7[%c0_259] : memref<1xf32, #tpu.memory_space<smem>>
    %980 = vector.broadcast %979 : f32 to vector<24x128xf32>
    %981 = arith.addf %978, %980 : vector<24x128xf32>
    %cst_260 = arith.constant 0.000000e+00 : f32
    %982 = vector.broadcast %cst_260 : f32 to vector<24x128xf32>
    %983 = arith.subf %982, %981 : vector<24x128xf32>
    %984 = math.exp %983 : vector<24x128xf32>
    %cst_261 = arith.constant 1.000000e+00 : f32
    %985 = vector.broadcast %cst_261 : f32 to vector<24x128xf32>
    %986 = arith.addf %985, %984 : vector<24x128xf32>
    %987 = tpu.reciprocal %986 {approx = true} : vector<24x128xf32> -> vector<24x128xf32>
    %988 = vector.extract_strided_slice %987 {offsets = [8, 0], sizes = [8, 128], strides = [1, 1]} : vector<24x128xf32> to vector<8x128xf32>
    %989 = vector.extract_strided_slice %358 {offsets = [8, 0], sizes = [8, 128], strides = [1, 1]} : vector<24x128xf32> to vector<8x128xf32>
    %c0_262 = arith.constant 0 : index
    %c0_263 = arith.constant 0 : index
    %c0_264 = arith.constant 0 : index
    %990 = vector.load %arg8[%c0_262, %c0_263, %c0_264] : memref<3x8x128xf32, #tpu.memory_space<vmem>>, vector<1x8x128xf32>
    %991 = vector.shape_cast %990 : vector<1x8x128xf32> to vector<8x128xf32>
    %992 = vector.shape_cast %989 : vector<8x128xf32> to vector<1x8x128xf32>
    tpu.vector_store %arg8[%c0_262, %c0_263, %c0_264], %992 {strides = array<i32>} : memref<3x8x128xf32, #tpu.memory_space<vmem>>, vector<1x8x128xf32>,
    %993 = vector.extract_strided_slice %361 {offsets = [8, 0], sizes = [8, 128], strides = [1, 1]} : vector<24x128xf32> to vector<8x128xf32>
    %c1_265 = arith.constant 1 : index
    %c0_266 = arith.constant 0 : index
    %c0_267 = arith.constant 0 : index
    %994 = vector.load %arg8[%c1_265, %c0_266, %c0_267] : memref<3x8x128xf32, #tpu.memory_space<vmem>>, vector<1x8x128xf32>
    %995 = vector.shape_cast %994 : vector<1x8x128xf32> to vector<8x128xf32>
    %996 = vector.shape_cast %993 : vector<8x128xf32> to vector<1x8x128xf32>
    tpu.vector_store %arg8[%c1_265, %c0_266, %c0_267], %996 {strides = array<i32>} : memref<3x8x128xf32, #tpu.memory_space<vmem>>, vector<1x8x128xf32>,
    %997 = vector.extract_strided_slice %364 {offsets = [8, 0], sizes = [8, 128], strides = [1, 1]} : vector<24x128xf32> to vector<8x128xf32>
    %c2_268 = arith.constant 2 : index
    %c0_269 = arith.constant 0 : index
    %c0_270 = arith.constant 0 : index
    %998 = vector.load %arg8[%c2_268, %c0_269, %c0_270] : memref<3x8x128xf32, #tpu.memory_space<vmem>>, vector<1x8x128xf32>
    %999 = vector.shape_cast %998 : vector<1x8x128xf32> to vector<8x128xf32>
    %1000 = vector.shape_cast %997 : vector<8x128xf32> to vector<1x8x128xf32>
    tpu.vector_store %arg8[%c2_268, %c0_269, %c0_270], %1000 {strides = array<i32>} : memref<3x8x128xf32, #tpu.memory_space<vmem>>, vector<1x8x128xf32>,
    %1001 = vector.extract_strided_slice %669 {offsets = [8, 0], sizes = [8, 128], strides = [1, 1]} : vector<24x128xf32> to vector<8x128xf32>
    %c0_271 = arith.constant 0 : index
    %c0_272 = arith.constant 0 : index
    %c0_273 = arith.constant 0 : index
    %1002 = vector.load %arg9[%c0_271, %c0_272, %c0_273] : memref<1x8x128xf32, #tpu.memory_space<vmem>>, vector<1x8x128xf32>
    %1003 = vector.shape_cast %1002 : vector<1x8x128xf32> to vector<8x128xf32>
    %1004 = vector.shape_cast %1001 : vector<8x128xf32> to vector<1x8x128xf32>
    tpu.vector_store %arg9[%c0_271, %c0_272, %c0_273], %1004 {strides = array<i32>} : memref<1x8x128xf32, #tpu.memory_space<vmem>>, vector<1x8x128xf32>,
    %c0_274 = arith.constant 0 : index
    %c0_275 = arith.constant 0 : index
    %c0_276 = arith.constant 0 : index
    %1005 = vector.load %arg10[%c0_274, %c0_275, %c0_276] : memref<1x8x128xf32, #tpu.memory_space<vmem>>, vector<1x8x128xf32>
    %1006 = vector.shape_cast %1005 : vector<1x8x128xf32> to vector<8x128xf32>
    %1007 = vector.shape_cast %988 : vector<8x128xf32> to vector<1x8x128xf32>
    tpu.vector_store %arg10[%c0_274, %c0_275, %c0_276], %1007 {strides = array<i32>} : memref<1x8x128xf32, #tpu.memory_space<vmem>>, vector<1x8x128xf32>,
    %1008 = vector.extract_strided_slice %4 {offsets = [8, 0], sizes = [8, 128], strides = [1, 1]} : vector<24x128xf32> to vector<8x128xf32>
    %c0_277 = arith.constant 0 : index
    %c0_278 = arith.constant 0 : index
    %c0_279 = arith.constant 0 : index
    %1009 = vector.load %arg11[%c0_277, %c0_278, %c0_279] : memref<4x8x128xf32, #tpu.memory_space<vmem>>, vector<1x8x128xf32>
    %1010 = vector.shape_cast %1009 : vector<1x8x128xf32> to vector<8x128xf32>
    %1011 = vector.shape_cast %1008 : vector<8x128xf32> to vector<1x8x128xf32>
    tpu.vector_store %arg11[%c0_277, %c0_278, %c0_279], %1011 {strides = array<i32>} : memref<4x8x128xf32, #tpu.memory_space<vmem>>, vector<1x8x128xf32>,
    %1012 = vector.extract_strided_slice %7 {offsets = [8, 0], sizes = [8, 128], strides = [1, 1]} : vector<24x128xf32> to vector<8x128xf32>
    %c1_280 = arith.constant 1 : index
    %c0_281 = arith.constant 0 : index
    %c0_282 = arith.constant 0 : index
    %1013 = vector.load %arg11[%c1_280, %c0_281, %c0_282] : memref<4x8x128xf32, #tpu.memory_space<vmem>>, vector<1x8x128xf32>
    %1014 = vector.shape_cast %1013 : vector<1x8x128xf32> to vector<8x128xf32>
    %1015 = vector.shape_cast %1012 : vector<8x128xf32> to vector<1x8x128xf32>
    tpu.vector_store %arg11[%c1_280, %c0_281, %c0_282], %1015 {strides = array<i32>} : memref<4x8x128xf32, #tpu.memory_space<vmem>>, vector<1x8x128xf32>,
    %1016 = vector.extract_strided_slice %10 {offsets = [8, 0], sizes = [8, 128], strides = [1, 1]} : vector<24x128xf32> to vector<8x128xf32>
    %c2_283 = arith.constant 2 : index
    %c0_284 = arith.constant 0 : index
    %c0_285 = arith.constant 0 : index
    %1017 = vector.load %arg11[%c2_283, %c0_284, %c0_285] : memref<4x8x128xf32, #tpu.memory_space<vmem>>, vector<1x8x128xf32>
    %1018 = vector.shape_cast %1017 : vector<1x8x128xf32> to vector<8x128xf32>
    %1019 = vector.shape_cast %1016 : vector<8x128xf32> to vector<1x8x128xf32>
    tpu.vector_store %arg11[%c2_283, %c0_284, %c0_285], %1019 {strides = array<i32>} : memref<4x8x128xf32, #tpu.memory_space<vmem>>, vector<1x8x128xf32>,
    %c3_286 = arith.constant 3 : index
    %c0_287 = arith.constant 0 : index
    %c0_288 = arith.constant 0 : index
    %1020 = vector.load %arg11[%c3_286, %c0_287, %c0_288] : memref<4x8x128xf32, #tpu.memory_space<vmem>>, vector<1x8x128xf32>
    %1021 = vector.shape_cast %1020 : vector<1x8x128xf32> to vector<8x128xf32>
    %1022 = vector.shape_cast %988 : vector<8x128xf32> to vector<1x8x128xf32>
    tpu.vector_store %arg11[%c3_286, %c0_287, %c0_288], %1022 {strides = array<i32>} : memref<4x8x128xf32, #tpu.memory_space<vmem>>, vector<1x8x128xf32>,
    return
  }
  func.func @transform_0(%arg0: i32) -> (i32, i32, i32) {
    %c0_i32 = arith.constant 0 : i32
    %c0_i32_0 = arith.constant 0 : i32
    %c0_i32_1 = arith.constant 0 : i32
    %c0_i32_2 = arith.constant 0 : i32
    return %c0_i32, %c0_i32_0, %c0_i32_1 : i32, i32, i32
  }
  func.func @transform_1(%arg0: i32) -> i32 {
    %c0_i32 = arith.constant 0 : i32
    %c0_i32_0 = arith.constant 0 : i32
    return %c0_i32 : i32
  }
  func.func @transform_2(%arg0: i32) -> i32 {
    %c0_i32 = arith.constant 0 : i32
    %c0_i32_0 = arith.constant 0 : i32
    return %c0_i32 : i32
  }
  func.func @transform_3(%arg0: i32) -> i32 {
    %c0_i32 = arith.constant 0 : i32
    %c0_i32_0 = arith.constant 0 : i32
    return %c0_i32 : i32
  }
  func.func @transform_4(%arg0: i32) -> i32 {
    %c0_i32 = arith.constant 0 : i32
    %c0_i32_0 = arith.constant 0 : i32
    return %c0_i32 : i32
  }
  func.func @transform_5(%arg0: i32) -> i32 {
    %c0_i32 = arith.constant 0 : i32
    %c0_i32_0 = arith.constant 0 : i32
    return %c0_i32 : i32
  }
  func.func @transform_6(%arg0: i32) -> i32 {
    %c0_i32 = arith.constant 0 : i32
    %c0_i32_0 = arith.constant 0 : i32
    return %c0_i32 : i32
  }
  func.func @transform_7(%arg0: i32) -> (i32, i32, i32) {
    %c0_i32 = arith.constant 0 : i32
    %c0_i32_0 = arith.constant 0 : i32
    %c0_i32_1 = arith.constant 0 : i32
    return %c0_i32, %arg0, %c0_i32_0 : i32, i32, i32
  }
  func.func @transform_8(%arg0: i32) -> (i32, i32, i32) {
    %c0_i32 = arith.constant 0 : i32
    %c0_i32_0 = arith.constant 0 : i32
    %c0_i32_1 = arith.constant 0 : i32
    return %c0_i32, %arg0, %c0_i32_0 : i32, i32, i32
  }
  func.func @transform_9(%arg0: i32) -> (i32, i32, i32) {
    %c0_i32 = arith.constant 0 : i32
    %c0_i32_0 = arith.constant 0 : i32
    %c0_i32_1 = arith.constant 0 : i32
    return %c0_i32, %arg0, %c0_i32_0 : i32, i32, i32
  }
  func.func @transform_10(%arg0: i32) -> (i32, i32, i32) {
    %c0_i32 = arith.constant 0 : i32
    %c0_i32_0 = arith.constant 0 : i32
    %c0_i32_1 = arith.constant 0 : i32
    return %c0_i32, %arg0, %c0_i32_0 : i32, i32, i32
  }
}

</mosaic_0001>

<llo_original>
// kernel: cutout_net_forward.1
$region0: #{cutout_net_forward.1}
  #allocation0 [shape = 'u32[]', space=smem, size = 0x4, offset = 0x4, fixed_abs, tag = 'smem constant byte address 0x4 - core index']
  #allocation1 [shape = 'u32[144,128]{1,0:T(1,128)}', space=vmem, size = 0x12000, scoped, tag = 'internal scratch']
  #allocation2 [shape = 'f32[1]{0:T(128)S(6)}', space=smem, size = 0x200, scoped, tag = 'scoped memory for cutout_net_forward.1']
  #allocation3 [shape = 'f32[1]{0:T(128)S(6)}', space=smem, size = 0x200, scoped, tag = 'scoped memory for cutout_net_forward.1']
  %s0 = inlined_call_operand.vmem [shape: f32[3,32,128], index: 0, kind: input, shape index: {}]
  %s1 = inlined_call_operand.vmem [shape: f32[81], index: 1, kind: input, shape index: {}]
  %s2 = inlined_call_operand.vmem [shape: f32[3], index: 2, kind: input, shape index: {}]
  %s3 = inlined_call_operand.vmem [shape: f32[54], index: 3, kind: input, shape index: {}]
  %s4 = inlined_call_operand.<no memory space> [shape: f32[1], index: 4, kind: input, shape index: {}]
  %s5 = inlined_call_operand.vmem [shape: f32[63], index: 5, kind: input, shape index: {}]
  %s6 = inlined_call_operand.<no memory space> [shape: f32[1], index: 6, kind: input, shape index: {}]
  %s7 = inlined_call_operand.vmem [shape: f32[3,16,128], index: 7, kind: output, shape index: {0}]
  %s8 = inlined_call_operand.vmem [shape: f32[1,16,128], index: 8, kind: output, shape index: {1}]
  %s9 = inlined_call_operand.vmem [shape: f32[1,16,128], index: 9, kind: output, shape index: {2}]
  %s10 = inlined_call_operand.vmem [shape: f32[4,16,128], index: 10, kind: output, shape index: {3}]
  %11 = xla_tuple %s7, %s8, %s9, %s10
  %s12 = sld [smem:[#allocation0]]
  $region169: #{cutout_net_forward.1} parent=0
    _
  %s14 = ssub.s32 1, %s12
  %s15 = scalar_select 0, %s14, %s12
  %16 = sst [smem:[#allocation2]] %s4
  %17 = sst [smem:[#allocation3]] %s6
  $region1: #{cutout_net_forward.1} parent=0
    #allocation4 [shape = 'u8[512]{0}', space=smem, size = 0x200, scoped, tag = 'input window, operand 1, single buffered']
    #allocation5 [shape = 's32[2]{0}', space=sflag, size = 0x8, scoped, tag = 'scoped memory for cutout_net_forward.1']
    #allocation6 [shape = 'u8[512]{0}', space=smem, size = 0x200, scoped, tag = 'input window, operand 2, single buffered']
    #allocation7 [shape = 's32[1]{0}', space=sflag, size = 0x4, scoped, tag = 'scoped memory for cutout_net_forward.1']
    #allocation8 [shape = 'u8[512]{0}', space=smem, size = 0x200, scoped, tag = 'input window, operand 3, single buffered']
    #allocation9 [shape = 'u8[512]{0}', space=smem, size = 0x200, scoped, tag = 'input window, operand 5, single buffered']
    #allocation10 [shape = 's32[1]{0}', space=sflag, size = 0x4, scoped, tag = 'scoped memory for cutout_net_forward.1']
    #allocation11 [shape = 'u8[24576]{0}', space=vmem, size = 0x6000, scoped, tag = 'output window, operand 0']
    #allocation12 [shape = 'u8[32768]{0}', space=vmem, size = 0x8000, scoped, tag = 'output window, operand 3']
    %18 = vsyncpa [#allocation5], 0
    %19 = vsyncpa [#allocation7], 0
    %20 = vsyncpa [#allocation10], 0
    loop: start=0, step=1, limit=4
    $region2: #{cutout_net_forward.1} parent=1 // loop_pre_header
      _
    $region3: #{cutout_net_forward.1} parent=1 // loop_header
      %s22 = sphi 0, %s26
      %p23 = scmp.ge.s32.totalorder %s22, 4
      %s30 = sphi 0, %s30
      %s32 = sphi 0, %s30
      %s33 = sphi 0, %s32
      %s47 = sphi 0, %s33
      %s51 = sphi 0, %s51
      %s53 = sphi 0, %s51
      %s54 = sphi 0, %s53
      %s68 = sphi 0, %s54
      %s72 = sphi 0, %s72
      %s74 = sphi 0, %s72
      %s75 = sphi 0, %s74
      %s89 = sphi 0, %s75
      %s93 = sphi 0, %s93
      %s95 = sphi 0, %s93
      %s96 = sphi 0, %s95
      %s110 = sphi 0, %s96
      %s114 = sphi 0, %s114
      %s116 = sphi 0, %s114
      %s117 = sphi 0, %s116
      %s131 = sphi 0, %s117
      %s135 = sphi 0, %s135
      %s137 = sphi 0, %s135
      %s138 = sphi 0, %s137
      %s152 = sphi 0, %s138
      %s156 = sphi 0, %s156
      %s158 = sphi 0, %s156
      %s159 = sphi 0, %s158
      %s173 = sphi 0, %s159
      %s179 = sphi 0, %s181
      %s182 = sphi 0, %s179
      %s183 = sphi 0, %s182
      %s199 = sphi 0, %s183
      %s205 = sphi 0, %s207
      %s208 = sphi 0, %s205
      %s209 = sphi 0, %s208
      %s225 = sphi 0, %s209
      %s231 = sphi 0, %s233
      %s234 = sphi 0, %s231
      %s235 = sphi 0, %s234
      %s251 = sphi 0, %s235
      %s257 = sphi 0, %s259
      %s260 = sphi 0, %s257
      %s261 = sphi 0, %s260
      %s277 = sphi 0, %s261
    $region4: #{cutout_net_forward.1} parent=1 // loop_header_branch
      %25 = sbr.rel (%p23) target = $region8
    $region5: #{cutout_net_forward.1} parent=1 // loop_body
      %s27 = ssub.s32 %s22, 1
      %s28 = ssub.s32 %s22, 2
      %s29 = sadd.s32 %s22, 1
      %s31 = sadd.s32 %s30, 1
      %p34 = scmp.eq.s32.totalorder %s22, 1
      %p35 = scmp.ne.s32.totalorder %s30, %s32
      %p36 = scmp.eq.s32.totalorder %s22, 0
      %p37 = por %p35, %p36
      %p38 = scmp.ne.s32.totalorder %s30, %s32
      %p39 = scmp.eq.s32.totalorder %s27, 1
      %p40 = por %p38, %p39
      %p41 = scmp.ne.s32.totalorder %s32, %s33
      %p42 = scmp.eq.s32.totalorder %s27, 0
      %p43 = por %p41, %p42
      %p44 = scmp.ne.s32.totalorder %s32, %s33
      %p45 = scmp.eq.s32.totalorder %s28, 1
      %p46 = por %p44, %p45
      %p48 = scmp.ne.s32.totalorder %s33, %s47
      %p49 = scmp.eq.s32.totalorder %s28, 0
      %p50 = por %p48, %p49
      %s52 = sadd.s32 %s51, 1
      %p55 = scmp.eq.s32.totalorder %s22, 1
      %p56 = scmp.ne.s32.totalorder %s51, %s53
      %p57 = scmp.eq.s32.totalorder %s22, 0
      %p58 = por %p56, %p57
      %p59 = scmp.ne.s32.totalorder %s51, %s53
      %p60 = scmp.eq.s32.totalorder %s27, 1
      %p61 = por %p59, %p60
      %p62 = scmp.ne.s32.totalorder %s53, %s54
      %p63 = scmp.eq.s32.totalorder %s27, 0
      %p64 = por %p62, %p63
      %p65 = scmp.ne.s32.totalorder %s53, %s54
      %p66 = scmp.eq.s32.totalorder %s28, 1
      %p67 = por %p65, %p66
      %p69 = scmp.ne.s32.totalorder %s54, %s68
      %p70 = scmp.eq.s32.totalorder %s28, 0
      %p71 = por %p69, %p70
      %s73 = sadd.s32 %s72, 1
      %p76 = scmp.eq.s32.totalorder %s22, 1
      %p77 = scmp.ne.s32.totalorder %s72, %s74
      %p78 = scmp.eq.s32.totalorder %s22, 0
      %p79 = por %p77, %p78
      %p80 = scmp.ne.s32.totalorder %s72, %s74
      %p81 = scmp.eq.s32.totalorder %s27, 1
      %p82 = por %p80, %p81
      %p83 = scmp.ne.s32.totalorder %s74, %s75
      %p84 = scmp.eq.s32.totalorder %s27, 0
      %p85 = por %p83, %p84
      %p86 = scmp.ne.s32.totalorder %s74, %s75
      %p87 = scmp.eq.s32.totalorder %s28, 1
      %p88 = por %p86, %p87
      %p90 = scmp.ne.s32.totalorder %s75, %s89
      %p91 = scmp.eq.s32.totalorder %s28, 0
      %p92 = por %p90, %p91
      %s94 = sadd.s32 %s93, 1
      %p97 = scmp.eq.s32.totalorder %s22, 1
      %p98 = scmp.ne.s32.totalorder %s93, %s95
      %p99 = scmp.eq.s32.totalorder %s22, 0
      %p100 = por %p98, %p99
      %p101 = scmp.ne.s32.totalorder %s93, %s95
      %p102 = scmp.eq.s32.totalorder %s27, 1
      %p103 = por %p101, %p102
      %p104 = scmp.ne.s32.totalorder %s95, %s96
      %p105 = scmp.eq.s32.totalorder %s27, 0
      %p106 = por %p104, %p105
      %p107 = scmp.ne.s32.totalorder %s95, %s96
      %p108 = scmp.eq.s32.totalorder %s28, 1
      %p109 = por %p107, %p108
      %p111 = scmp.ne.s32.totalorder %s96, %s110
      %p112 = scmp.eq.s32.totalorder %s28, 0
      %p113 = por %p111, %p112
      %s115 = sadd.s32 %s114, 1
      %p118 = scmp.eq.s32.totalorder %s22, 1
      %p119 = scmp.ne.s32.totalorder %s114, %s116
      %p120 = scmp.eq.s32.totalorder %s22, 0
      %p121 = por %p119, %p120
      %p122 = scmp.ne.s32.totalorder %s114, %s116
      %p123 = scmp.eq.s32.totalorder %s27, 1
      %p124 = por %p122, %p123
      %p125 = scmp.ne.s32.totalorder %s116, %s117
      %p126 = scmp.eq.s32.totalorder %s27, 0
      %p127 = por %p125, %p126
      %p128 = scmp.ne.s32.totalorder %s116, %s117
      %p129 = scmp.eq.s32.totalorder %s28, 1
      %p130 = por %p128, %p129
      %p132 = scmp.ne.s32.totalorder %s117, %s131
      %p133 = scmp.eq.s32.totalorder %s28, 0
      %p134 = por %p132, %p133
      %s136 = sadd.s32 %s135, 1
      %p139 = scmp.eq.s32.totalorder %s22, 1
      %p140 = scmp.ne.s32.totalorder %s135, %s137
      %p141 = scmp.eq.s32.totalorder %s22, 0
      %p142 = por %p140, %p141
      %p143 = scmp.ne.s32.totalorder %s135, %s137
      %p144 = scmp.eq.s32.totalorder %s27, 1
      %p145 = por %p143, %p144
      %p146 = scmp.ne.s32.totalorder %s137, %s138
      %p147 = scmp.eq.s32.totalorder %s27, 0
      %p148 = por %p146, %p147
      %p149 = scmp.ne.s32.totalorder %s137, %s138
      %p150 = scmp.eq.s32.totalorder %s28, 1
      %p151 = por %p149, %p150
      %p153 = scmp.ne.s32.totalorder %s138, %s152
      %p154 = scmp.eq.s32.totalorder %s28, 0
      %p155 = por %p153, %p154
      %s157 = sadd.s32 %s156, 1
      %p160 = scmp.eq.s32.totalorder %s22, 1
      %p161 = scmp.ne.s32.totalorder %s156, %s158
      %p162 = scmp.eq.s32.totalorder %s22, 0
      %p163 = por %p161, %p162
      %p164 = scmp.ne.s32.totalorder %s156, %s158
      %p165 = scmp.eq.s32.totalorder %s27, 1
      %p166 = por %p164, %p165
      %p167 = scmp.ne.s32.totalorder %s158, %s159
      %p168 = scmp.eq.s32.totalorder %s27, 0
      %p169 = por %p167, %p168
      %p170 = scmp.ne.s32.totalorder %s158, %s159
      %p171 = scmp.eq.s32.totalorder %s28, 1
      %p172 = por %p170, %p171
      %p174 = scmp.ne.s32.totalorder %s159, %s173
      %p175 = scmp.eq.s32.totalorder %s28, 0
      %p176 = por %p174, %p175
      %s177 = ssub.s32 %s22, %s29
      %p178 = scmp.eq.s32.totalorder %s177, 0
      %s180 = sadd.s32 %s179, 1
      %s181 = scalar_select %p178, %s179, %s180
      %p184 = pneg %p178
      %p185 = scmp.eq.s32.totalorder %s22, 1
      %p186 = por %p184, %p185
      %p187 = scmp.ne.s32.totalorder %s179, %s182
      %p188 = scmp.eq.s32.totalorder %s22, 0
      %p189 = por %p187, %p188
      %p190 = scmp.ne.s32.totalorder %s179, %s182
      %p191 = scmp.eq.s32.totalorder %s27, 1
      %p192 = por %p190, %p191
      %p193 = scmp.ne.s32.totalorder %s182, %s183
      %p194 = scmp.eq.s32.totalorder %s27, 0
      %p195 = por %p193, %p194
      %p196 = scmp.ne.s32.totalorder %s182, %s183
      %p197 = scmp.eq.s32.totalorder %s28, 1
      %p198 = por %p196, %p197
      %p200 = scmp.ne.s32.totalorder %s183, %s199
      %p201 = scmp.eq.s32.totalorder %s28, 0
      %p202 = por %p200, %p201
      %s203 = ssub.s32 %s22, %s29
      %p204 = scmp.eq.s32.totalorder %s203, 0
      %s206 = sadd.s32 %s205, 1
      %s207 = scalar_select %p204, %s205, %s206
      %p210 = pneg %p204
      %p211 = scmp.eq.s32.totalorder %s22, 1
      %p212 = por %p210, %p211
      %p213 = scmp.ne.s32.totalorder %s205, %s208
      %p214 = scmp.eq.s32.totalorder %s22, 0
      %p215 = por %p213, %p214
      %p216 = scmp.ne.s32.totalorder %s205, %s208
      %p217 = scmp.eq.s32.totalorder %s27, 1
      %p218 = por %p216, %p217
      %p219 = scmp.ne.s32.totalorder %s208, %s209
      %p220 = scmp.eq.s32.totalorder %s27, 0
      %p221 = por %p219, %p220
      %p222 = scmp.ne.s32.totalorder %s208, %s209
      %p223 = scmp.eq.s32.totalorder %s28, 1
      %p224 = por %p222, %p223
      %p226 = scmp.ne.s32.totalorder %s209, %s225
      %p227 = scmp.eq.s32.totalorder %s28, 0
      %p228 = por %p226, %p227
      %s229 = ssub.s32 %s22, %s29
      %p230 = scmp.eq.s32.totalorder %s229, 0
      %s232 = sadd.s32 %s231, 1
      %s233 = scalar_select %p230, %s231, %s232
      %p236 = pneg %p230
      %p237 = scmp.eq.s32.totalorder %s22, 1
      %p238 = por %p236, %p237
      %p239 = scmp.ne.s32.totalorder %s231, %s234
      %p240 = scmp.eq.s32.totalorder %s22, 0
      %p241 = por %p239, %p240
      %p242 = scmp.ne.s32.totalorder %s231, %s234
      %p243 = scmp.eq.s32.totalorder %s27, 1
      %p244 = por %p242, %p243
      %p245 = scmp.ne.s32.totalorder %s234, %s235
      %p246 = scmp.eq.s32.totalorder %s27, 0
      %p247 = por %p245, %p246
      %p248 = scmp.ne.s32.totalorder %s234, %s235
      %p249 = scmp.eq.s32.totalorder %s28, 1
      %p250 = por %p248, %p249
      %p252 = scmp.ne.s32.totalorder %s235, %s251
      %p253 = scmp.eq.s32.totalorder %s28, 0
      %p254 = por %p252, %p253
      %s255 = ssub.s32 %s22, %s29
      %p256 = scmp.eq.s32.totalorder %s255, 0
      %s258 = sadd.s32 %s257, 1
      %s259 = scalar_select %p256, %s257, %s258
      %p262 = pneg %p256
      %p263 = scmp.eq.s32.totalorder %s22, 1
      %p264 = por %p262, %p263
      %p265 = scmp.ne.s32.totalorder %s257, %s260
      %p266 = scmp.eq.s32.totalorder %s22, 0
      %p267 = por %p265, %p266
      %p268 = scmp.ne.s32.totalorder %s257, %s260
      %p269 = scmp.eq.s32.totalorder %s27, 1
      %p270 = por %p268, %p269
      %p271 = scmp.ne.s32.totalorder %s260, %s261
      %p272 = scmp.eq.s32.totalorder %s27, 0
      %p273 = por %p271, %p272
      %p274 = scmp.ne.s32.totalorder %s260, %s261
      %p275 = scmp.eq.s32.totalorder %s28, 1
      %p276 = por %p274, %p275
      %p278 = scmp.ne.s32.totalorder %s261, %s277
      %p279 = scmp.eq.s32.totalorder %s28, 0
      %p280 = por %p278, %p279
      %p281 = scmp.le.s32.totalorder 1, %s22
      %p282 = scmp.lt.s32.totalorder %s22, 3
      %p283 = pnand %p281, %p282
      %p284 = pneg %p283
      // Predicated region
      $region9: #{cutout_net_forward.1} parent=5 // pred_check
        _
      $region10: #{cutout_net_forward.1} parent=5 // pred_check_branch
        %286 = sbr.rel (%p283) target = $region12
      $region11: #{cutout_net_forward.1} parent=5 // pred_region
        %s287 = ssub.s32 %s22, 1
        // Predicated region
        $region13: #{cutout_net_forward.1} parent=11 // pred_check
          %p288 = pneg %p43
        $region14: #{cutout_net_forward.1} parent=11 // pred_check_branch
          %290 = sbr.rel (%p288) target = $region16
        $region15: #{cutout_net_forward.1} parent=11 // pred_region
          _
        $region16: #{cutout_net_forward.1} parent=11 // pred_fallthru
          _
        // Predicated region
        $region17: #{cutout_net_forward.1} parent=11 // pred_check
          %p291 = pneg %p64
        $region18: #{cutout_net_forward.1} parent=11 // pred_check_branch
          %293 = sbr.rel (%p291) target = $region20
        $region19: #{cutout_net_forward.1} parent=11 // pred_region
          %s295 = ssub.s32 16, 16
          %296 = vsyncadd [#allocation5], %s295
          %s298 = sshll.u32 %s1, 4
          %s299 = int_to_ptr.vmem [resolvable:$true] %s298
          %301 = dma.vmem_to_smem %s299, 16, [#allocation4], [#allocation5]
        $region20: #{cutout_net_forward.1} parent=11 // pred_fallthru
          _
        // Predicated region
        $region21: #{cutout_net_forward.1} parent=11 // pred_check
          %p302 = pneg %p85
        $region22: #{cutout_net_forward.1} parent=11 // pred_check_branch
          %304 = sbr.rel (%p302) target = $region24
        $region23: #{cutout_net_forward.1} parent=11 // pred_region
          %s306 = ssub.s32 16, 16
          %307 = vsyncadd [#allocation7], %s306
          %s309 = sshll.u32 %s2, 4
          %s310 = int_to_ptr.vmem [resolvable:$true] %s309
          %312 = dma.vmem_to_smem %s310, 16, [#allocation6], [#allocation7]
        $region24: #{cutout_net_forward.1} parent=11 // pred_fallthru
          _
        // Predicated region
        $region25: #{cutout_net_forward.1} parent=11 // pred_check
          %p313 = pneg %p106
        $region26: #{cutout_net_forward.1} parent=11 // pred_check_branch
          %315 = sbr.rel (%p313) target = $region28
        $region27: #{cutout_net_forward.1} parent=11 // pred_region
          %s317 = ssub.s32 16, 16
          %318 = vsyncadd [#allocation7], %s317
          %s320 = sshll.u32 %s3, 4
          %s321 = int_to_ptr.vmem [resolvable:$true] %s320
          %323 = dma.vmem_to_smem %s321, 16, [#allocation8], [#allocation7]
        $region28: #{cutout_net_forward.1} parent=11 // pred_fallthru
          _
        // Predicated region
        $region29: #{cutout_net_forward.1} parent=11 // pred_check
          %p324 = pneg %p127
        $region30: #{cutout_net_forward.1} parent=11 // pred_check_branch
          %326 = sbr.rel (%p324) target = $region32
        $region31: #{cutout_net_forward.1} parent=11 // pred_region
          _
        $region32: #{cutout_net_forward.1} parent=11 // pred_fallthru
          _
        // Predicated region
        $region33: #{cutout_net_forward.1} parent=11 // pred_check
          %p327 = pneg %p148
        $region34: #{cutout_net_forward.1} parent=11 // pred_check_branch
          %329 = sbr.rel (%p327) target = $region36
        $region35: #{cutout_net_forward.1} parent=11 // pred_region
          %s331 = ssub.s32 16, 16
          %332 = vsyncadd [#allocation10], %s331
          %s334 = sshll.u32 %s5, 4
          %s335 = int_to_ptr.vmem [resolvable:$true] %s334
          %337 = dma.vmem_to_smem %s335, 16, [#allocation9], [#allocation10]
        $region36: #{cutout_net_forward.1} parent=11 // pred_fallthru
          _
        // Predicated region
        $region37: #{cutout_net_forward.1} parent=11 // pred_check
          %p338 = pneg %p169
        $region38: #{cutout_net_forward.1} parent=11 // pred_check_branch
          %340 = sbr.rel (%p338) target = $region40
        $region39: #{cutout_net_forward.1} parent=11 // pred_region
          _
        $region40: #{cutout_net_forward.1} parent=11 // pred_fallthru
          _
      $region12: #{cutout_net_forward.1} parent=5 // pred_fallthru
        _
      %p341 = scmp.lt.s32.totalorder %s22, 2
      // Predicated region
      $region41: #{cutout_net_forward.1} parent=5 // pred_check
        %p342 = pneg %p341
      $region42: #{cutout_net_forward.1} parent=5 // pred_check_branch
        %344 = sbr.rel (%p342) target = $region44
      $region43: #{cutout_net_forward.1} parent=5 // pred_region
        _
      $region44: #{cutout_net_forward.1} parent=5 // pred_fallthru
        _
      %p345 = scmp.le.s32.totalorder 1, %s22
      %p346 = scmp.lt.s32.totalorder %s22, 3
      %p347 = pnand %p345, %p346
      %p348 = pneg %p347
      // Predicated region
      $region45: #{cutout_net_forward.1} parent=5 // pred_check
        _
      $region46: #{cutout_net_forward.1} parent=5 // pred_check_branch
        %350 = sbr.rel (%p347) target = $region48
      $region47: #{cutout_net_forward.1} parent=5 // pred_region
        %s351 = ssub.s32 %s22, 1
        // Predicated region
        $region49: #{cutout_net_forward.1} parent=47 // pred_check
          %p352 = pneg %p64
        $region50: #{cutout_net_forward.1} parent=47 // pred_check_branch
          %354 = sbr.rel (%p352) target = $region52
        $region51: #{cutout_net_forward.1} parent=47 // pred_region
          %355 = dma.done [#allocation5], 16
        $region52: #{cutout_net_forward.1} parent=47 // pred_fallthru
          _
        // Predicated region
        $region53: #{cutout_net_forward.1} parent=47 // pred_check
          %p356 = pneg %p85
        $region54: #{cutout_net_forward.1} parent=47 // pred_check_branch
          %358 = sbr.rel (%p356) target = $region56
        $region55: #{cutout_net_forward.1} parent=47 // pred_region
          %359 = dma.done [#allocation7], 16
        $region56: #{cutout_net_forward.1} parent=47 // pred_fallthru
          _
        // Predicated region
        $region57: #{cutout_net_forward.1} parent=47 // pred_check
          %p360 = pneg %p106
        $region58: #{cutout_net_forward.1} parent=47 // pred_check_branch
          %362 = sbr.rel (%p360) target = $region60
        $region59: #{cutout_net_forward.1} parent=47 // pred_region
          %363 = dma.done [#allocation7], 16
        $region60: #{cutout_net_forward.1} parent=47 // pred_fallthru
          _
        // Predicated region
        $region61: #{cutout_net_forward.1} parent=47 // pred_check
          %p364 = pneg %p148
        $region62: #{cutout_net_forward.1} parent=47 // pred_check_branch
          %366 = sbr.rel (%p364) target = $region64
        $region63: #{cutout_net_forward.1} parent=47 // pred_region
          %367 = dma.done [#allocation10], 16
        $region64: #{cutout_net_forward.1} parent=47 // pred_fallthru
          _
        %368 = sfence
        %p369 = pneg %p43
        %p370 = pneg %p40
        %p371 = pneg %p64
        %p372 = pneg %p61
        %p373 = pneg %p85
        %p374 = pneg %p82
        %p375 = pneg %p106
        %p376 = pneg %p103
        %p377 = pneg %p127
        %p378 = pneg %p124
        %p379 = pneg %p148
        %p380 = pneg %p145
        %p381 = pneg %p169
        %p382 = pneg %p166
        %p383 = pneg %p195
        %p384 = pneg %p192
        %s385 = sand.u32 %s182, 1
        %s386 = sand.u32 %s182, 1
        %s387 = smul.addr %s386, 24
        %s388 = scalar_lea.vmem [#allocation11], %s387
        %p389 = pneg %p221
        %p390 = pneg %p218
        %p391 = scmp.lt.s32.totalorder %s27, 1
        %s392 = scalar_select %p391, %s27, 1
        %s393 = smul.addr %s392, 8
        %s394 = scalar_lea.vmem %s8, %s393
        %p395 = pneg %p247
        %p396 = pneg %p244
        %p397 = scmp.lt.s32.totalorder %s27, 1
        %s398 = scalar_select %p397, %s27, 1
        %s399 = smul.addr %s398, 8
        %s400 = scalar_lea.vmem %s9, %s399
        %p401 = pneg %p273
        %p402 = pneg %p270
        %s403 = sand.u32 %s260, 1
        %s404 = sand.u32 %s260, 1
        %s405 = smul.addr %s404, 32
        %s406 = scalar_lea.vmem [#allocation12], %s405
        %p407 = scmp.lt.s32.totalorder %s27, 1
        %s408 = scalar_select %p407, %s27, 1
        %s409 = smul.addr %s408, 8
        %s410 = scalar_lea.vmem %s8, %s409
        %p411 = scmp.lt.s32.totalorder %s27, 1
        %s412 = scalar_select %p411, %s27, 1
        %s413 = smul.addr %s412, 8
        %s414 = scalar_lea.vmem %s9, %s413
        %s415 = smul.u32 %s27, 8
        %s416 = scalar_lea.vmem %s0, %s415
        %v417 = vld [vmem:[%s416] sm:$0xff]
        %v418 = vld [vmem:[%s416 + $0x8] sm:$0xff]
        %v419 = vld [vmem:[%s416 + $0x10] sm:$0xff]
        %s420 = sadd.s32 %s415, 32
        %s421 = scalar_lea.vmem %s0, %s420
        %v422 = vld [vmem:[%s421] sm:$0xff]
        %v423 = vld [vmem:[%s421 + $0x8] sm:$0xff]
        %v424 = vld [vmem:[%s421 + $0x10] sm:$0xff]
        %s425 = sadd.s32 %s415, 64
        %s426 = scalar_lea.vmem %s0, %s425
        %v427 = vld [vmem:[%s426] sm:$0xff]
        %v428 = vld [vmem:[%s426 + $0x8] sm:$0xff]
        %v429 = vld [vmem:[%s426 + $0x10] sm:$0xff]
        %v430 = vrot.slane %v417, 7
        %v431 = vrot.slane %v418, 7
        %v432 = vrot.slane %v419, 7
        %v433 = vlaneseq
        %v434 = vshrl.u32 %v433, 7
        %vm435 = vcmp.lt.s32.totalorder %v434, 1
        %v436 = vsel %vm435, %v431, %v432
        %v437 = vsel %vm435, %v430, %v431
        %v438 = vsel %vm435, %v432, %v430
        %439 = vrot.lane.b32.xlu0 %v438, 1
        %v440 = vpop.permute.xlu0 %439
        %441 = vrot.lane.b32.xlu0 %v437, 1
        %v442 = vpop.permute.xlu0 %441
        %443 = vrot.lane.b32.xlu0 %v436, 1
        %v444 = vpop.permute.xlu0 %443
        %s445 = sld [smem:[#allocation4]]
        %v446 = vstv %s445
        %v447 = vmul.f32 %v446, %v440
        %v448 = vmul.f32 %v446, %v442
        %v449 = vmul.f32 %v446, %v444
        %s450 = sld [smem:[#allocation4 + $0x1b]]
        %v451 = vstv %s450
        %v452 = vmul.f32 %v451, %v440
        %v453 = vmul.f32 %v451, %v442
        %v454 = vmul.f32 %v451, %v444
        %s455 = sld [smem:[#allocation4 + $0x36]]
        %v456 = vstv %s455
        %v457 = vmul.f32 %v456, %v440
        %v458 = vmul.f32 %v456, %v442
        %v459 = vmul.f32 %v456, %v444
        %s460 = sld [smem:[#allocation4 + $0x1]]
        %v461 = vstv %s460
        %v462 = vmul.f32 %v461, %v438
        %v463 = vmul.f32 %v461, %v437
        %v464 = vmul.f32 %v461, %v436
        %v465 = vadd.f32 %v447, %v462
        %v466 = vadd.f32 %v448, %v463
        %v467 = vadd.f32 %v449, %v464
        %s468 = sld [smem:[#allocation4 + $0x1c]]
        %v469 = vstv %s468
        %v470 = vmul.f32 %v469, %v438
        %v471 = vmul.f32 %v469, %v437
        %v472 = vmul.f32 %v469, %v436
        %v473 = vadd.f32 %v452, %v470
        %v474 = vadd.f32 %v453, %v471
        %v475 = vadd.f32 %v454, %v472
        %s476 = sld [smem:[#allocation4 + $0x37]]
        %v477 = vstv %s476
        %v478 = vmul.f32 %v477, %v438
        %v479 = vmul.f32 %v477, %v437
        %v480 = vmul.f32 %v477, %v436
        %v481 = vadd.f32 %v457, %v478
        %v482 = vadd.f32 %v458, %v479
        %v483 = vadd.f32 %v459, %v480
        %484 = vrot.lane.b32.xlu0 %v438, 127
        %v485 = vpop.permute.xlu0 %484
        %486 = vrot.lane.b32.xlu0 %v437, 127
        %v487 = vpop.permute.xlu0 %486
        %488 = vrot.lane.b32.xlu0 %v436, 127
        %v489 = vpop.permute.xlu0 %488
        %s490 = sld [smem:[#allocation4 + $0x2]]
        %v491 = vstv %s490
        %v492 = vmul.f32 %v491, %v485
        %v493 = vmul.f32 %v491, %v487
        %v494 = vmul.f32 %v491, %v489
        %v495 = vadd.f32 %v465, %v492
        %v496 = vadd.f32 %v466, %v493
        %v497 = vadd.f32 %v467, %v494
        %s498 = sld [smem:[#allocation4 + $0x1d]]
        %v499 = vstv %s498
        %v500 = vmul.f32 %v499, %v485
        %v501 = vmul.f32 %v499, %v487
        %v502 = vmul.f32 %v499, %v489
        %v503 = vadd.f32 %v473, %v500
        %v504 = vadd.f32 %v474, %v501
        %v505 = vadd.f32 %v475, %v502
        %s506 = sld [smem:[#allocation4 + $0x38]]
        %v507 = vstv %s506
        %v508 = vmul.f32 %v507, %v485
        %v509 = vmul.f32 %v507, %v487
        %v510 = vmul.f32 %v507, %v489
        %v511 = vadd.f32 %v481, %v508
        %v512 = vadd.f32 %v482, %v509
        %v513 = vadd.f32 %v483, %v510
        %514 = vrot.lane.b32.xlu0 %v417, 1
        %v515 = vpop.permute.xlu0 %514
        %516 = vrot.lane.b32.xlu0 %v418, 1
        %v517 = vpop.permute.xlu0 %516
        %518 = vrot.lane.b32.xlu0 %v419, 1
        %v519 = vpop.permute.xlu0 %518
        %s520 = sld [smem:[#allocation4 + $0x3]]
        %v521 = vstv %s520
        %v522 = vmul.f32 %v521, %v515
        %v523 = vmul.f32 %v521, %v517
        %v524 = vmul.f32 %v521, %v519
        %v525 = vadd.f32 %v495, %v522
        %v526 = vadd.f32 %v496, %v523
        %v527 = vadd.f32 %v497, %v524
        %s528 = sld [smem:[#allocation4 + $0x1e]]
        %v529 = vstv %s528
        %v530 = vmul.f32 %v529, %v515
        %v531 = vmul.f32 %v529, %v517
        %v532 = vmul.f32 %v529, %v519
        %v533 = vadd.f32 %v503, %v530
        %v534 = vadd.f32 %v504, %v531
        %v535 = vadd.f32 %v505, %v532
        %s536 = sld [smem:[#allocation4 + $0x39]]
        %v537 = vstv %s536
        %v538 = vmul.f32 %v537, %v515
        %v539 = vmul.f32 %v537, %v517
        %v540 = vmul.f32 %v537, %v519
        %v541 = vadd.f32 %v511, %v538
        %v542 = vadd.f32 %v512, %v539
        %v543 = vadd.f32 %v513, %v540
        %s544 = sld [smem:[#allocation4 + $0x4]]
        %v545 = vstv %s544
        %v546 = vmul.f32 %v545, %v417
        %v547 = vmul.f32 %v545, %v418
        %v548 = vmul.f32 %v545, %v419
        %v549 = vadd.f32 %v525, %v546
        %v550 = vadd.f32 %v526, %v547
        %v551 = vadd.f32 %v527, %v548
        %s552 = sld [smem:[#allocation4 + $0x1f]]
        %v553 = vstv %s552
        %v554 = vmul.f32 %v553, %v417
        %v555 = vmul.f32 %v553, %v418
        %v556 = vmul.f32 %v553, %v419
        %v557 = vadd.f32 %v533, %v554
        %v558 = vadd.f32 %v534, %v555
        %v559 = vadd.f32 %v535, %v556
        %s560 = sld [smem:[#allocation4 + $0x3a]]
        %v561 = vstv %s560
        %v562 = vmul.f32 %v561, %v417
        %v563 = vmul.f32 %v561, %v418
        %v564 = vmul.f32 %v561, %v419
        %v565 = vadd.f32 %v541, %v562
        %v566 = vadd.f32 %v542, %v563
        %v567 = vadd.f32 %v543, %v564
        %568 = vrot.lane.b32.xlu0 %v417, 127
        %v569 = vpop.permute.xlu0 %568
        %570 = vrot.lane.b32.xlu0 %v418, 127
        %v571 = vpop.permute.xlu0 %570
        %572 = vrot.lane.b32.xlu0 %v419, 127
        %v573 = vpop.permute.xlu0 %572
        %s574 = sld [smem:[#allocation4 + $0x5]]
        %v575 = vstv %s574
        %v576 = vmul.f32 %v575, %v569
        %v577 = vmul.f32 %v575, %v571
        %v578 = vmul.f32 %v575, %v573
        %v579 = vadd.f32 %v549, %v576
        %v580 = vadd.f32 %v550, %v577
        %v581 = vadd.f32 %v551, %v578
        %s582 = sld [smem:[#allocation4 + $0x20]]
        %v583 = vstv %s582
        %v584 = vmul.f32 %v583, %v569
        %v585 = vmul.f32 %v583, %v571
        %v586 = vmul.f32 %v583, %v573
        %v587 = vadd.f32 %v557, %v584
        %v588 = vadd.f32 %v558, %v585
        %v589 = vadd.f32 %v559, %v586
        %s590 = sld [smem:[#allocation4 + $0x3b]]
        %v591 = vstv %s590
        %v592 = vmul.f32 %v591, %v569
        %v593 = vmul.f32 %v591, %v571
        %v594 = vmul.f32 %v591, %v573
        %v595 = vadd.f32 %v565, %v592
        %v596 = vadd.f32 %v566, %v593
        %v597 = vadd.f32 %v567, %v594
        %v598 = vrot.slane %v417, 1
        %v599 = vrot.slane %v418, 1
        %v600 = vrot.slane %v419, 1
        %vm601 = vcmp.lt.s32.totalorder %v434, 7
        %v602 = vsel %vm601, %v599, %v600
        %v603 = vsel %vm601, %v598, %v599
        %v604 = vsel %vm601, %v600, %v598
        %605 = vrot.lane.b32.xlu0 %v603, 1
        %v606 = vpop.permute.xlu0 %605
        %607 = vrot.lane.b32.xlu0 %v602, 1
        %v608 = vpop.permute.xlu0 %607
        %609 = vrot.lane.b32.xlu0 %v604, 1
        %v610 = vpop.permute.xlu0 %609
        %s611 = sld [smem:[#allocation4 + $0x6]]
        %v612 = vstv %s611
        %v613 = vmul.f32 %v612, %v606
        %v614 = vmul.f32 %v612, %v608
        %v615 = vmul.f32 %v612, %v610
        %v616 = vadd.f32 %v579, %v613
        %v617 = vadd.f32 %v580, %v614
        %v618 = vadd.f32 %v581, %v615
        %s619 = sld [smem:[#allocation4 + $0x21]]
        %v620 = vstv %s619
        %v621 = vmul.f32 %v620, %v606
        %v622 = vmul.f32 %v620, %v608
        %v623 = vmul.f32 %v620, %v610
        %v624 = vadd.f32 %v587, %v621
        %v625 = vadd.f32 %v588, %v622
        %v626 = vadd.f32 %v589, %v623
        %s627 = sld [smem:[#allocation4 + $0x3c]]
        %v628 = vstv %s627
        %v629 = vmul.f32 %v628, %v606
        %v630 = vmul.f32 %v628, %v608
        %v631 = vmul.f32 %v628, %v610
        %v632 = vadd.f32 %v595, %v629
        %v633 = vadd.f32 %v596, %v630
        %v634 = vadd.f32 %v597, %v631
        %s635 = sld [smem:[#allocation4 + $0x7]]
        %v636 = vstv %s635
        %v637 = vmul.f32 %v636, %v603
        %v638 = vmul.f32 %v636, %v602
        %v639 = vmul.f32 %v636, %v604
        %v640 = vadd.f32 %v616, %v637
        %v641 = vadd.f32 %v617, %v638
        %v642 = vadd.f32 %v618, %v639
        %s643 = sld [smem:[#allocation4 + $0x22]]
        %v644 = vstv %s643
        %v645 = vmul.f32 %v644, %v603
        %v646 = vmul.f32 %v644, %v602
        %v647 = vmul.f32 %v644, %v604
        %v648 = vadd.f32 %v624, %v645
        %v649 = vadd.f32 %v625, %v646
        %v650 = vadd.f32 %v626, %v647
        %s651 = sld [smem:[#allocation4 + $0x3d]]
        %v652 = vstv %s651
        %v653 = vmul.f32 %v652, %v603
        %v654 = vmul.f32 %v652, %v602
        %v655 = vmul.f32 %v652, %v604
        %v656 = vadd.f32 %v632, %v653
        %v657 = vadd.f32 %v633, %v654
        %v658 = vadd.f32 %v634, %v655
        %659 = vrot.lane.b32.xlu0 %v603, 127
        %v660 = vpop.permute.xlu0 %659
        %661 = vrot.lane.b32.xlu0 %v602, 127
        %v662 = vpop.permute.xlu0 %661
        %663 = vrot.lane.b32.xlu0 %v604, 127
        %v664 = vpop.permute.xlu0 %663
        %s665 = sld [smem:[#allocation4 + $0x8]]
        %v666 = vstv %s665
        %v667 = vmul.f32 %v666, %v660
        %v668 = vmul.f32 %v666, %v662
        %v669 = vmul.f32 %v666, %v664
        %v670 = vadd.f32 %v640, %v667
        %v671 = vadd.f32 %v641, %v668
        %v672 = vadd.f32 %v642, %v669
        %s673 = sld [smem:[#allocation4 + $0x23]]
        %v674 = vstv %s673
        %v675 = vmul.f32 %v674, %v660
        %v676 = vmul.f32 %v674, %v662
        %v677 = vmul.f32 %v674, %v664
        %v678 = vadd.f32 %v648, %v675
        %v679 = vadd.f32 %v649, %v676
        %v680 = vadd.f32 %v650, %v677
        %s681 = sld [smem:[#allocation4 + $0x3e]]
        %v682 = vstv %s681
        %v683 = vmul.f32 %v682, %v660
        %v684 = vmul.f32 %v682, %v662
        %v685 = vmul.f32 %v682, %v664
        %v686 = vadd.f32 %v656, %v683
        %v687 = vadd.f32 %v657, %v684
        %v688 = vadd.f32 %v658, %v685
        %v689 = vrot.slane %v422, 7
        %v690 = vrot.slane %v423, 7
        %v691 = vrot.slane %v424, 7
        %v692 = vsel %vm435, %v690, %v691
        %v693 = vsel %vm435, %v689, %v690
        %v694 = vsel %vm435, %v691, %v689
        %695 = vrot.lane.b32.xlu0 %v694, 1
        %v696 = vpop.permute.xlu0 %695
        %697 = vrot.lane.b32.xlu0 %v693, 1
        %v698 = vpop.permute.xlu0 %697
        %699 = vrot.lane.b32.xlu0 %v692, 1
        %v700 = vpop.permute.xlu0 %699
        %s701 = sld [smem:[#allocation4 + $0x9]]
        %v702 = vstv %s701
        %v703 = vmul.f32 %v702, %v696
        %v704 = vmul.f32 %v702, %v698
        %v705 = vmul.f32 %v702, %v700
        %v706 = vadd.f32 %v670, %v703
        %v707 = vadd.f32 %v671, %v704
        %v708 = vadd.f32 %v672, %v705
        %s709 = sld [smem:[#allocation4 + $0x24]]
        %v710 = vstv %s709
        %v711 = vmul.f32 %v710, %v696
        %v712 = vmul.f32 %v710, %v698
        %v713 = vmul.f32 %v710, %v700
        %v714 = vadd.f32 %v678, %v711
        %v715 = vadd.f32 %v679, %v712
        %v716 = vadd.f32 %v680, %v713
        %s717 = sld [smem:[#allocation4 + $0x3f]]
        %v718 = vstv %s717
        %v719 = vmul.f32 %v718, %v696
        %v720 = vmul.f32 %v718, %v698
        %v721 = vmul.f32 %v718, %v700
        %v722 = vadd.f32 %v686, %v719
        %v723 = vadd.f32 %v687, %v720
        %v724 = vadd.f32 %v688, %v721
        %s725 = sld [smem:[#allocation4 + $0xa]]
        %v726 = vstv %s725
        %v727 = vmul.f32 %v726, %v694
        %v728 = vmul.f32 %v726, %v693
        %v729 = vmul.f32 %v726, %v692
        %v730 = vadd.f32 %v706, %v727
        %v731 = vadd.f32 %v707, %v728
        %v732 = vadd.f32 %v708, %v729
        %s733 = sld [smem:[#allocation4 + $0x25]]
        %v734 = vstv %s733
        %v735 = vmul.f32 %v734, %v694
        %v736 = vmul.f32 %v734, %v693
        %v737 = vmul.f32 %v734, %v692
        %v738 = vadd.f32 %v714, %v735
        %v739 = vadd.f32 %v715, %v736
        %v740 = vadd.f32 %v716, %v737
        %s741 = sld [smem:[#allocation4 + $0x40]]
        %v742 = vstv %s741
        %v743 = vmul.f32 %v742, %v694
        %v744 = vmul.f32 %v742, %v693
        %v745 = vmul.f32 %v742, %v692
        %v746 = vadd.f32 %v722, %v743
        %v747 = vadd.f32 %v723, %v744
        %v748 = vadd.f32 %v724, %v745
        %749 = vrot.lane.b32.xlu0 %v694, 127
        %v750 = vpop.permute.xlu0 %749
        %751 = vrot.lane.b32.xlu0 %v693, 127
        %v752 = vpop.permute.xlu0 %751
        %753 = vrot.lane.b32.xlu0 %v692, 127
        %v754 = vpop.permute.xlu0 %753
        %s755 = sld [smem:[#allocation4 + $0xb]]
        %v756 = vstv %s755
        %v757 = vmul.f32 %v756, %v750
        %v758 = vmul.f32 %v756, %v752
        %v759 = vmul.f32 %v756, %v754
        %v760 = vadd.f32 %v730, %v757
        %v761 = vadd.f32 %v731, %v758
        %v762 = vadd.f32 %v732, %v759
        %s763 = sld [smem:[#allocation4 + $0x26]]
        %v764 = vstv %s763
        %v765 = vmul.f32 %v764, %v750
        %v766 = vmul.f32 %v764, %v752
        %v767 = vmul.f32 %v764, %v754
        %v768 = vadd.f32 %v738, %v765
        %v769 = vadd.f32 %v739, %v766
        %v770 = vadd.f32 %v740, %v767
        %s771 = sld [smem:[#allocation4 + $0x41]]
        %v772 = vstv %s771
        %v773 = vmul.f32 %v772, %v750
        %v774 = vmul.f32 %v772, %v752
        %v775 = vmul.f32 %v772, %v754
        %v776 = vadd.f32 %v746, %v773
        %v777 = vadd.f32 %v747, %v774
        %v778 = vadd.f32 %v748, %v775
        %779 = vrot.lane.b32.xlu0 %v422, 1
        %v780 = vpop.permute.xlu0 %779
        %781 = vrot.lane.b32.xlu0 %v423, 1
        %v782 = vpop.permute.xlu0 %781
        %783 = vrot.lane.b32.xlu0 %v424, 1
        %v784 = vpop.permute.xlu0 %783
        %s785 = sld [smem:[#allocation4 + $0xc]]
        %v786 = vstv %s785
        %v787 = vmul.f32 %v786, %v780
        %v788 = vmul.f32 %v786, %v782
        %v789 = vmul.f32 %v786, %v784
        %v790 = vadd.f32 %v760, %v787
        %v791 = vadd.f32 %v761, %v788
        %v792 = vadd.f32 %v762, %v789
        %s793 = sld [smem:[#allocation4 + $0x27]]
        %v794 = vstv %s793
        %v795 = vmul.f32 %v794, %v780
        %v796 = vmul.f32 %v794, %v782
        %v797 = vmul.f32 %v794, %v784
        %v798 = vadd.f32 %v768, %v795
        %v799 = vadd.f32 %v769, %v796
        %v800 = vadd.f32 %v770, %v797
        %s801 = sld [smem:[#allocation4 + $0x42]]
        %v802 = vstv %s801
        %v803 = vmul.f32 %v802, %v780
        %v804 = vmul.f32 %v802, %v782
        %v805 = vmul.f32 %v802, %v784
        %v806 = vadd.f32 %v776, %v803
        %v807 = vadd.f32 %v777, %v804
        %v808 = vadd.f32 %v778, %v805
        %s809 = sld [smem:[#allocation4 + $0xd]]
        %v810 = vstv %s809
        %v811 = vmul.f32 %v810, %v422
        %v812 = vmul.f32 %v810, %v423
        %v813 = vmul.f32 %v810, %v424
        %v814 = vadd.f32 %v790, %v811
        %v815 = vadd.f32 %v791, %v812
        %v816 = vadd.f32 %v792, %v813
        %s817 = sld [smem:[#allocation4 + $0x28]]
        %v818 = vstv %s817
        %v819 = vmul.f32 %v818, %v422
        %v820 = vmul.f32 %v818, %v423
        %v821 = vmul.f32 %v818, %v424
        %v822 = vadd.f32 %v798, %v819
        %v823 = vadd.f32 %v799, %v820
        %v824 = vadd.f32 %v800, %v821
        %s825 = sld [smem:[#allocation4 + $0x43]]
        %v826 = vstv %s825
        %v827 = vmul.f32 %v826, %v422
        %v828 = vmul.f32 %v826, %v423
        %v829 = vmul.f32 %v826, %v424
        %v830 = vadd.f32 %v806, %v827
        %v831 = vadd.f32 %v807, %v828
        %v832 = vadd.f32 %v808, %v829
        %833 = vrot.lane.b32.xlu0 %v422, 127
        %v834 = vpop.permute.xlu0 %833
        %835 = vrot.lane.b32.xlu0 %v423, 127
        %v836 = vpop.permute.xlu0 %835
        %837 = vrot.lane.b32.xlu0 %v424, 127
        %v838 = vpop.permute.xlu0 %837
        %s839 = sld [smem:[#allocation4 + $0xe]]
        %v840 = vstv %s839
        %v841 = vmul.f32 %v840, %v834
        %v842 = vmul.f32 %v840, %v836
        %v843 = vmul.f32 %v840, %v838
        %v844 = vadd.f32 %v814, %v841
        %v845 = vadd.f32 %v815, %v842
        %v846 = vadd.f32 %v816, %v843
        %s847 = sld [smem:[#allocation4 + $0x29]]
        %v848 = vstv %s847
        %v849 = vmul.f32 %v848, %v834
        %v850 = vmul.f32 %v848, %v836
        %v851 = vmul.f32 %v848, %v838
        %v852 = vadd.f32 %v822, %v849
        %v853 = vadd.f32 %v823, %v850
        %v854 = vadd.f32 %v824, %v851
        %s855 = sld [smem:[#allocation4 + $0x44]]
        %v856 = vstv %s855
        %v857 = vmul.f32 %v856, %v834
        %v858 = vmul.f32 %v856, %v836
        %v859 = vmul.f32 %v856, %v838
        %v860 = vadd.f32 %v830, %v857
        %v861 = vadd.f32 %v831, %v858
        %v862 = vadd.f32 %v832, %v859
        %v863 = vrot.slane %v422, 1
        %v864 = vrot.slane %v423, 1
        %v865 = vrot.slane %v424, 1
        %v866 = vsel %vm601, %v864, %v865
        %v867 = vsel %vm601, %v863, %v864
        %v868 = vsel %vm601, %v865, %v863
        %869 = vrot.lane.b32.xlu0 %v867, 1
        %v870 = vpop.permute.xlu0 %869
        %871 = vrot.lane.b32.xlu0 %v866, 1
        %v872 = vpop.permute.xlu0 %871
        %873 = vrot.lane.b32.xlu0 %v868, 1
        %v874 = vpop.permute.xlu0 %873
        %s875 = sld [smem:[#allocation4 + $0xf]]
        %v876 = vstv %s875
        %v877 = vmul.f32 %v876, %v870
        %v878 = vmul.f32 %v876, %v872
        %v879 = vmul.f32 %v876, %v874
        %v880 = vadd.f32 %v844, %v877
        %v881 = vadd.f32 %v845, %v878
        %v882 = vadd.f32 %v846, %v879
        %s883 = sld [smem:[#allocation4 + $0x2a]]
        %v884 = vstv %s883
        %v885 = vmul.f32 %v884, %v870
        %v886 = vmul.f32 %v884, %v872
        %v887 = vmul.f32 %v884, %v874
        %v888 = vadd.f32 %v852, %v885
        %v889 = vadd.f32 %v853, %v886
        %v890 = vadd.f32 %v854, %v887
        %s891 = sld [smem:[#allocation4 + $0x45]]
        %v892 = vstv %s891
        %v893 = vmul.f32 %v892, %v870
        %v894 = vmul.f32 %v892, %v872
        %v895 = vmul.f32 %v892, %v874
        %v896 = vadd.f32 %v860, %v893
        %v897 = vadd.f32 %v861, %v894
        %v898 = vadd.f32 %v862, %v895
        %s899 = sld [smem:[#allocation4 + $0x10]]
        %v900 = vstv %s899
        %v901 = vmul.f32 %v900, %v867
        %v902 = vmul.f32 %v900, %v866
        %v903 = vmul.f32 %v900, %v868
        %v904 = vadd.f32 %v880, %v901
        %v905 = vadd.f32 %v881, %v902
        %v906 = vadd.f32 %v882, %v903
        %s907 = sld [smem:[#allocation4 + $0x2b]]
        %v908 = vstv %s907
        %v909 = vmul.f32 %v908, %v867
        %v910 = vmul.f32 %v908, %v866
        %v911 = vmul.f32 %v908, %v868
        %v912 = vadd.f32 %v888, %v909
        %v913 = vadd.f32 %v889, %v910
        %v914 = vadd.f32 %v890, %v911
        %s915 = sld [smem:[#allocation4 + $0x46]]
        %v916 = vstv %s915
        %v917 = vmul.f32 %v916, %v867
        %v918 = vmul.f32 %v916, %v866
        %v919 = vmul.f32 %v916, %v868
        %v920 = vadd.f32 %v896, %v917
        %v921 = vadd.f32 %v897, %v918
        %v922 = vadd.f32 %v898, %v919
        %923 = vrot.lane.b32.xlu0 %v867, 127
        %v924 = vpop.permute.xlu0 %923
        %925 = vrot.lane.b32.xlu0 %v866, 127
        %v926 = vpop.permute.xlu0 %925
        %927 = vrot.lane.b32.xlu0 %v868, 127
        %v928 = vpop.permute.xlu0 %927
        %s929 = sld [smem:[#allocation4 + $0x11]]
        %v930 = vstv %s929
        %v931 = vmul.f32 %v930, %v924
        %v932 = vmul.f32 %v930, %v926
        %v933 = vmul.f32 %v930, %v928
        %v934 = vadd.f32 %v904, %v931
        %v935 = vadd.f32 %v905, %v932
        %v936 = vadd.f32 %v906, %v933
        %s937 = sld [smem:[#allocation4 + $0x2c]]
        %v938 = vstv %s937
        %v939 = vmul.f32 %v938, %v924
        %v940 = vmul.f32 %v938, %v926
        %v941 = vmul.f32 %v938, %v928
        %v942 = vadd.f32 %v912, %v939
        %v943 = vadd.f32 %v913, %v940
        %v944 = vadd.f32 %v914, %v941
        %s945 = sld [smem:[#allocation4 + $0x47]]
        %v946 = vstv %s945
        %v947 = vmul.f32 %v946, %v924
        %v948 = vmul.f32 %v946, %v926
        %v949 = vmul.f32 %v946, %v928
        %v950 = vadd.f32 %v920, %v947
        %v951 = vadd.f32 %v921, %v948
        %v952 = vadd.f32 %v922, %v949
        %v953 = vrot.slane %v427, 7
        %v954 = vrot.slane %v428, 7
        %v955 = vrot.slane %v429, 7
        %v956 = vsel %vm435, %v954, %v955
        %v957 = vsel %vm435, %v953, %v954
        %v958 = vsel %vm435, %v955, %v953
        %959 = vrot.lane.b32.xlu0 %v958, 1
        %v960 = vpop.permute.xlu0 %959
        %961 = vrot.lane.b32.xlu0 %v957, 1
        %v962 = vpop.permute.xlu0 %961
        %963 = vrot.lane.b32.xlu0 %v956, 1
        %v964 = vpop.permute.xlu0 %963
        %s965 = sld [smem:[#allocation4 + $0x12]]
        %v966 = vstv %s965
        %v967 = vmul.f32 %v966, %v960
        %v968 = vmul.f32 %v966, %v962
        %v969 = vmul.f32 %v966, %v964
        %v970 = vadd.f32 %v934, %v967
        %v971 = vadd.f32 %v935, %v968
        %v972 = vadd.f32 %v936, %v969
        %s973 = sld [smem:[#allocation4 + $0x2d]]
        %v974 = vstv %s973
        %v975 = vmul.f32 %v974, %v960
        %v976 = vmul.f32 %v974, %v962
        %v977 = vmul.f32 %v974, %v964
        %v978 = vadd.f32 %v942, %v975
        %v979 = vadd.f32 %v943, %v976
        %v980 = vadd.f32 %v944, %v977
        %s981 = sld [smem:[#allocation4 + $0x48]]
        %v982 = vstv %s981
        %v983 = vmul.f32 %v982, %v960
        %v984 = vmul.f32 %v982, %v962
        %v985 = vmul.f32 %v982, %v964
        %v986 = vadd.f32 %v950, %v983
        %v987 = vadd.f32 %v951, %v984
        %v988 = vadd.f32 %v952, %v985
        %s989 = sld [smem:[#allocation4 + $0x13]]
        %v990 = vstv %s989
        %v991 = vmul.f32 %v990, %v958
        %v992 = vmul.f32 %v990, %v957
        %v993 = vmul.f32 %v990, %v956
        %v994 = vadd.f32 %v970, %v991
        %v995 = vadd.f32 %v971, %v992
        %v996 = vadd.f32 %v972, %v993
        %s997 = sld [smem:[#allocation4 + $0x2e]]
        %v998 = vstv %s997
        %v999 = vmul.f32 %v998, %v958
        %v1000 = vmul.f32 %v998, %v957
        %v1001 = vmul.f32 %v998, %v956
        %v1002 = vadd.f32 %v978, %v999
        %v1003 = vadd.f32 %v979, %v1000
        %v1004 = vadd.f32 %v980, %v1001
        %s1005 = sld [smem:[#allocation4 + $0x49]]
        %v1006 = vstv %s1005
        %v1007 = vmul.f32 %v1006, %v958
        %v1008 = vmul.f32 %v1006, %v957
        %v1009 = vmul.f32 %v1006, %v956
        %v1010 = vadd.f32 %v986, %v1007
        %v1011 = vadd.f32 %v987, %v1008
        %v1012 = vadd.f32 %v988, %v1009
        %1013 = vrot.lane.b32.xlu0 %v958, 127
        %v1014 = vpop.permute.xlu0 %1013
        %1015 = vrot.lane.b32.xlu0 %v957, 127
        %v1016 = vpop.permute.xlu0 %1015
        %1017 = vrot.lane.b32.xlu0 %v956, 127
        %v1018 = vpop.permute.xlu0 %1017
        %s1019 = sld [smem:[#allocation4 + $0x14]]
        %v1020 = vstv %s1019
        %v1021 = vmul.f32 %v1020, %v1014
        %v1022 = vmul.f32 %v1020, %v1016
        %v1023 = vmul.f32 %v1020, %v1018
        %v1024 = vadd.f32 %v994, %v1021
        %v1025 = vadd.f32 %v995, %v1022
        %v1026 = vadd.f32 %v996, %v1023
        %s1027 = sld [smem:[#allocation4 + $0x2f]]
        %v1028 = vstv %s1027
        %v1029 = vmul.f32 %v1028, %v1014
        %v1030 = vmul.f32 %v1028, %v1016
        %v1031 = vmul.f32 %v1028, %v1018
        %v1032 = vadd.f32 %v1002, %v1029
        %v1033 = vadd.f32 %v1003, %v1030
        %v1034 = vadd.f32 %v1004, %v1031
        %s1035 = sld [smem:[#allocation4 + $0x4a]]
        %v1036 = vstv %s1035
        %v1037 = vmul.f32 %v1036, %v1014
        %v1038 = vmul.f32 %v1036, %v1016
        %v1039 = vmul.f32 %v1036, %v1018
        %v1040 = vadd.f32 %v1010, %v1037
        %v1041 = vadd.f32 %v1011, %v1038
        %v1042 = vadd.f32 %v1012, %v1039
        %1043 = vrot.lane.b32.xlu0 %v427, 1
        %v1044 = vpop.permute.xlu0 %1043
        %1045 = vrot.lane.b32.xlu0 %v428, 1
        %v1046 = vpop.permute.xlu0 %1045
        %1047 = vrot.lane.b32.xlu0 %v429, 1
        %v1048 = vpop.permute.xlu0 %1047
        %s1049 = sld [smem:[#allocation4 + $0x15]]
        %v1050 = vstv %s1049
        %v1051 = vmul.f32 %v1050, %v1044
        %v1052 = vmul.f32 %v1050, %v1046
        %v1053 = vmul.f32 %v1050, %v1048
        %v1054 = vadd.f32 %v1024, %v1051
        %v1055 = vadd.f32 %v1025, %v1052
        %v1056 = vadd.f32 %v1026, %v1053
        %s1057 = sld [smem:[#allocation4 + $0x30]]
        %v1058 = vstv %s1057
        %v1059 = vmul.f32 %v1058, %v1044
        %v1060 = vmul.f32 %v1058, %v1046
        %v1061 = vmul.f32 %v1058, %v1048
        %v1062 = vadd.f32 %v1032, %v1059
        %v1063 = vadd.f32 %v1033, %v1060
        %v1064 = vadd.f32 %v1034, %v1061
        %s1065 = sld [smem:[#allocation4 + $0x4b]]
        %v1066 = vstv %s1065
        %v1067 = vmul.f32 %v1066, %v1044
        %v1068 = vmul.f32 %v1066, %v1046
        %v1069 = vmul.f32 %v1066, %v1048
        %v1070 = vadd.f32 %v1040, %v1067
        %v1071 = vadd.f32 %v1041, %v1068
        %v1072 = vadd.f32 %v1042, %v1069
        %s1073 = sld [smem:[#allocation4 + $0x16]]
        %v1074 = vstv %s1073
        %v1075 = vmul.f32 %v1074, %v427
        %v1076 = vmul.f32 %v1074, %v428
        %v1077 = vmul.f32 %v1074, %v429
        %v1078 = vadd.f32 %v1054, %v1075
        %v1079 = vadd.f32 %v1055, %v1076
        %v1080 = vadd.f32 %v1056, %v1077
        %s1081 = sld [smem:[#allocation4 + $0x31]]
        %v1082 = vstv %s1081
        %v1083 = vmul.f32 %v1082, %v427
        %v1084 = vmul.f32 %v1082, %v428
        %v1085 = vmul.f32 %v1082, %v429
        %v1086 = vadd.f32 %v1062, %v1083
        %v1087 = vadd.f32 %v1063, %v1084
        %v1088 = vadd.f32 %v1064, %v1085
        %s1089 = sld [smem:[#allocation4 + $0x4c]]
        %v1090 = vstv %s1089
        %v1091 = vmul.f32 %v1090, %v427
        %v1092 = vmul.f32 %v1090, %v428
        %v1093 = vmul.f32 %v1090, %v429
        %v1094 = vadd.f32 %v1070, %v1091
        %v1095 = vadd.f32 %v1071, %v1092
        %v1096 = vadd.f32 %v1072, %v1093
        %1097 = vrot.lane.b32.xlu0 %v427, 127
        %v1098 = vpop.permute.xlu0 %1097
        %1099 = vrot.lane.b32.xlu0 %v428, 127
        %v1100 = vpop.permute.xlu0 %1099
        %1101 = vrot.lane.b32.xlu0 %v429, 127
        %v1102 = vpop.permute.xlu0 %1101
        %s1103 = sld [smem:[#allocation4 + $0x17]]
        %v1104 = vstv %s1103
        %v1105 = vmul.f32 %v1104, %v1098
        %v1106 = vmul.f32 %v1104, %v1100
        %v1107 = vmul.f32 %v1104, %v1102
        %v1108 = vadd.f32 %v1078, %v1105
        %v1109 = vadd.f32 %v1079, %v1106
        %v1110 = vadd.f32 %v1080, %v1107
        %s1111 = sld [smem:[#allocation4 + $0x32]]
        %v1112 = vstv %s1111
        %v1113 = vmul.f32 %v1112, %v1098
        %v1114 = vmul.f32 %v1112, %v1100
        %v1115 = vmul.f32 %v1112, %v1102
        %v1116 = vadd.f32 %v1086, %v1113
        %v1117 = vadd.f32 %v1087, %v1114
        %v1118 = vadd.f32 %v1088, %v1115
        %s1119 = sld [smem:[#allocation4 + $0x4d]]
        %v1120 = vstv %s1119
        %v1121 = vmul.f32 %v1120, %v1098
        %v1122 = vmul.f32 %v1120, %v1100
        %v1123 = vmul.f32 %v1120, %v1102
        %v1124 = vadd.f32 %v1094, %v1121
        %v1125 = vadd.f32 %v1095, %v1122
        %v1126 = vadd.f32 %v1096, %v1123
        %v1127 = vrot.slane %v427, 1
        %v1128 = vrot.slane %v428, 1
        %v1129 = vrot.slane %v429, 1
        %v1130 = vsel %vm601, %v1128, %v1129
        %v1131 = vsel %vm601, %v1127, %v1128
        %v1132 = vsel %vm601, %v1129, %v1127
        %1133 = vrot.lane.b32.xlu0 %v1131, 1
        %v1134 = vpop.permute.xlu0 %1133
        %1135 = vrot.lane.b32.xlu0 %v1130, 1
        %v1136 = vpop.permute.xlu0 %1135
        %1137 = vrot.lane.b32.xlu0 %v1132, 1
        %v1138 = vpop.permute.xlu0 %1137
        %s1139 = sld [smem:[#allocation4 + $0x18]]
        %v1140 = vstv %s1139
        %v1141 = vmul.f32 %v1140, %v1134
        %v1142 = vmul.f32 %v1140, %v1136
        %v1143 = vmul.f32 %v1140, %v1138
        %v1144 = vadd.f32 %v1108, %v1141
        %v1145 = vadd.f32 %v1109, %v1142
        %v1146 = vadd.f32 %v1110, %v1143
        %s1147 = sld [smem:[#allocation4 + $0x33]]
        %v1148 = vstv %s1147
        %v1149 = vmul.f32 %v1148, %v1134
        %v1150 = vmul.f32 %v1148, %v1136
        %v1151 = vmul.f32 %v1148, %v1138
        %v1152 = vadd.f32 %v1116, %v1149
        %v1153 = vadd.f32 %v1117, %v1150
        %v1154 = vadd.f32 %v1118, %v1151
        %s1155 = sld [smem:[#allocation4 + $0x4e]]
        %v1156 = vstv %s1155
        %v1157 = vmul.f32 %v1156, %v1134
        %v1158 = vmul.f32 %v1156, %v1136
        %v1159 = vmul.f32 %v1156, %v1138
        %v1160 = vadd.f32 %v1124, %v1157
        %v1161 = vadd.f32 %v1125, %v1158
        %v1162 = vadd.f32 %v1126, %v1159
        %s1163 = sld [smem:[#allocation4 + $0x19]]
        %v1164 = vstv %s1163
        %v1165 = vmul.f32 %v1164, %v1131
        %v1166 = vmul.f32 %v1164, %v1130
        %v1167 = vmul.f32 %v1164, %v1132
        %v1168 = vadd.f32 %v1144, %v1165
        %v1169 = vadd.f32 %v1145, %v1166
        %v1170 = vadd.f32 %v1146, %v1167
        %s1171 = sld [smem:[#allocation4 + $0x34]]
        %v1172 = vstv %s1171
        %v1173 = vmul.f32 %v1172, %v1131
        %v1174 = vmul.f32 %v1172, %v1130
        %v1175 = vmul.f32 %v1172, %v1132
        %v1176 = vadd.f32 %v1152, %v1173
        %v1177 = vadd.f32 %v1153, %v1174
        %v1178 = vadd.f32 %v1154, %v1175
        %s1179 = sld [smem:[#allocation4 + $0x4f]]
        %v1180 = vstv %s1179
        %v1181 = vmul.f32 %v1180, %v1131
        %v1182 = vmul.f32 %v1180, %v1130
        %v1183 = vmul.f32 %v1180, %v1132
        %v1184 = vadd.f32 %v1160, %v1181
        %v1185 = vadd.f32 %v1161, %v1182
        %v1186 = vadd.f32 %v1162, %v1183
        %1187 = vrot.lane.b32.xlu0 %v1131, 127
        %v1188 = vpop.permute.xlu0 %1187
        %1189 = vrot.lane.b32.xlu0 %v1130, 127
        %v1190 = vpop.permute.xlu0 %1189
        %1191 = vrot.lane.b32.xlu0 %v1132, 127
        %v1192 = vpop.permute.xlu0 %1191
        %s1193 = sld [smem:[#allocation4 + $0x1a]]
        %v1194 = vstv %s1193
        %v1195 = vmul.f32 %v1194, %v1188
        %v1196 = vmul.f32 %v1194, %v1190
        %v1197 = vmul.f32 %v1194, %v1192
        %v1198 = vadd.f32 %v1168, %v1195
        %v1199 = vadd.f32 %v1169, %v1196
        %v1200 = vadd.f32 %v1170, %v1197
        %s1201 = sld [smem:[#allocation4 + $0x35]]
        %v1202 = vstv %s1201
        %v1203 = vmul.f32 %v1202, %v1188
        %v1204 = vmul.f32 %v1202, %v1190
        %v1205 = vmul.f32 %v1202, %v1192
        %v1206 = vadd.f32 %v1176, %v1203
        %v1207 = vadd.f32 %v1177, %v1204
        %v1208 = vadd.f32 %v1178, %v1205
        %s1209 = sld [smem:[#allocation4 + $0x50]]
        %v1210 = vstv %s1209
        %v1211 = vmul.f32 %v1210, %v1188
        %v1212 = vmul.f32 %v1210, %v1190
        %v1213 = vmul.f32 %v1210, %v1192
        %v1214 = vadd.f32 %v1184, %v1211
        %v1215 = vadd.f32 %v1185, %v1212
        %v1216 = vadd.f32 %v1186, %v1213
        %s1217 = sld [smem:[#allocation6]]
        %v1218 = vstv %s1217
        %v1219 = vadd.f32 %v1198, %v1218
        %v1220 = vadd.f32 %v1199, %v1218
        %v1221 = vadd.f32 %v1200, %v1218
        %s1222 = sld [smem:[#allocation6 + $0x1]]
        %v1223 = vstv %s1222
        %v1224 = vadd.f32 %v1206, %v1223
        %v1225 = vadd.f32 %v1207, %v1223
        %v1226 = vadd.f32 %v1208, %v1223
        %s1227 = sld [smem:[#allocation6 + $0x2]]
        %v1228 = vstv %s1227
        %v1229 = vadd.f32 %v1214, %v1228
        %v1230 = vadd.f32 %v1215, %v1228
        %v1231 = vadd.f32 %v1216, %v1228
        %v1232 = vadd.s32 %v434, 8
        %v1233 = vadd.s32 %v434, 16
        %s1234 = ssub.s32 %s415, 8
        %v1235 = vstv %s1234
        %v1236 = vadd.s32 %v434, %v1235
        %v1237 = vadd.s32 %v1232, %v1235
        %v1238 = vadd.s32 %v1233, %v1235
        %v1239 = vlaneseq
        %v1240 = vand.u32 %v1239, 127
        %vm1241 = vcmp.ge.s32.totalorder %v1236, 0
        %vm1242 = vcmp.ge.s32.totalorder %v1237, 0
        %vm1243 = vcmp.ge.s32.totalorder %v1238, 0
        %vm1244 = vcmp.lt.s32.totalorder %v1236, 16
        %vm1245 = vcmp.lt.s32.totalorder %v1237, 16
        %vm1246 = vcmp.lt.s32.totalorder %v1238, 16
        %vm1247 = vmand %vm1241, %vm1244
        %vm1248 = vmand %vm1242, %vm1245
        %vm1249 = vmand %vm1243, %vm1246
        %vm1250 = vcmp.lt.s32.totalorder %v1240, 16
        %vm1251 = vmand %vm1247, %vm1250
        %vm1252 = vmand %vm1248, %vm1250
        %vm1253 = vmand %vm1249, %vm1250
        %v1254 = vmax.f32 %v1219, %v1224
        %v1255 = vmax.f32 %v1220, %v1225
        %v1256 = vmax.f32 %v1221, %v1226
        %v1257 = vmax.f32 %v1254, %v1229
        %v1258 = vmax.f32 %v1255, %v1230
        %v1259 = vmax.f32 %v1256, %v1231
        %v1260 = vsub.f32 %v1219, %v1257
        %v1261 = vsub.f32 %v1220, %v1258
        %v1262 = vsub.f32 %v1221, %v1259
        %v1263 = vmul.f32 %v1260, 1.442695
        %v1264 = vpow.pop %v1263
        %v1265 = vmul.f32 %v1261, 1.442695
        %v1266 = vpow.pop %v1265
        %v1267 = vmul.f32 %v1262, 1.442695
        %v1268 = vpow.pop %v1267
        %v1269 = vsub.f32 %v1224, %v1257
        %v1270 = vsub.f32 %v1225, %v1258
        %v1271 = vsub.f32 %v1226, %v1259
        %v1272 = vmul.f32 %v1269, 1.442695
        %v1273 = vpow.pop %v1272
        %v1274 = vmul.f32 %v1270, 1.442695
        %v1275 = vpow.pop %v1274
        %v1276 = vmul.f32 %v1271, 1.442695
        %v1277 = vpow.pop %v1276
        %v1278 = vsub.f32 %v1229, %v1257
        %v1279 = vsub.f32 %v1230, %v1258
        %v1280 = vsub.f32 %v1231, %v1259
        %v1281 = vmul.f32 %v1278, 1.442695
        %v1282 = vpow.pop %v1281
        %v1283 = vmul.f32 %v1279, 1.442695
        %v1284 = vpow.pop %v1283
        %v1285 = vmul.f32 %v1280, 1.442695
        %v1286 = vpow.pop %v1285
        %v1287 = vadd.f32 %v1264, %v1273
        %v1288 = vadd.f32 %v1266, %v1275
        %v1289 = vadd.f32 %v1268, %v1277
        %v1290 = vadd.f32 %v1287, %v1282
        %v1291 = vadd.f32 %v1288, %v1284
        %v1292 = vadd.f32 %v1289, %v1286
        %v1293 = vrcp.pop %v1290
        %v1294 = vrcp.pop %v1291
        %v1295 = vrcp.pop %v1292
        %v1296 = vmul.f32 %v1264, %v1293
        %v1297 = vmul.f32 %v1266, %v1294
        %v1298 = vmul.f32 %v1268, %v1295
        %v1299 = vsel %vm1251, %v1296, 0.0
        %v1300 = vsel %vm1252, %v1297, 0.0
        %v1301 = vsel %vm1253, %v1298, 0.0
        %v1302 = vmul.f32 %v1273, %v1293
        %v1303 = vmul.f32 %v1275, %v1294
        %v1304 = vmul.f32 %v1277, %v1295
        %v1305 = vsel %vm1251, %v1302, 0.0
        %v1306 = vsel %vm1252, %v1303, 0.0
        %v1307 = vsel %vm1253, %v1304, 0.0
        %v1308 = vmul.f32 %v1282, %v1293
        %v1309 = vmul.f32 %v1284, %v1294
        %v1310 = vmul.f32 %v1286, %v1295
        %v1311 = vsel %vm1251, %v1308, 0.0
        %v1312 = vsel %vm1252, %v1309, 0.0
        %v1313 = vsel %vm1253, %v1310, 0.0
        %s1314 = sld [smem:[#allocation8]]
        %v1315 = vstv %s1314
        %v1316 = vmul.f32 %v1315, %v440
        %v1317 = vmul.f32 %v1315, %v442
        %v1318 = vmul.f32 %v1315, %v444
        %s1319 = sld [smem:[#allocation8 + $0x1]]
        %v1320 = vstv %s1319
        %v1321 = vmul.f32 %v1320, %v438
        %v1322 = vmul.f32 %v1320, %v437
        %v1323 = vmul.f32 %v1320, %v436
        %v1324 = vadd.f32 %v1316, %v1321
        %v1325 = vadd.f32 %v1317, %v1322
        %v1326 = vadd.f32 %v1318, %v1323
        %s1327 = sld [smem:[#allocation8 + $0x2]]
        %v1328 = vstv %s1327
        %v1329 = vmul.f32 %v1328, %v485
        %v1330 = vmul.f32 %v1328, %v487
        %v1331 = vmul.f32 %v1328, %v489
        %v1332 = vadd.f32 %v1324, %v1329
        %v1333 = vadd.f32 %v1325, %v1330
        %v1334 = vadd.f32 %v1326, %v1331
        %s1335 = sld [smem:[#allocation8 + $0x3]]
        %v1336 = vstv %s1335
        %v1337 = vmul.f32 %v1336, %v515
        %v1338 = vmul.f32 %v1336, %v517
        %v1339 = vmul.f32 %v1336, %v519
        %v1340 = vadd.f32 %v1332, %v1337
        %v1341 = vadd.f32 %v1333, %v1338
        %v1342 = vadd.f32 %v1334, %v1339
        %s1343 = sld [smem:[#allocation8 + $0x4]]
        %v1344 = vstv %s1343
        %v1345 = vmul.f32 %v1344, %v417
        %v1346 = vmul.f32 %v1344, %v418
        %v1347 = vmul.f32 %v1344, %v419
        %v1348 = vadd.f32 %v1340, %v1345
        %v1349 = vadd.f32 %v1341, %v1346
        %v1350 = vadd.f32 %v1342, %v1347
        %s1351 = sld [smem:[#allocation8 + $0x5]]
        %v1352 = vstv %s1351
        %v1353 = vmul.f32 %v1352, %v569
        %v1354 = vmul.f32 %v1352, %v571
        %v1355 = vmul.f32 %v1352, %v573
        %v1356 = vadd.f32 %v1348, %v1353
        %v1357 = vadd.f32 %v1349, %v1354
        %v1358 = vadd.f32 %v1350, %v1355
        %s1359 = sld [smem:[#allocation8 + $0x6]]
        %v1360 = vstv %s1359
        %v1361 = vmul.f32 %v1360, %v606
        %v1362 = vmul.f32 %v1360, %v608
        %v1363 = vmul.f32 %v1360, %v610
        %v1364 = vadd.f32 %v1356, %v1361
        %v1365 = vadd.f32 %v1357, %v1362
        %v1366 = vadd.f32 %v1358, %v1363
        %s1367 = sld [smem:[#allocation8 + $0x7]]
        %v1368 = vstv %s1367
        %v1369 = vmul.f32 %v1368, %v603
        %v1370 = vmul.f32 %v1368, %v602
        %v1371 = vmul.f32 %v1368, %v604
        %v1372 = vadd.f32 %v1364, %v1369
        %v1373 = vadd.f32 %v1365, %v1370
        %v1374 = vadd.f32 %v1366, %v1371
        %s1375 = sld [smem:[#allocation8 + $0x8]]
        %v1376 = vstv %s1375
        %v1377 = vmul.f32 %v1376, %v660
        %v1378 = vmul.f32 %v1376, %v662
        %v1379 = vmul.f32 %v1376, %v664
        %v1380 = vadd.f32 %v1372, %v1377
        %v1381 = vadd.f32 %v1373, %v1378
        %v1382 = vadd.f32 %v1374, %v1379
        %s1383 = sld [smem:[#allocation8 + $0x9]]
        %v1384 = vstv %s1383
        %v1385 = vmul.f32 %v1384, %v696
        %v1386 = vmul.f32 %v1384, %v698
        %v1387 = vmul.f32 %v1384, %v700
        %v1388 = vadd.f32 %v1380, %v1385
        %v1389 = vadd.f32 %v1381, %v1386
        %v1390 = vadd.f32 %v1382, %v1387
        %s1391 = sld [smem:[#allocation8 + $0xa]]
        %v1392 = vstv %s1391
        %v1393 = vmul.f32 %v1392, %v694
        %v1394 = vmul.f32 %v1392, %v693
        %v1395 = vmul.f32 %v1392, %v692
        %v1396 = vadd.f32 %v1388, %v1393
        %v1397 = vadd.f32 %v1389, %v1394
        %v1398 = vadd.f32 %v1390, %v1395
        %s1399 = sld [smem:[#allocation8 + $0xb]]
        %v1400 = vstv %s1399
        %v1401 = vmul.f32 %v1400, %v750
        %v1402 = vmul.f32 %v1400, %v752
        %v1403 = vmul.f32 %v1400, %v754
        %v1404 = vadd.f32 %v1396, %v1401
        %v1405 = vadd.f32 %v1397, %v1402
        %v1406 = vadd.f32 %v1398, %v1403
        %s1407 = sld [smem:[#allocation8 + $0xc]]
        %v1408 = vstv %s1407
        %v1409 = vmul.f32 %v1408, %v780
        %v1410 = vmul.f32 %v1408, %v782
        %v1411 = vmul.f32 %v1408, %v784
        %v1412 = vadd.f32 %v1404, %v1409
        %v1413 = vadd.f32 %v1405, %v1410
        %v1414 = vadd.f32 %v1406, %v1411
        %s1415 = sld [smem:[#allocation8 + $0xd]]
        %v1416 = vstv %s1415
        %v1417 = vmul.f32 %v1416, %v422
        %v1418 = vmul.f32 %v1416, %v423
        %v1419 = vmul.f32 %v1416, %v424
        %v1420 = vadd.f32 %v1412, %v1417
        %v1421 = vadd.f32 %v1413, %v1418
        %v1422 = vadd.f32 %v1414, %v1419
        %s1423 = sld [smem:[#allocation8 + $0xe]]
        %v1424 = vstv %s1423
        %v1425 = vmul.f32 %v1424, %v834
        %v1426 = vmul.f32 %v1424, %v836
        %v1427 = vmul.f32 %v1424, %v838
        %v1428 = vadd.f32 %v1420, %v1425
        %v1429 = vadd.f32 %v1421, %v1426
        %v1430 = vadd.f32 %v1422, %v1427
        %s1431 = sld [smem:[#allocation8 + $0xf]]
        %v1432 = vstv %s1431
        %v1433 = vmul.f32 %v1432, %v870
        %v1434 = vmul.f32 %v1432, %v872
        %v1435 = vmul.f32 %v1432, %v874
        %v1436 = vadd.f32 %v1428, %v1433
        %v1437 = vadd.f32 %v1429, %v1434
        %v1438 = vadd.f32 %v1430, %v1435
        %s1439 = sld [smem:[#allocation8 + $0x10]]
        %v1440 = vstv %s1439
        %v1441 = vmul.f32 %v1440, %v867
        %v1442 = vmul.f32 %v1440, %v866
        %v1443 = vmul.f32 %v1440, %v868
        %v1444 = vadd.f32 %v1436, %v1441
        %v1445 = vadd.f32 %v1437, %v1442
        %v1446 = vadd.f32 %v1438, %v1443
        %s1447 = sld [smem:[#allocation8 + $0x11]]
        %v1448 = vstv %s1447
        %v1449 = vmul.f32 %v1448, %v924
        %v1450 = vmul.f32 %v1448, %v926
        %v1451 = vmul.f32 %v1448, %v928
        %v1452 = vadd.f32 %v1444, %v1449
        %v1453 = vadd.f32 %v1445, %v1450
        %v1454 = vadd.f32 %v1446, %v1451
        %s1455 = sld [smem:[#allocation8 + $0x12]]
        %v1456 = vstv %s1455
        %v1457 = vmul.f32 %v1456, %v960
        %v1458 = vmul.f32 %v1456, %v962
        %v1459 = vmul.f32 %v1456, %v964
        %v1460 = vadd.f32 %v1452, %v1457
        %v1461 = vadd.f32 %v1453, %v1458
        %v1462 = vadd.f32 %v1454, %v1459
        %s1463 = sld [smem:[#allocation8 + $0x13]]
        %v1464 = vstv %s1463
        %v1465 = vmul.f32 %v1464, %v958
        %v1466 = vmul.f32 %v1464, %v957
        %v1467 = vmul.f32 %v1464, %v956
        %v1468 = vadd.f32 %v1460, %v1465
        %v1469 = vadd.f32 %v1461, %v1466
        %v1470 = vadd.f32 %v1462, %v1467
        %s1471 = sld [smem:[#allocation8 + $0x14]]
        %v1472 = vstv %s1471
        %v1473 = vmul.f32 %v1472, %v1014
        %v1474 = vmul.f32 %v1472, %v1016
        %v1475 = vmul.f32 %v1472, %v1018
        %v1476 = vadd.f32 %v1468, %v1473
        %v1477 = vadd.f32 %v1469, %v1474
        %v1478 = vadd.f32 %v1470, %v1475
        %s1479 = sld [smem:[#allocation8 + $0x15]]
        %v1480 = vstv %s1479
        %v1481 = vmul.f32 %v1480, %v1044
        %v1482 = vmul.f32 %v1480, %v1046
        %v1483 = vmul.f32 %v1480, %v1048
        %v1484 = vadd.f32 %v1476, %v1481
        %v1485 = vadd.f32 %v1477, %v1482
        %v1486 = vadd.f32 %v1478, %v1483
        %s1487 = sld [smem:[#allocation8 + $0x16]]
        %v1488 = vstv %s1487
        %v1489 = vmul.f32 %v1488, %v427
        %v1490 = vmul.f32 %v1488, %v428
        %v1491 = vmul.f32 %v1488, %v429
        %v1492 = vadd.f32 %v1484, %v1489
        %v1493 = vadd.f32 %v1485, %v1490
        %v1494 = vadd.f32 %v1486, %v1491
        %s1495 = sld [smem:[#allocation8 + $0x17]]
        %v1496 = vstv %s1495
        %v1497 = vmul.f32 %v1496, %v1098
        %v1498 = vmul.f32 %v1496, %v1100
        %v1499 = vmul.f32 %v1496, %v1102
        %v1500 = vadd.f32 %v1492, %v1497
        %v1501 = vadd.f32 %v1493, %v1498
        %v1502 = vadd.f32 %v1494, %v1499
        %s1503 = sld [smem:[#allocation8 + $0x18]]
        %v1504 = vstv %s1503
        %v1505 = vmul.f32 %v1504, %v1134
        %v1506 = vmul.f32 %v1504, %v1136
        %v1507 = vmul.f32 %v1504, %v1138
        %v1508 = vadd.f32 %v1500, %v1505
        %v1509 = vadd.f32 %v1501, %v1506
        %v1510 = vadd.f32 %v1502, %v1507
        %s1511 = sld [smem:[#allocation8 + $0x19]]
        %v1512 = vstv %s1511
        %v1513 = vmul.f32 %v1512, %v1131
        %v1514 = vmul.f32 %v1512, %v1130
        %v1515 = vmul.f32 %v1512, %v1132
        %v1516 = vadd.f32 %v1508, %v1513
        %v1517 = vadd.f32 %v1509, %v1514
        %v1518 = vadd.f32 %v1510, %v1515
        %s1519 = sld [smem:[#allocation8 + $0x1a]]
        %v1520 = vstv %s1519
        %v1521 = vmul.f32 %v1520, %v1188
        %v1522 = vmul.f32 %v1520, %v1190
        %v1523 = vmul.f32 %v1520, %v1192
        %v1524 = vadd.f32 %v1516, %v1521
        %v1525 = vadd.f32 %v1517, %v1522
        %v1526 = vadd.f32 %v1518, %v1523
        %v1527 = vrot.slane %v1299, 7
        %v1528 = vrot.slane %v1300, 7
        %v1529 = vrot.slane %v1301, 7
        %v1530 = vsel %vm435, %v1528, %v1529
        %v1531 = vsel %vm435, %v1527, %v1528
        %v1532 = vsel %vm435, %v1529, %v1527
        %1533 = vrot.lane.b32.xlu0 %v1532, 1
        %v1534 = vpop.permute.xlu0 %1533
        %1535 = vrot.lane.b32.xlu0 %v1531, 1
        %v1536 = vpop.permute.xlu0 %1535
        %1537 = vrot.lane.b32.xlu0 %v1530, 1
        %v1538 = vpop.permute.xlu0 %1537
        %s1539 = sld [smem:[#allocation8 + $0x1b]]
        %v1540 = vstv %s1539
        %v1541 = vmul.f32 %v1540, %v1534
        %v1542 = vmul.f32 %v1540, %v1536
        %v1543 = vmul.f32 %v1540, %v1538
        %v1544 = vadd.f32 %v1524, %v1541
        %v1545 = vadd.f32 %v1525, %v1542
        %v1546 = vadd.f32 %v1526, %v1543
        %s1547 = sld [smem:[#allocation8 + $0x1c]]
        %v1548 = vstv %s1547
        %v1549 = vmul.f32 %v1548, %v1532
        %v1550 = vmul.f32 %v1548, %v1531
        %v1551 = vmul.f32 %v1548, %v1530
        %v1552 = vadd.f32 %v1544, %v1549
        %v1553 = vadd.f32 %v1545, %v1550
        %v1554 = vadd.f32 %v1546, %v1551
        %1555 = vrot.lane.b32.xlu0 %v1532, 127
        %v1556 = vpop.permute.xlu0 %1555
        %1557 = vrot.lane.b32.xlu0 %v1531, 127
        %v1558 = vpop.permute.xlu0 %1557
        %1559 = vrot.lane.b32.xlu0 %v1530, 127
        %v1560 = vpop.permute.xlu0 %1559
        %s1561 = sld [smem:[#allocation8 + $0x1d]]
        %v1562 = vstv %s1561
        %v1563 = vmul.f32 %v1562, %v1556
        %v1564 = vmul.f32 %v1562, %v1558
        %v1565 = vmul.f32 %v1562, %v1560
        %v1566 = vadd.f32 %v1552, %v1563
        %v1567 = vadd.f32 %v1553, %v1564
        %v1568 = vadd.f32 %v1554, %v1565
        %1569 = vrot.lane.b32.xlu0 %v1299, 1
        %v1570 = vpop.permute.xlu0 %1569
        %1571 = vrot.lane.b32.xlu0 %v1300, 1
        %v1572 = vpop.permute.xlu0 %1571
        %1573 = vrot.lane.b32.xlu0 %v1301, 1
        %v1574 = vpop.permute.xlu0 %1573
        %s1575 = sld [smem:[#allocation8 + $0x1e]]
        %v1576 = vstv %s1575
        %v1577 = vmul.f32 %v1576, %v1570
        %v1578 = vmul.f32 %v1576, %v1572
        %v1579 = vmul.f32 %v1576, %v1574
        %v1580 = vadd.f32 %v1566, %v1577
        %v1581 = vadd.f32 %v1567, %v1578
        %v1582 = vadd.f32 %v1568, %v1579
        %s1583 = sld [smem:[#allocation8 + $0x1f]]
        %v1584 = vstv %s1583
        %v1585 = vmul.f32 %v1584, %v1299
        %v1586 = vmul.f32 %v1584, %v1300
        %v1587 = vmul.f32 %v1584, %v1301
        %v1588 = vadd.f32 %v1580, %v1585
        %v1589 = vadd.f32 %v1581, %v1586
        %v1590 = vadd.f32 %v1582, %v1587
        %1591 = vrot.lane.b32.xlu0 %v1299, 127
        %v1592 = vpop.permute.xlu0 %1591
        %1593 = vrot.lane.b32.xlu0 %v1300, 127
        %v1594 = vpop.permute.xlu0 %1593
        %1595 = vrot.lane.b32.xlu0 %v1301, 127
        %v1596 = vpop.permute.xlu0 %1595
        %s1597 = sld [smem:[#allocation8 + $0x20]]
        %v1598 = vstv %s1597
        %v1599 = vmul.f32 %v1598, %v1592
        %v1600 = vmul.f32 %v1598, %v1594
        %v1601 = vmul.f32 %v1598, %v1596
        %v1602 = vadd.f32 %v1588, %v1599
        %v1603 = vadd.f32 %v1589, %v1600
        %v1604 = vadd.f32 %v1590, %v1601
        %v1605 = vrot.slane %v1299, 1
        %v1606 = vrot.slane %v1300, 1
        %v1607 = vrot.slane %v1301, 1
        %v1608 = vsel %vm601, %v1606, %v1607
        %v1609 = vsel %vm601, %v1605, %v1606
        %v1610 = vsel %vm601, %v1607, %v1605
        %1611 = vrot.lane.b32.xlu0 %v1609, 1
        %v1612 = vpop.permute.xlu0 %1611
        %1613 = vrot.lane.b32.xlu0 %v1608, 1
        %v1614 = vpop.permute.xlu0 %1613
        %1615 = vrot.lane.b32.xlu0 %v1610, 1
        %v1616 = vpop.permute.xlu0 %1615
        %s1617 = sld [smem:[#allocation8 + $0x21]]
        %v1618 = vstv %s1617
        %v1619 = vmul.f32 %v1618, %v1612
        %v1620 = vmul.f32 %v1618, %v1614
        %v1621 = vmul.f32 %v1618, %v1616
        %v1622 = vadd.f32 %v1602, %v1619
        %v1623 = vadd.f32 %v1603, %v1620
        %v1624 = vadd.f32 %v1604, %v1621
        %s1625 = sld [smem:[#allocation8 + $0x22]]
        %v1626 = vstv %s1625
        %v1627 = vmul.f32 %v1626, %v1609
        %v1628 = vmul.f32 %v1626, %v1608
        %v1629 = vmul.f32 %v1626, %v1610
        %v1630 = vadd.f32 %v1622, %v1627
        %v1631 = vadd.f32 %v1623, %v1628
        %v1632 = vadd.f32 %v1624, %v1629
        %1633 = vrot.lane.b32.xlu0 %v1609, 127
        %v1634 = vpop.permute.xlu0 %1633
        %1635 = vrot.lane.b32.xlu0 %v1608, 127
        %v1636 = vpop.permute.xlu0 %1635
        %1637 = vrot.lane.b32.xlu0 %v1610, 127
        %v1638 = vpop.permute.xlu0 %1637
        %s1639 = sld [smem:[#allocation8 + $0x23]]
        %v1640 = vstv %s1639
        %v1641 = vmul.f32 %v1640, %v1634
        %v1642 = vmul.f32 %v1640, %v1636
        %v1643 = vmul.f32 %v1640, %v1638
        %v1644 = vadd.f32 %v1630, %v1641
        %v1645 = vadd.f32 %v1631, %v1642
        %v1646 = vadd.f32 %v1632, %v1643
        %v1647 = vrot.slane %v1305, 7
        %v1648 = vrot.slane %v1306, 7
        %v1649 = vrot.slane %v1307, 7
        %v1650 = vsel %vm435, %v1648, %v1649
        %v1651 = vsel %vm435, %v1647, %v1648
        %v1652 = vsel %vm435, %v1649, %v1647
        %1653 = vrot.lane.b32.xlu0 %v1652, 1
        %v1654 = vpop.permute.xlu0 %1653
        %1655 = vrot.lane.b32.xlu0 %v1651, 1
        %v1656 = vpop.permute.xlu0 %1655
        %1657 = vrot.lane.b32.xlu0 %v1650, 1
        %v1658 = vpop.permute.xlu0 %1657
        %s1659 = sld [smem:[#allocation8 + $0x24]]
        %v1660 = vstv %s1659
        %v1661 = vmul.f32 %v1660, %v1654
        %v1662 = vmul.f32 %v1660, %v1656
        %v1663 = vmul.f32 %v1660, %v1658
        %v1664 = vadd.f32 %v1644, %v1661
        %v1665 = vadd.f32 %v1645, %v1662
        %v1666 = vadd.f32 %v1646, %v1663
        %s1667 = sld [smem:[#allocation8 + $0x25]]
        %v1668 = vstv %s1667
        %v1669 = vmul.f32 %v1668, %v1652
        %v1670 = vmul.f32 %v1668, %v1651
        %v1671 = vmul.f32 %v1668, %v1650
        %v1672 = vadd.f32 %v1664, %v1669
        %v1673 = vadd.f32 %v1665, %v1670
        %v1674 = vadd.f32 %v1666, %v1671
        %1675 = vrot.lane.b32.xlu0 %v1652, 127
        %v1676 = vpop.permute.xlu0 %1675
        %1677 = vrot.lane.b32.xlu0 %v1651, 127
        %v1678 = vpop.permute.xlu0 %1677
        %1679 = vrot.lane.b32.xlu0 %v1650, 127
        %v1680 = vpop.permute.xlu0 %1679
        %s1681 = sld [smem:[#allocation8 + $0x26]]
        %v1682 = vstv %s1681
        %v1683 = vmul.f32 %v1682, %v1676
        %v1684 = vmul.f32 %v1682, %v1678
        %v1685 = vmul.f32 %v1682, %v1680
        %v1686 = vadd.f32 %v1672, %v1683
        %v1687 = vadd.f32 %v1673, %v1684
        %v1688 = vadd.f32 %v1674, %v1685
        %1689 = vrot.lane.b32.xlu0 %v1305, 1
        %v1690 = vpop.permute.xlu0 %1689
        %1691 = vrot.lane.b32.xlu0 %v1306, 1
        %v1692 = vpop.permute.xlu0 %1691
        %1693 = vrot.lane.b32.xlu0 %v1307, 1
        %v1694 = vpop.permute.xlu0 %1693
        %s1695 = sld [smem:[#allocation8 + $0x27]]
        %v1696 = vstv %s1695
        %v1697 = vmul.f32 %v1696, %v1690
        %v1698 = vmul.f32 %v1696, %v1692
        %v1699 = vmul.f32 %v1696, %v1694
        %v1700 = vadd.f32 %v1686, %v1697
        %v1701 = vadd.f32 %v1687, %v1698
        %v1702 = vadd.f32 %v1688, %v1699
        %s1703 = sld [smem:[#allocation8 + $0x28]]
        %v1704 = vstv %s1703
        %v1705 = vmul.f32 %v1704, %v1305
        %v1706 = vmul.f32 %v1704, %v1306
        %v1707 = vmul.f32 %v1704, %v1307
        %v1708 = vadd.f32 %v1700, %v1705
        %v1709 = vadd.f32 %v1701, %v1706
        %v1710 = vadd.f32 %v1702, %v1707
        %1711 = vrot.lane.b32.xlu0 %v1305, 127
        %v1712 = vpop.permute.xlu0 %1711
        %1713 = vrot.lane.b32.xlu0 %v1306, 127
        %v1714 = vpop.permute.xlu0 %1713
        %1715 = vrot.lane.b32.xlu0 %v1307, 127
        %v1716 = vpop.permute.xlu0 %1715
        %s1717 = sld [smem:[#allocation8 + $0x29]]
        %v1718 = vstv %s1717
        %v1719 = vmul.f32 %v1718, %v1712
        %v1720 = vmul.f32 %v1718, %v1714
        %v1721 = vmul.f32 %v1718, %v1716
        %v1722 = vadd.f32 %v1708, %v1719
        %v1723 = vadd.f32 %v1709, %v1720
        %v1724 = vadd.f32 %v1710, %v1721
        %v1725 = vrot.slane %v1305, 1
        %v1726 = vrot.slane %v1306, 1
        %v1727 = vrot.slane %v1307, 1
        %v1728 = vsel %vm601, %v1726, %v1727
        %v1729 = vsel %vm601, %v1725, %v1726
        %v1730 = vsel %vm601, %v1727, %v1725
        %1731 = vrot.lane.b32.xlu0 %v1729, 1
        %v1732 = vpop.permute.xlu0 %1731
        %1733 = vrot.lane.b32.xlu0 %v1728, 1
        %v1734 = vpop.permute.xlu0 %1733
        %1735 = vrot.lane.b32.xlu0 %v1730, 1
        %v1736 = vpop.permute.xlu0 %1735
        %s1737 = sld [smem:[#allocation8 + $0x2a]]
        %v1738 = vstv %s1737
        %v1739 = vmul.f32 %v1738, %v1732
        %v1740 = vmul.f32 %v1738, %v1734
        %v1741 = vmul.f32 %v1738, %v1736
        %v1742 = vadd.f32 %v1722, %v1739
        %v1743 = vadd.f32 %v1723, %v1740
        %v1744 = vadd.f32 %v1724, %v1741
        %s1745 = sld [smem:[#allocation8 + $0x2b]]
        %v1746 = vstv %s1745
        %v1747 = vmul.f32 %v1746, %v1729
        %v1748 = vmul.f32 %v1746, %v1728
        %v1749 = vmul.f32 %v1746, %v1730
        %v1750 = vadd.f32 %v1742, %v1747
        %v1751 = vadd.f32 %v1743, %v1748
        %v1752 = vadd.f32 %v1744, %v1749
        %1753 = vrot.lane.b32.xlu0 %v1729, 127
        %v1754 = vpop.permute.xlu0 %1753
        %1755 = vrot.lane.b32.xlu0 %v1728, 127
        %v1756 = vpop.permute.xlu0 %1755
        %1757 = vrot.lane.b32.xlu0 %v1730, 127
        %v1758 = vpop.permute.xlu0 %1757
        %s1759 = sld [smem:[#allocation8 + $0x2c]]
        %v1760 = vstv %s1759
        %v1761 = vmul.f32 %v1760, %v1754
        %v1762 = vmul.f32 %v1760, %v1756
        %v1763 = vmul.f32 %v1760, %v1758
        %v1764 = vadd.f32 %v1750, %v1761
        %v1765 = vadd.f32 %v1751, %v1762
        %v1766 = vadd.f32 %v1752, %v1763
        %v1767 = vrot.slane %v1311, 7
        %v1768 = vrot.slane %v1312, 7
        %v1769 = vrot.slane %v1313, 7
        %v1770 = vsel %vm435, %v1768, %v1769
        %v1771 = vsel %vm435, %v1767, %v1768
        %v1772 = vsel %vm435, %v1769, %v1767
        %1773 = vrot.lane.b32.xlu0 %v1772, 1
        %v1774 = vpop.permute.xlu0 %1773
        %1775 = vrot.lane.b32.xlu0 %v1771, 1
        %v1776 = vpop.permute.xlu0 %1775
        %1777 = vrot.lane.b32.xlu0 %v1770, 1
        %v1778 = vpop.permute.xlu0 %1777
        %s1779 = sld [smem:[#allocation8 + $0x2d]]
        %v1780 = vstv %s1779
        %v1781 = vmul.f32 %v1780, %v1774
        %v1782 = vmul.f32 %v1780, %v1776
        %v1783 = vmul.f32 %v1780, %v1778
        %v1784 = vadd.f32 %v1764, %v1781
        %v1785 = vadd.f32 %v1765, %v1782
        %v1786 = vadd.f32 %v1766, %v1783
        %s1787 = sld [smem:[#allocation8 + $0x2e]]
        %v1788 = vstv %s1787
        %v1789 = vmul.f32 %v1788, %v1772
        %v1790 = vmul.f32 %v1788, %v1771
        %v1791 = vmul.f32 %v1788, %v1770
        %v1792 = vadd.f32 %v1784, %v1789
        %v1793 = vadd.f32 %v1785, %v1790
        %v1794 = vadd.f32 %v1786, %v1791
        %1795 = vrot.lane.b32.xlu0 %v1772, 127
        %v1796 = vpop.permute.xlu0 %1795
        %1797 = vrot.lane.b32.xlu0 %v1771, 127
        %v1798 = vpop.permute.xlu0 %1797
        %1799 = vrot.lane.b32.xlu0 %v1770, 127
        %v1800 = vpop.permute.xlu0 %1799
        %s1801 = sld [smem:[#allocation8 + $0x2f]]
        %v1802 = vstv %s1801
        %v1803 = vmul.f32 %v1802, %v1796
        %v1804 = vmul.f32 %v1802, %v1798
        %v1805 = vmul.f32 %v1802, %v1800
        %v1806 = vadd.f32 %v1792, %v1803
        %v1807 = vadd.f32 %v1793, %v1804
        %v1808 = vadd.f32 %v1794, %v1805
        %1809 = vrot.lane.b32.xlu0 %v1311, 1
        %v1810 = vpop.permute.xlu0 %1809
        %1811 = vrot.lane.b32.xlu0 %v1312, 1
        %v1812 = vpop.permute.xlu0 %1811
        %1813 = vrot.lane.b32.xlu0 %v1313, 1
        %v1814 = vpop.permute.xlu0 %1813
        %s1815 = sld [smem:[#allocation8 + $0x30]]
        %v1816 = vstv %s1815
        %v1817 = vmul.f32 %v1816, %v1810
        %v1818 = vmul.f32 %v1816, %v1812
        %v1819 = vmul.f32 %v1816, %v1814
        %v1820 = vadd.f32 %v1806, %v1817
        %v1821 = vadd.f32 %v1807, %v1818
        %v1822 = vadd.f32 %v1808, %v1819
        %s1823 = sld [smem:[#allocation8 + $0x31]]
        %v1824 = vstv %s1823
        %v1825 = vmul.f32 %v1824, %v1311
        %v1826 = vmul.f32 %v1824, %v1312
        %v1827 = vmul.f32 %v1824, %v1313
        %v1828 = vadd.f32 %v1820, %v1825
        %v1829 = vadd.f32 %v1821, %v1826
        %v1830 = vadd.f32 %v1822, %v1827
        %1831 = vrot.lane.b32.xlu0 %v1311, 127
        %v1832 = vpop.permute.xlu0 %1831
        %1833 = vrot.lane.b32.xlu0 %v1312, 127
        %v1834 = vpop.permute.xlu0 %1833
        %1835 = vrot.lane.b32.xlu0 %v1313, 127
        %v1836 = vpop.permute.xlu0 %1835
        %s1837 = sld [smem:[#allocation8 + $0x32]]
        %v1838 = vstv %s1837
        %v1839 = vmul.f32 %v1838, %v1832
        %v1840 = vmul.f32 %v1838, %v1834
        %v1841 = vmul.f32 %v1838, %v1836
        %v1842 = vadd.f32 %v1828, %v1839
        %v1843 = vadd.f32 %v1829, %v1840
        %v1844 = vadd.f32 %v1830, %v1841
        %v1845 = vrot.slane %v1311, 1
        %v1846 = vrot.slane %v1312, 1
        %v1847 = vrot.slane %v1313, 1
        %v1848 = vsel %vm601, %v1846, %v1847
        %v1849 = vsel %vm601, %v1845, %v1846
        %v1850 = vsel %vm601, %v1847, %v1845
        %1851 = vrot.lane.b32.xlu0 %v1849, 1
        %v1852 = vpop.permute.xlu0 %1851
        %1853 = vrot.lane.b32.xlu0 %v1848, 1
        %v1854 = vpop.permute.xlu0 %1853
        %1855 = vrot.lane.b32.xlu0 %v1850, 1
        %v1856 = vpop.permute.xlu0 %1855
        %s1857 = sld [smem:[#allocation8 + $0x33]]
        %v1858 = vstv %s1857
        %v1859 = vmul.f32 %v1858, %v1852
        %v1860 = vmul.f32 %v1858, %v1854
        %v1861 = vmul.f32 %v1858, %v1856
        %v1862 = vadd.f32 %v1842, %v1859
        %v1863 = vadd.f32 %v1843, %v1860
        %v1864 = vadd.f32 %v1844, %v1861
        %s1865 = sld [smem:[#allocation8 + $0x34]]
        %v1866 = vstv %s1865
        %v1867 = vmul.f32 %v1866, %v1849
        %v1868 = vmul.f32 %v1866, %v1848
        %v1869 = vmul.f32 %v1866, %v1850
        %v1870 = vadd.f32 %v1862, %v1867
        %v1871 = vadd.f32 %v1863, %v1868
        %v1872 = vadd.f32 %v1864, %v1869
        %1873 = vrot.lane.b32.xlu0 %v1849, 127
        %v1874 = vpop.permute.xlu0 %1873
        %1875 = vrot.lane.b32.xlu0 %v1848, 127
        %v1876 = vpop.permute.xlu0 %1875
        %1877 = vrot.lane.b32.xlu0 %v1850, 127
        %v1878 = vpop.permute.xlu0 %1877
        %s1879 = sld [smem:[#allocation8 + $0x35]]
        %v1880 = vstv %s1879
        %v1881 = vmul.f32 %v1880, %v1874
        %v1882 = vmul.f32 %v1880, %v1876
        %v1883 = vmul.f32 %v1880, %v1878
        %v1884 = vadd.f32 %v1870, %v1881
        %v1885 = vadd.f32 %v1871, %v1882
        %v1886 = vadd.f32 %v1872, %v1883
        %s1887 = sld [smem:[#allocation2]]
        %v1888 = vstv %s1887
        %v1889 = vadd.f32 %v1884, %v1888
        %v1890 = vadd.f32 %v1885, %v1888
        %v1891 = vadd.f32 %v1886, %v1888
        %v1892 = vsub.f32 0.0, %v1889
        %v1893 = vsub.f32 0.0, %v1890
        %v1894 = vsub.f32 0.0, %v1891
        %v1895 = vmul.f32 %v1892, 1.442695
        %v1896 = vpow.pop %v1895
        %v1897 = vmul.f32 %v1893, 1.442695
        %v1898 = vpow.pop %v1897
        %v1899 = vmul.f32 %v1894, 1.442695
        %v1900 = vpow.pop %v1899
        %v1901 = vadd.f32 %v1896, 1.0
        %v1902 = vadd.f32 %v1898, 1.0
        %v1903 = vadd.f32 %v1900, 1.0
        %v1904 = vrcp.pop %v1901
        %v1905 = vrcp.pop %v1902
        %v1906 = vrcp.pop %v1903
        %v1907 = vsel %vm1251, %v1904, 0.0
        %v1908 = vsel %vm1252, %v1905, 0.0
        %v1909 = vsel %vm1253, %v1906, 0.0
        %s1910 = sld [smem:[#allocation9]]
        %v1911 = vstv %s1910
        %v1912 = vmul.f32 %v1911, %v442
        %s1913 = sld [smem:[#allocation9 + $0x1]]
        %v1914 = vstv %s1913
        %v1915 = vmul.f32 %v1914, %v437
        %v1916 = vadd.f32 %v1912, %v1915
        %s1917 = sld [smem:[#allocation9 + $0x2]]
        %v1918 = vstv %s1917
        %v1919 = vmul.f32 %v1918, %v487
        %v1920 = vadd.f32 %v1916, %v1919
        %s1921 = sld [smem:[#allocation9 + $0x3]]
        %v1922 = vstv %s1921
        %v1923 = vmul.f32 %v1922, %v517
        %v1924 = vadd.f32 %v1920, %v1923
        %s1925 = sld [smem:[#allocation9 + $0x4]]
        %v1926 = vstv %s1925
        %v1927 = vmul.f32 %v1926, %v418
        %v1928 = vadd.f32 %v1924, %v1927
        %s1929 = sld [smem:[#allocation9 + $0x5]]
        %v1930 = vstv %s1929
        %v1931 = vmul.f32 %v1930, %v571
        %v1932 = vadd.f32 %v1928, %v1931
        %s1933 = sld [smem:[#allocation9 + $0x6]]
        %v1934 = vstv %s1933
        %v1935 = vmul.f32 %v1934, %v608
        %v1936 = vadd.f32 %v1932, %v1935
        %s1937 = sld [smem:[#allocation9 + $0x7]]
        %v1938 = vstv %s1937
        %v1939 = vmul.f32 %v1938, %v602
        %v1940 = vadd.f32 %v1936, %v1939
        %s1941 = sld [smem:[#allocation9 + $0x8]]
        %v1942 = vstv %s1941
        %v1943 = vmul.f32 %v1942, %v662
        %v1944 = vadd.f32 %v1940, %v1943
        %s1945 = sld [smem:[#allocation9 + $0x9]]
        %v1946 = vstv %s1945
        %v1947 = vmul.f32 %v1946, %v698
        %v1948 = vadd.f32 %v1944, %v1947
        %s1949 = sld [smem:[#allocation9 + $0xa]]
        %v1950 = vstv %s1949
        %v1951 = vmul.f32 %v1950, %v693
        %v1952 = vadd.f32 %v1948, %v1951
        %s1953 = sld [smem:[#allocation9 + $0xb]]
        %v1954 = vstv %s1953
        %v1955 = vmul.f32 %v1954, %v752
        %v1956 = vadd.f32 %v1952, %v1955
        %s1957 = sld [smem:[#allocation9 + $0xc]]
        %v1958 = vstv %s1957
        %v1959 = vmul.f32 %v1958, %v782
        %v1960 = vadd.f32 %v1956, %v1959
        %s1961 = sld [smem:[#allocation9 + $0xd]]
        %v1962 = vstv %s1961
        %v1963 = vmul.f32 %v1962, %v423
        %v1964 = vadd.f32 %v1960, %v1963
        %s1965 = sld [smem:[#allocation9 + $0xe]]
        %v1966 = vstv %s1965
        %v1967 = vmul.f32 %v1966, %v836
        %v1968 = vadd.f32 %v1964, %v1967
        %s1969 = sld [smem:[#allocation9 + $0xf]]
        %v1970 = vstv %s1969
        %v1971 = vmul.f32 %v1970, %v872
        %v1972 = vadd.f32 %v1968, %v1971
        %s1973 = sld [smem:[#allocation9 + $0x10]]
        %v1974 = vstv %s1973
        %v1975 = vmul.f32 %v1974, %v866
        %v1976 = vadd.f32 %v1972, %v1975
        %s1977 = sld [smem:[#allocation9 + $0x11]]
        %v1978 = vstv %s1977
        %v1979 = vmul.f32 %v1978, %v926
        %v1980 = vadd.f32 %v1976, %v1979
        %s1981 = sld [smem:[#allocation9 + $0x12]]
        %v1982 = vstv %s1981
        %v1983 = vmul.f32 %v1982, %v962
        %v1984 = vadd.f32 %v1980, %v1983
        %s1985 = sld [smem:[#allocation9 + $0x13]]
        %v1986 = vstv %s1985
        %v1987 = vmul.f32 %v1986, %v957
        %v1988 = vadd.f32 %v1984, %v1987
        %s1989 = sld [smem:[#allocation9 + $0x14]]
        %v1990 = vstv %s1989
        %v1991 = vmul.f32 %v1990, %v1016
        %v1992 = vadd.f32 %v1988, %v1991
        %s1993 = sld [smem:[#allocation9 + $0x15]]
        %v1994 = vstv %s1993
        %v1995 = vmul.f32 %v1994, %v1046
        %v1996 = vadd.f32 %v1992, %v1995
        %s1997 = sld [smem:[#allocation9 + $0x16]]
        %v1998 = vstv %s1997
        %v1999 = vmul.f32 %v1998, %v428
        %v2000 = vadd.f32 %v1996, %v1999
        %s2001 = sld [smem:[#allocation9 + $0x17]]
        %v2002 = vstv %s2001
        %v2003 = vmul.f32 %v2002, %v1100
        %v2004 = vadd.f32 %v2000, %v2003
        %s2005 = sld [smem:[#allocation9 + $0x18]]
        %v2006 = vstv %s2005
        %v2007 = vmul.f32 %v2006, %v1136
        %v2008 = vadd.f32 %v2004, %v2007
        %s2009 = sld [smem:[#allocation9 + $0x19]]
        %v2010 = vstv %s2009
        %v2011 = vmul.f32 %v2010, %v1130
        %v2012 = vadd.f32 %v2008, %v2011
        %s2013 = sld [smem:[#allocation9 + $0x1a]]
        %v2014 = vstv %s2013
        %v2015 = vmul.f32 %v2014, %v1190
        %v2016 = vadd.f32 %v2012, %v2015
        %s2017 = sld [smem:[#allocation9 + $0x1b]]
        %v2018 = vstv %s2017
        %v2019 = vmul.f32 %v2018, %v1536
        %v2020 = vadd.f32 %v2016, %v2019
        %s2021 = sld [smem:[#allocation9 + $0x1c]]
        %v2022 = vstv %s2021
        %v2023 = vmul.f32 %v2022, %v1531
        %v2024 = vadd.f32 %v2020, %v2023
        %s2025 = sld [smem:[#allocation9 + $0x1d]]
        %v2026 = vstv %s2025
        %v2027 = vmul.f32 %v2026, %v1558
        %v2028 = vadd.f32 %v2024, %v2027
        %s2029 = sld [smem:[#allocation9 + $0x1e]]
        %v2030 = vstv %s2029
        %v2031 = vmul.f32 %v2030, %v1572
        %v2032 = vadd.f32 %v2028, %v2031
        %s2033 = sld [smem:[#allocation9 + $0x1f]]
        %v2034 = vstv %s2033
        %v2035 = vmul.f32 %v2034, %v1300
        %v2036 = vadd.f32 %v2032, %v2035
        %s2037 = sld [smem:[#allocation9 + $0x20]]
        %v2038 = vstv %s2037
        %v2039 = vmul.f32 %v2038, %v1594
        %v2040 = vadd.f32 %v2036, %v2039
        %s2041 = sld [smem:[#allocation9 + $0x21]]
        %v2042 = vstv %s2041
        %v2043 = vmul.f32 %v2042, %v1614
        %v2044 = vadd.f32 %v2040, %v2043
        %s2045 = sld [smem:[#allocation9 + $0x22]]
        %v2046 = vstv %s2045
        %v2047 = vmul.f32 %v2046, %v1608
        %v2048 = vadd.f32 %v2044, %v2047
        %s2049 = sld [smem:[#allocation9 + $0x23]]
        %v2050 = vstv %s2049
        %v2051 = vmul.f32 %v2050, %v1636
        %v2052 = vadd.f32 %v2048, %v2051
        %s2053 = sld [smem:[#allocation9 + $0x24]]
        %v2054 = vstv %s2053
        %v2055 = vmul.f32 %v2054, %v1656
        %v2056 = vadd.f32 %v2052, %v2055
        %s2057 = sld [smem:[#allocation9 + $0x25]]
        %v2058 = vstv %s2057
        %v2059 = vmul.f32 %v2058, %v1651
        %v2060 = vadd.f32 %v2056, %v2059
        %s2061 = sld [smem:[#allocation9 + $0x26]]
        %v2062 = vstv %s2061
        %v2063 = vmul.f32 %v2062, %v1678
        %v2064 = vadd.f32 %v2060, %v2063
        %s2065 = sld [smem:[#allocation9 + $0x27]]
        %v2066 = vstv %s2065
        %v2067 = vmul.f32 %v2066, %v1692
        %v2068 = vadd.f32 %v2064, %v2067
        %s2069 = sld [smem:[#allocation9 + $0x28]]
        %v2070 = vstv %s2069
        %v2071 = vmul.f32 %v2070, %v1306
        %v2072 = vadd.f32 %v2068, %v2071
        %s2073 = sld [smem:[#allocation9 + $0x29]]
        %v2074 = vstv %s2073
        %v2075 = vmul.f32 %v2074, %v1714
        %v2076 = vadd.f32 %v2072, %v2075
        %s2077 = sld [smem:[#allocation9 + $0x2a]]
        %v2078 = vstv %s2077
        %v2079 = vmul.f32 %v2078, %v1734
        %v2080 = vadd.f32 %v2076, %v2079
        %s2081 = sld [smem:[#allocation9 + $0x2b]]
        %v2082 = vstv %s2081
        %v2083 = vmul.f32 %v2082, %v1728
        %v2084 = vadd.f32 %v2080, %v2083
        %s2085 = sld [smem:[#allocation9 + $0x2c]]
        %v2086 = vstv %s2085
        %v2087 = vmul.f32 %v2086, %v1756
        %v2088 = vadd.f32 %v2084, %v2087
        %s2089 = sld [smem:[#allocation9 + $0x2d]]
        %v2090 = vstv %s2089
        %v2091 = vmul.f32 %v2090, %v1776
        %v2092 = vadd.f32 %v2088, %v2091
        %s2093 = sld [smem:[#allocation9 + $0x2e]]
        %v2094 = vstv %s2093
        %v2095 = vmul.f32 %v2094, %v1771
        %v2096 = vadd.f32 %v2092, %v2095
        %s2097 = sld [smem:[#allocation9 + $0x2f]]
        %v2098 = vstv %s2097
        %v2099 = vmul.f32 %v2098, %v1798
        %v2100 = vadd.f32 %v2096, %v2099
        %s2101 = sld [smem:[#allocation9 + $0x30]]
        %v2102 = vstv %s2101
        %v2103 = vmul.f32 %v2102, %v1812
        %v2104 = vadd.f32 %v2100, %v2103
        %s2105 = sld [smem:[#allocation9 + $0x31]]
        %v2106 = vstv %s2105
        %v2107 = vmul.f32 %v2106, %v1312
        %v2108 = vadd.f32 %v2104, %v2107
        %s2109 = sld [smem:[#allocation9 + $0x32]]
        %v2110 = vstv %s2109
        %v2111 = vmul.f32 %v2110, %v1834
        %v2112 = vadd.f32 %v2108, %v2111
        %s2113 = sld [smem:[#allocation9 + $0x33]]
        %v2114 = vstv %s2113
        %v2115 = vmul.f32 %v2114, %v1854
        %v2116 = vadd.f32 %v2112, %v2115
        %s2117 = sld [smem:[#allocation9 + $0x34]]
        %v2118 = vstv %s2117
        %v2119 = vmul.f32 %v2118, %v1848
        %v2120 = vadd.f32 %v2116, %v2119
        %s2121 = sld [smem:[#allocation9 + $0x35]]
        %v2122 = vstv %s2121
        %v2123 = vmul.f32 %v2122, %v1876
        %v2124 = vadd.f32 %v2120, %v2123
        %v2125 = vrot.slane %v1907, 7
        %v2126 = vrot.slane %v1908, 7
        %v2127 = vsel %vm435, %v2125, %v2126
        %2128 = vrot.lane.b32.xlu0 %v2127, 1
        %v2129 = vpop.permute.xlu0 %2128
        %s2130 = sld [smem:[#allocation9 + $0x36]]
        %v2131 = vstv %s2130
        %v2132 = vmul.f32 %v2131, %v2129
        %v2133 = vadd.f32 %v2124, %v2132
        %s2134 = sld [smem:[#allocation9 + $0x37]]
        %v2135 = vstv %s2134
        %v2136 = vmul.f32 %v2135, %v2127
        %v2137 = vadd.f32 %v2133, %v2136
        %2138 = vrot.lane.b32.xlu0 %v2127, 127
        %v2139 = vpop.permute.xlu0 %2138
        %s2140 = sld [smem:[#allocation9 + $0x38]]
        %v2141 = vstv %s2140
        %v2142 = vmul.f32 %v2141, %v2139
        %v2143 = vadd.f32 %v2137, %v2142
        %2144 = vrot.lane.b32.xlu0 %v1908, 1
        %v2145 = vpop.permute.xlu0 %2144
        %s2146 = sld [smem:[#allocation9 + $0x39]]
        %v2147 = vstv %s2146
        %v2148 = vmul.f32 %v2147, %v2145
        %v2149 = vadd.f32 %v2143, %v2148
        %s2150 = sld [smem:[#allocation9 + $0x3a]]
        %v2151 = vstv %s2150
        %v2152 = vmul.f32 %v2151, %v1908
        %v2153 = vadd.f32 %v2149, %v2152
        %2154 = vrot.lane.b32.xlu0 %v1908, 127
        %v2155 = vpop.permute.xlu0 %2154
        %s2156 = sld [smem:[#allocation9 + $0x3b]]
        %v2157 = vstv %s2156
        %v2158 = vmul.f32 %v2157, %v2155
        %v2159 = vadd.f32 %v2153, %v2158
        %v2160 = vrot.slane %v1908, 1
        %v2161 = vrot.slane %v1909, 1
        %v2162 = vsel %vm601, %v2160, %v2161
        %2163 = vrot.lane.b32.xlu0 %v2162, 1
        %v2164 = vpop.permute.xlu0 %2163
        %s2165 = sld [smem:[#allocation9 + $0x3c]]
        %v2166 = vstv %s2165
        %v2167 = vmul.f32 %v2166, %v2164
        %v2168 = vadd.f32 %v2159, %v2167
        %s2169 = sld [smem:[#allocation9 + $0x3d]]
        %v2170 = vstv %s2169
        %v2171 = vmul.f32 %v2170, %v2162
        %v2172 = vadd.f32 %v2168, %v2171
        %2173 = vrot.lane.b32.xlu0 %v2162, 127
        %v2174 = vpop.permute.xlu0 %2173
        %s2175 = sld [smem:[#allocation9 + $0x3e]]
        %v2176 = vstv %s2175
        %v2177 = vmul.f32 %v2176, %v2174
        %v2178 = vadd.f32 %v2172, %v2177
        %s2179 = sld [smem:[#allocation3]]
        %v2180 = vstv %s2179
        %v2181 = vadd.f32 %v2178, %v2180
        %v2182 = vsub.f32 0.0, %v2181
        %v2183 = vmul.f32 %v2182, 1.442695
        %v2184 = vpow.pop %v2183
        %v2185 = vadd.f32 %v2184, 1.0
        %v2186 = vrcp.pop %v2185
        %2187 = vst [vmem:[%s388] sm:$0xff] %v1220
        %s2188 = scalar_lea.vmem %s388, 8 [#allocation11]
        %2189 = vst [vmem:[%s2188] sm:$0xff] %v1225
        %s2190 = scalar_lea.vmem %s388, 16 [#allocation11]
        %2191 = vst [vmem:[%s2190] sm:$0xff] %v1230
        %2192 = vst [vmem:[%s410] sm:$0xff] %v1905
        %2193 = vst [vmem:[%s414] sm:$0xff] %v2186
        %2194 = vst [vmem:[%s406] sm:$0xff] %v418
        %s2195 = scalar_lea.vmem %s406, 8 [#allocation12]
        %2196 = vst [vmem:[%s2195] sm:$0xff] %v423
        %s2197 = scalar_lea.vmem %s406, 16 [#allocation12]
        %2198 = vst [vmem:[%s2197] sm:$0xff] %v428
        %s2199 = scalar_lea.vmem %s406, 24 [#allocation12]
        %2200 = vst [vmem:[%s2199] sm:$0xff] %v2186
        %s2201 = sand.u32 %s182, 1
        %s2202 = sand.u32 %s182, 1
        %s2203 = smul.addr %s2202, 24
        %s2204 = scalar_lea.vmem [#allocation11], %s2203
        %p2205 = scmp.lt.s32.totalorder %s27, 1
        %s2206 = scalar_select %p2205, %s27, 1
        %s2207 = smul.addr %s2206, 8
        %s2208 = scalar_lea.vmem %s8, %s2207
        %p2209 = scmp.lt.s32.totalorder %s27, 1
        %s2210 = scalar_select %p2209, %s27, 1
        %s2211 = smul.addr %s2210, 8
        %s2212 = scalar_lea.vmem %s9, %s2211
        %s2213 = sand.u32 %s260, 1
        %s2214 = sand.u32 %s260, 1
        %s2215 = smul.addr %s2214, 32
        %s2216 = scalar_lea.vmem [#allocation12], %s2215
        // Predicated region
        $region65: #{cutout_net_forward.1} parent=47 // pred_check
          %p2217 = pneg %p192
        $region66: #{cutout_net_forward.1} parent=47 // pred_check_branch
          %2219 = sbr.rel (%p2217) target = $region68
        $region67: #{cutout_net_forward.1} parent=47 // pred_region
          %s2220 = smul.addr %s27, 8
          %s2221 = scalar_lea.vmem %s7, %s2220
          // Predicated region
          $region69: #{cutout_net_forward.1} parent=67 // pred_check
            _
          $region70: #{cutout_net_forward.1} parent=67 // pred_check_branch
            %2223 = sbr.rel (0) target = $region72
          $region71: #{cutout_net_forward.1} parent=67 // pred_region
            // Predicated region
            $region73: #{cutout_net_forward.1} parent=71 // pred_check
              _
            $region74: #{cutout_net_forward.1} parent=71 // pred_check_branch
              %2225 = sbr.rel (0) target = $region76
            $region75: #{cutout_net_forward.1} parent=71 // pred_region
              // Predicated region
              $region88: #{cutout_net_forward.1} parent=75 // pred_check
                _
              $region89: #{cutout_net_forward.1} parent=75 // pred_check_branch
                %2244 = sbr.rel (0) target = $region91
              $region90: #{cutout_net_forward.1} parent=75 // pred_region
                loop: start=0, step=1, limit=1
                $region92: #{cutout_net_forward.1} parent=90 // loop_pre_header
                  _
                $region93: #{cutout_net_forward.1} parent=90 // loop_header
                  %s2246 = sphi 0, %s2250
                  %p2247 = scmp.ge.s32.totalorder %s2246, 1
                  %s2251 = sphi %s2204, %s2204
                  %s2252 = sphi %s2221, %s2221
                $region94: #{cutout_net_forward.1} parent=90 // loop_header_branch
                  %2249 = sbr.rel (%p2247) target = $region98
                $region95: #{cutout_net_forward.1} parent=90 // loop_body
                  %v2253 = vld [vmem:[%s2251] sm:$0xff]
                  %2254 = vst [vmem:[%s2252] sm:$0xff] %v2253
                  %v2255 = vld [vmem:[%s2251 + $0x8] sm:$0xff]
                  %2256 = vst [vmem:[%s2252 + $0x10] sm:$0xff] %v2255
                  %v2257 = vld [vmem:[%s2251 + $0x10] sm:$0xff]
                  %2258 = vst [vmem:[%s2252 + $0x20] sm:$0xff] %v2257
                $region96: #{cutout_net_forward.1} parent=90 // loop_footer
                  %s2250 = sadd.s32 1, %s2246
                $region97: #{cutout_net_forward.1} parent=90 // loop_footer_branch
                  %2245 = sbr.rel target = $region93
                $region98: #{cutout_net_forward.1} parent=90 // loop_exit
                  _
              $region91: #{cutout_net_forward.1} parent=75 // pred_fallthru
                _
              // Predicated region
              $region99: #{cutout_net_forward.1} parent=75 // pred_check
                _
              $region100: #{cutout_net_forward.1} parent=75 // pred_check_branch
                %2260 = sbr.rel target = $region102
              $region101: #{cutout_net_forward.1} parent=75 // pred_region
                _
              $region102: #{cutout_net_forward.1} parent=75 // pred_fallthru
                _
            $region76: #{cutout_net_forward.1} parent=71 // pred_fallthru
              _
            // Predicated region
            $region77: #{cutout_net_forward.1} parent=71 // pred_check
              _
            $region78: #{cutout_net_forward.1} parent=71 // pred_check_branch
              %2227 = sbr.rel target = $region80
            $region79: #{cutout_net_forward.1} parent=71 // pred_region
              loop: start=0, step=1, limit=1
              $region81: #{cutout_net_forward.1} parent=79 // loop_pre_header
                _
              $region82: #{cutout_net_forward.1} parent=79 // loop_header
                %s2230 = sphi 0, %s2234
                %p2231 = scmp.ge.s32.totalorder %s2230, 1
                %s2235 = sphi %s2204, %s2204
                %s2236 = sphi %s2221, %s2221
              $region83: #{cutout_net_forward.1} parent=79 // loop_header_branch
                %2233 = sbr.rel (%p2231) target = $region87
              $region84: #{cutout_net_forward.1} parent=79 // loop_body
                %v2237 = vld [vmem:[%s2235] sm:$0xff]
                %2238 = vst [vmem:[%s2236] sm:$0xff] %v2237
                %v2239 = vld [vmem:[%s2235 + $0x8] sm:$0xff]
                %2240 = vst [vmem:[%s2236 + $0x10] sm:$0xff] %v2239
                %v2241 = vld [vmem:[%s2235 + $0x10] sm:$0xff]
                %2242 = vst [vmem:[%s2236 + $0x20] sm:$0xff] %v2241
              $region85: #{cutout_net_forward.1} parent=79 // loop_footer
                %s2234 = sadd.s32 1, %s2230
              $region86: #{cutout_net_forward.1} parent=79 // loop_footer_branch
                %2229 = sbr.rel target = $region82
              $region87: #{cutout_net_forward.1} parent=79 // loop_exit
                _
            $region80: #{cutout_net_forward.1} parent=71 // pred_fallthru
              _
          $region72: #{cutout_net_forward.1} parent=67 // pred_fallthru
            _
          %2261 = vnop
        $region68: #{cutout_net_forward.1} parent=47 // pred_fallthru
          _
        // Predicated region
        $region103: #{cutout_net_forward.1} parent=47 // pred_check
          %p2262 = pneg %p218
        $region104: #{cutout_net_forward.1} parent=47 // pred_check_branch
          %2264 = sbr.rel (%p2262) target = $region106
        $region105: #{cutout_net_forward.1} parent=47 // pred_region
          _
        $region106: #{cutout_net_forward.1} parent=47 // pred_fallthru
          _
        // Predicated region
        $region107: #{cutout_net_forward.1} parent=47 // pred_check
          %p2265 = pneg %p244
        $region108: #{cutout_net_forward.1} parent=47 // pred_check_branch
          %2267 = sbr.rel (%p2265) target = $region110
        $region109: #{cutout_net_forward.1} parent=47 // pred_region
          _
        $region110: #{cutout_net_forward.1} parent=47 // pred_fallthru
          _
        // Predicated region
        $region111: #{cutout_net_forward.1} parent=47 // pred_check
          %p2268 = pneg %p270
        $region112: #{cutout_net_forward.1} parent=47 // pred_check_branch
          %2270 = sbr.rel (%p2268) target = $region114
        $region113: #{cutout_net_forward.1} parent=47 // pred_region
          %s2271 = smul.addr %s27, 8
          %s2272 = scalar_lea.vmem %s10, %s2271
          // Predicated region
          $region115: #{cutout_net_forward.1} parent=113 // pred_check
            _
          $region116: #{cutout_net_forward.1} parent=113 // pred_check_branch
            %2274 = sbr.rel (0) target = $region118
          $region117: #{cutout_net_forward.1} parent=113 // pred_region
            // Predicated region
            $region119: #{cutout_net_forward.1} parent=117 // pred_check
              _
            $region120: #{cutout_net_forward.1} parent=117 // pred_check_branch
              %2276 = sbr.rel (0) target = $region122
            $region121: #{cutout_net_forward.1} parent=117 // pred_region
              // Predicated region
              $region134: #{cutout_net_forward.1} parent=121 // pred_check
                _
              $region135: #{cutout_net_forward.1} parent=121 // pred_check_branch
                %2297 = sbr.rel (0) target = $region137
              $region136: #{cutout_net_forward.1} parent=121 // pred_region
                loop: start=0, step=1, limit=1
                $region138: #{cutout_net_forward.1} parent=136 // loop_pre_header
                  _
                $region139: #{cutout_net_forward.1} parent=136 // loop_header
                  %s2299 = sphi 0, %s2303
                  %p2300 = scmp.ge.s32.totalorder %s2299, 1
                  %s2304 = sphi %s2216, %s2216
                  %s2305 = sphi %s2272, %s2272
                $region140: #{cutout_net_forward.1} parent=136 // loop_header_branch
                  %2302 = sbr.rel (%p2300) target = $region144
                $region141: #{cutout_net_forward.1} parent=136 // loop_body
                  %v2306 = vld [vmem:[%s2304] sm:$0xff]
                  %2307 = vst [vmem:[%s2305] sm:$0xff] %v2306
                  %v2308 = vld [vmem:[%s2304 + $0x8] sm:$0xff]
                  %2309 = vst [vmem:[%s2305 + $0x10] sm:$0xff] %v2308
                  %v2310 = vld [vmem:[%s2304 + $0x10] sm:$0xff]
                  %2311 = vst [vmem:[%s2305 + $0x20] sm:$0xff] %v2310
                  %v2312 = vld [vmem:[%s2304 + $0x18] sm:$0xff]
                  %2313 = vst [vmem:[%s2305 + $0x30] sm:$0xff] %v2312
                $region142: #{cutout_net_forward.1} parent=136 // loop_footer
                  %s2303 = sadd.s32 1, %s2299
                $region143: #{cutout_net_forward.1} parent=136 // loop_footer_branch
                  %2298 = sbr.rel target = $region139
                $region144: #{cutout_net_forward.1} parent=136 // loop_exit
                  _
              $region137: #{cutout_net_forward.1} parent=121 // pred_fallthru
                _
              // Predicated region
              $region145: #{cutout_net_forward.1} parent=121 // pred_check
                _
              $region146: #{cutout_net_forward.1} parent=121 // pred_check_branch
                %2315 = sbr.rel target = $region148
              $region147: #{cutout_net_forward.1} parent=121 // pred_region
                _
              $region148: #{cutout_net_forward.1} parent=121 // pred_fallthru
                _
            $region122: #{cutout_net_forward.1} parent=117 // pred_fallthru
              _
            // Predicated region
            $region123: #{cutout_net_forward.1} parent=117 // pred_check
              _
            $region124: #{cutout_net_forward.1} parent=117 // pred_check_branch
              %2278 = sbr.rel target = $region126
            $region125: #{cutout_net_forward.1} parent=117 // pred_region
              loop: start=0, step=1, limit=1
              $region127: #{cutout_net_forward.1} parent=125 // loop_pre_header
                _
              $region128: #{cutout_net_forward.1} parent=125 // loop_header
                %s2281 = sphi 0, %s2285
                %p2282 = scmp.ge.s32.totalorder %s2281, 1
                %s2286 = sphi %s2216, %s2216
                %s2287 = sphi %s2272, %s2272
              $region129: #{cutout_net_forward.1} parent=125 // loop_header_branch
                %2284 = sbr.rel (%p2282) target = $region133
              $region130: #{cutout_net_forward.1} parent=125 // loop_body
                %v2288 = vld [vmem:[%s2286] sm:$0xff]
                %2289 = vst [vmem:[%s2287] sm:$0xff] %v2288
                %v2290 = vld [vmem:[%s2286 + $0x8] sm:$0xff]
                %2291 = vst [vmem:[%s2287 + $0x10] sm:$0xff] %v2290
                %v2292 = vld [vmem:[%s2286 + $0x10] sm:$0xff]
                %2293 = vst [vmem:[%s2287 + $0x20] sm:$0xff] %v2292
                %v2294 = vld [vmem:[%s2286 + $0x18] sm:$0xff]
                %2295 = vst [vmem:[%s2287 + $0x30] sm:$0xff] %v2294
              $region131: #{cutout_net_forward.1} parent=125 // loop_footer
                %s2285 = sadd.s32 1, %s2281
              $region132: #{cutout_net_forward.1} parent=125 // loop_footer_branch
                %2280 = sbr.rel target = $region128
              $region133: #{cutout_net_forward.1} parent=125 // loop_exit
                _
            $region126: #{cutout_net_forward.1} parent=117 // pred_fallthru
              _
          $region118: #{cutout_net_forward.1} parent=113 // pred_fallthru
            _
          %2316 = vnop
        $region114: #{cutout_net_forward.1} parent=47 // pred_fallthru
          _
      $region48: #{cutout_net_forward.1} parent=5 // pred_fallthru
        _
      %p2317 = scmp.le.s32.totalorder 2, %s22
      // Predicated region
      $region149: #{cutout_net_forward.1} parent=5 // pred_check
        %p2318 = pneg %p2317
      $region150: #{cutout_net_forward.1} parent=5 // pred_check_branch
        %2320 = sbr.rel (%p2318) target = $region152
      $region151: #{cutout_net_forward.1} parent=5 // pred_region
        %s2321 = ssub.s32 %s22, 2
        // Predicated region
        $region153: #{cutout_net_forward.1} parent=151 // pred_check
          %p2322 = pneg %p198
        $region154: #{cutout_net_forward.1} parent=151 // pred_check_branch
          %2324 = sbr.rel (%p2322) target = $region156
        $region155: #{cutout_net_forward.1} parent=151 // pred_region
          %s2325 = sand.u32 %s183, 1
          %s2326 = sand.u32 %s183, 1
          %s2327 = smul.addr %s2326, 24
          %s2328 = scalar_lea.vmem [#allocation11], %s2327
        $region156: #{cutout_net_forward.1} parent=151 // pred_fallthru
          _
        // Predicated region
        $region157: #{cutout_net_forward.1} parent=151 // pred_check
          %p2329 = pneg %p224
        $region158: #{cutout_net_forward.1} parent=151 // pred_check_branch
          %2331 = sbr.rel (%p2329) target = $region160
        $region159: #{cutout_net_forward.1} parent=151 // pred_region
          %p2332 = scmp.lt.s32.totalorder %s28, 1
          %s2333 = scalar_select %p2332, %s28, 1
          %s2334 = smul.addr %s2333, 8
          %s2335 = scalar_lea.vmem %s8, %s2334
        $region160: #{cutout_net_forward.1} parent=151 // pred_fallthru
          _
        // Predicated region
        $region161: #{cutout_net_forward.1} parent=151 // pred_check
          %p2336 = pneg %p250
        $region162: #{cutout_net_forward.1} parent=151 // pred_check_branch
          %2338 = sbr.rel (%p2336) target = $region164
        $region163: #{cutout_net_forward.1} parent=151 // pred_region
          %p2339 = scmp.lt.s32.totalorder %s28, 1
          %s2340 = scalar_select %p2339, %s28, 1
          %s2341 = smul.addr %s2340, 8
          %s2342 = scalar_lea.vmem %s9, %s2341
        $region164: #{cutout_net_forward.1} parent=151 // pred_fallthru
          _
        // Predicated region
        $region165: #{cutout_net_forward.1} parent=151 // pred_check
          %p2343 = pneg %p276
        $region166: #{cutout_net_forward.1} parent=151 // pred_check_branch
          %2345 = sbr.rel (%p2343) target = $region168
        $region167: #{cutout_net_forward.1} parent=151 // pred_region
          %s2346 = sand.u32 %s261, 1
          %s2347 = sand.u32 %s261, 1
          %s2348 = smul.addr %s2347, 32
          %s2349 = scalar_lea.vmem [#allocation12], %s2348
        $region168: #{cutout_net_forward.1} parent=151 // pred_fallthru
          _
      $region152: #{cutout_net_forward.1} parent=5 // pred_fallthru
        _
    $region6: #{cutout_net_forward.1} parent=1 // loop_footer
      %s26 = sadd.s32 1, %s22
    $region7: #{cutout_net_forward.1} parent=1 // loop_footer_branch
      %21 = sbr.rel target = $region3
    $region8: #{cutout_net_forward.1} parent=1 // loop_exit
      _
    %2350 = vsyncpa [#allocation5], 1
    %s2351 = scalar_lea.sflag [#allocation5], 1
    %2352 = vsyncpa %s2351, 1
    %2353 = vsyncpa [#allocation7], 1
    %2354 = vsyncpa [#allocation10], 1

</llo_original>
